<compile_context>
chip_gen: v6e
topology: v6e:2x2x1
jax: 0.10.0
libtpu: 0.0.40
codegen_flags: <defaults>
</compile_context>

<pallas_src>
import functools

import jax
import jax.numpy as jnp
from jax.experimental import pallas as pl
from jax.experimental.pallas import tpu as pltpu


def _round_up(x, m):
    return ((x + m - 1) // m) * m


def packed_layer_meta(scale_factor, n_feat):
    """(row_offset, cout, cin) per packed layer slice (seg.conv1 is split in two)."""
    S = 8 * scale_factor
    dims = [
        (S,      n_feat),   # 0 feat.conv1 (+bn1)
        (2 * S,  S),        # 1 feat.conv4 (+bn12)
        (4 * S,  2 * S),    # 2 feat.conv2 (+bn2)
        (8 * S,  4 * S),    # 3 feat.conv3 (+bn3)
        (4 * S,  8 * S),    # 4 feat.fc1   (+bn4)
        (2 * S,  4 * S),    # 5 feat.fc2   (+bn5)
        (2 * S,  2 * S),    # 6 seg.conv1 global-feature half (+seg.bn1), owns bias
        (2 * S,  2 * S),    # 7 seg.conv1 pointfeat half (bias folded into slot 6)
        (S,      2 * S),    # 8 seg.conv2  (+seg.bn2)
        (4,      S),        # 9 seg.conv3
    ]
    meta, off = [], 0
    for cout, cin in dims:
        meta.append((off, cout, cin))
        off += cout
    return tuple(meta), off


def pointnet_seg_kernel(x_ref, w_ref, b_ref, out_ref, gmax_ref, glob_ref, *,
                        meta, num_tiles, tile_n, n_valid):
    """Two-phase kernel.  Grid = (batch, 2*num_tiles)."""
    p = pl.program_id(1)

    def weight(l):
        off, cout, cin = meta[l]
        return w_ref[off:off + cout, 0:cin]          # static slice of packed weights

    def bias(l):
        off, cout, _ = meta[l]
        return b_ref[off:off + cout, :]               # (cout, 1), broadcasts over lanes

    def layer(a, l, relu=True):
        y = jnp.dot(weight(l), a, preferred_element_type=jnp.float32) + bias(l)
        return jnp.maximum(y, 0.0) if relu else y

    x = x_ref[...]                                    # (n_feat, tile_n): C on sublanes, pts on lanes

    @pl.when(p == 0)
    def _init():
        gmax_ref[...] = jnp.full(gmax_ref.shape, -jnp.inf, jnp.float32)

    # ---- phase 0: running channel-wise max of h4 over all point tiles ----
    @pl.when(p < num_tiles)
    def _phase0():
        h = layer(x, 0)
        h = layer(h, 1)
        h = layer(h, 2)
        h4 = layer(h, 3)                                              # (8S, tile_n)
        if n_valid != num_tiles * tile_n:                             # static: padding exists
            col = p * tile_n + jax.lax.broadcasted_iota(jnp.int32, (1, tile_n), 1)
            h4 = jnp.where(col < n_valid, h4, -jnp.inf)               # mask pad points
        gmax_ref[...] = jnp.maximum(gmax_ref[...],
                                    jnp.max(h4, axis=1, keepdims=True))

    # ---- phase boundary: global feature -> broadcast bias for seg.conv1 ----
    @pl.when(p == num_tiles)
    def _global():
        g = gmax_ref[...]                                             # (8S, 1)
        g = layer(g, 4)                                               # fc1 (+bn4), relu
        g = layer(g, 5)                                               # fc2 (+bn5), relu
        glob_ref[...] = (jnp.dot(weight(6), g,
                                 preferred_element_type=jnp.float32) + bias(6))

    # ---- phase 1: per-tile segmentation head (conv1/conv4 recomputed) ----
    @pl.when(p >= num_tiles)
    def _phase1():
        h = layer(x, 0)
        h2 = layer(h, 1)                                              # pointfeat (2S, tile_n)
        s = jnp.dot(weight(7), h2, preferred_element_type=jnp.float32) + glob_ref[...]
        s = jnp.maximum(s, 0.0)                                       # seg.conv1 (+bn1), relu
        s = layer(s, 8)                                               # seg.conv2 (+bn2), relu
        s = layer(s, 9, relu=False)                                   # seg.conv3
        out_ref[...] = jax.nn.sigmoid(s)                              # (4, tile_n), lane-dense


@functools.partial(jax.jit, static_argnames=("scale_factor", "n_feat", "tile_n"))
def pointnet_seg_impulse_v1(x_ncw, w_packed, b_packed, *, scale_factor=2,
                            n_feat=3, tile_n=512):
    """x_ncw: (B, n_feat, N) float32, torch NCW layout.  Returns (B, N, 4)."""
    assert tile_n % 128 == 0
    B, C, N = x_ncw.shape
    assert C == n_feat
    S = 8 * scale_factor
    meta, _ = packed_layer_meta(scale_factor, n_feat)

    n_pad = _round_up(max(N, tile_n), tile_n)
    nt = n_pad // tile_n
    x_p = jnp.pad(x_ncw, ((0, 0), (0, 0), (0, n_pad - N)))

    kernel = functools.partial(pointnet_seg_kernel, meta=meta, num_tiles=nt,
                               tile_n=tile_n, n_valid=N)

    out = pl.pallas_call(
        kernel,
        out_shape=jax.ShapeDtypeStruct((B, 4, n_pad), jnp.float32),
        grid=(B, 2 * nt),
        in_specs=[
            pl.BlockSpec((None, n_feat, tile_n), lambda bb, pp: (bb, 0, pp % nt)),
            pl.BlockSpec(w_packed.shape, lambda bb, pp: (0, 0)),
            pl.BlockSpec(b_packed.shape, lambda bb, pp: (0, 0)),
        ],
        # Pinned to block 0 during phase 0 (no writes there), walked 0..nt-1 in
        # phase 1 so every output block is written exactly once before flush.
        out_specs=pl.BlockSpec((None, 4, tile_n),
                               lambda bb, pp: (bb, 0, jnp.maximum(pp - nt, 0))),
        scratch_shapes=[
            pltpu.VMEM((8 * S, 1), jnp.float32),   # running max of h4 (per batch elem)
            pltpu.VMEM((2 * S, 1), jnp.float32),   # global term of seg.conv1
        ],
        compiler_params=pltpu.CompilerParams(
            dimension_semantics=("parallel", "arbitrary"),
            vmem_limit_bytes=32 * 1024 * 1024),
    )(x_p, w_packed, b_packed)

    # (B, 4, N) -> (B, N, 4): matches torch's x.transpose(2, 1) (squeeze(-1) is a no-op).
    return jnp.transpose(out[:, :, :N], (0, 2, 1))


# ---------------------------------------------------------------------------
# Parameter construction (deterministic synthetic weights, BN folded + packed)
# ---------------------------------------------------------------------------
def _fold_bn(W, b, gamma, beta, mean, var, eps=1e-5):
    """Fold inference-mode BatchNorm1d into a (Cout, Cin) weight / (Cout,) bias."""
    scale = gamma / jnp.sqrt(var + eps)
    return W * scale[:, None], scale * (b - mean) + beta


def init_params(key, scale_factor=2, n_feat=3):
    """Returns 9 (W (Cout,Cin), b (Cout,)) pairs in module order, BN folded."""
    S = 8 * scale_factor
    layer_defs = [  # (cin, cout, has_bn)
        (n_feat, S,     True),   # feat.conv1 + bn1
        (S,      2 * S, True),   # feat.conv4 + bn12
        (2 * S,  4 * S, True),   # feat.conv2 + bn2
        (4 * S,  8 * S, True),   # feat.conv3 + bn3
        (8 * S,  4 * S, True),   # feat.fc1   + bn4
        (4 * S,  2 * S, True),   # feat.fc2   + bn5
        (4 * S,  2 * S, True),   # seg.conv1  + seg.bn1
        (2 * S,  S,     True),   # seg.conv2  + seg.bn2
        (S,      4,     False),  # seg.conv3
    ]
    keys = jax.random.split(key, len(layer_defs) * 6)
    params, ki = [], 0
    for cin, cout, has_bn in layer_defs:
        W = 0.1 * jax.random.normal(keys[ki + 0], (cout, cin), jnp.float32)
        b = 0.05 * jax.random.normal(keys[ki + 1], (cout,), jnp.float32)
        if has_bn:
            gamma = 1.0 + 0.1 * jax.random.normal(keys[ki + 2], (cout,), jnp.float32)
            beta = 0.05 * jax.random.normal(keys[ki + 3], (cout,), jnp.float32)
            mean = 0.05 * jax.random.normal(keys[ki + 4], (cout,), jnp.float32)
            var = 1.0 + 0.1 * jnp.abs(jax.random.normal(keys[ki + 5], (cout,), jnp.float32))
            W, b = _fold_bn(W, b, gamma, beta, mean, var)
        params.append((W, b))
        ki += 6
    return params


def pack_params(params, scale_factor=2, n_feat=3):
    """Pack the 9 folded layers into one weight buffer and one bias buffer."""
    S = 8 * scale_factor
    (w1, b1), (w4, b4), (w2, b2), (w3, b3), (wf1, bf1), (wf2, bf2), \
        (wc1, bc1), (wc2, bc2), (wc3, bc3) = params
    entries = [
        (w1, b1), (w4, b4), (w2, b2), (w3, b3), (wf1, bf1), (wf2, bf2),
        (wc1[:, :2 * S], bc1),                      # seg.conv1: global half + bias
        (wc1[:, 2 * S:], jnp.zeros_like(bc1)),      # seg.conv1: pointfeat half (no bias)
        (wc2, bc2), (wc3, bc3),
    ]
    meta, total_rows = packed_layer_meta(scale_factor, n_feat)
    w_rows = _round_up(total_rows, 8)
    w_cols = _round_up(max(cin for _, _, cin in meta), 128)
    w_packed = jnp.zeros((w_rows, w_cols), jnp.float32)
    b_packed = jnp.zeros((w_rows, 1), jnp.float32)
    for (W, b), (off, cout, cin) in zip(entries, meta):
        w_packed = w_packed.at[off:off + cout, 0:cin].set(W)
        b_packed = b_packed.at[off:off + cout, 0].set(b)
    return w_packed, b_packed


# ---------------------------------------------------------------------------
# Pure-JAX reference (same BN-folded params, straightforward concat version)
# ---------------------------------------------------------------------------
def reference_forward(x_ncw, params):
    (w1, b1), (w4, b4), (w2, b2), (w3, b3), (wf1, bf1), (wf2, bf2), \
        (wc1, bc1), (wc2, bc2), (wc3, bc3) = params
    x = jnp.transpose(x_ncw, (0, 2, 1))                    # (B, N, C)
    relu = lambda v: jnp.maximum(v, 0.0)
    h1 = relu(x @ w1.T + b1)
    h2 = relu(h1 @ w4.T + b4)
    h3 = relu(h2 @ w2.T + b2)
    h4 = relu(h3 @ w3.T + b3)
    g = jnp.max(h4, axis=1, keepdims=True)                 # (B, 1, 8S)
    g1 = relu(g @ wf1.T + bf1)
    g2 = relu(g1 @ wf2.T + bf2)
    gb = jnp.broadcast_to(g2, (x.shape[0], x.shape[1], g2.shape[-1]))
    feat = jnp.concatenate([gb, h2], axis=-1)
    s1 = relu(feat @ wc1.T + bc1)
    s2 = relu(s1 @ wc2.T + bc2)
    s3 = s2 @ wc3.T + bc3
    return jax.nn.sigmoid(s3)                              # (B, N, 4)


if __name__ == "__main__":
    key = jax.random.PRNGKey(0)
    k_x, k_p = jax.random.split(key)

    B, n_feat, N, scale_factor = 2, 3, 1000, 2
    x = jax.random.normal(k_x, (B, n_feat, N), jnp.float32)   # torch NCW layout

    params = init_params(k_p, scale_factor=scale_factor, n_feat=n_feat)
    w_packed, b_packed = pack_params(params, scale_factor=scale_factor, n_feat=n_feat)

    out = pointnet_seg_impulse_v1(x, w_packed, b_packed,
                                  scale_factor=scale_factor, n_feat=n_feat,
                                  tile_n=512)
    out = jax.block_until_ready(out)
    assert out.shape == (B, N, 4), out.shape

    ref = reference_forward(x, params)
    max_err = float(jnp.max(jnp.abs(out - ref)))
    assert jnp.allclose(out, ref, rtol=1e-2, atol=1e-2), max_err

    print("KERNEL_OK")
</pallas_src>

<mosaic_0001>
module attributes {stable_mosaic.version = 11 : i64} {
  func.func @pointnet_seg_kernel(%arg0: i32, %arg1: i32, %arg2: memref<1x3x512xf32, #tpu.memory_space<vmem>>, %arg3: memref<424x128xf32, #tpu.memory_space<vmem>>, %arg4: memref<424x1xf32, #tpu.memory_space<vmem>>, %arg5: memref<1x4x512xf32, #tpu.memory_space<vmem>>, %arg6: memref<128x1xf32, #tpu.memory_space<vmem>>, %arg7: memref<32x1xf32, #tpu.memory_space<vmem>>) attributes {dimension_semantics = [#tpu.dimension_semantics<parallel>, #tpu.dimension_semantics<arbitrary>], iteration_bounds = array<i64: 2, 4>, scalar_prefetch = 0 : i64, scratch_operands = 2 : i64, tpu.core_type = #tpu.core_type<tc>, window_params = [{transform_indices = @transform_0, window_bounds = array<i64: 1, 3, 512>}, {pipeline_mode = #tpu.pipeline_mode<synchronous>, transform_indices = @transform_1, window_bounds = array<i64: 424, 128>}, {pipeline_mode = #tpu.pipeline_mode<synchronous>, transform_indices = @transform_2, window_bounds = array<i64: 424, 1>}, {transform_indices = @transform_3, window_bounds = array<i64: 1, 4, 512>}]} {
    %c0 = arith.constant 0 : index
    %c0_0 = arith.constant 0 : index
    %c0_1 = arith.constant 0 : index
    %0 = vector.load %arg2[%c0, %c0_0, %c0_1] : memref<1x3x512xf32, #tpu.memory_space<vmem>>, vector<1x3x512xf32>
    %1 = vector.shape_cast %0 : vector<1x3x512xf32> to vector<3x512xf32>
    %c0_i32 = arith.constant 0 : i32
    %2 = arith.cmpi eq, %arg1, %c0_i32 : i32
    %3 = arith.extui %2 : i1 to i32
    %c0_i32_2 = arith.constant 0 : i32
    %4 = arith.cmpi ne, %3, %c0_i32_2 : i32
    scf.if %4 {
      %cst = arith.constant 0xFF800000 : f32
      %14 = vector.broadcast %cst : f32 to vector<128x1xf32>
      %c0_8 = arith.constant 0 : index
      %c0_9 = arith.constant 0 : index
      %15 = vector.load %arg6[%c0_8, %c0_9] : memref<128x1xf32, #tpu.memory_space<vmem>>, vector<128x1xf32>
      tpu.vector_store %arg6[%c0_8, %c0_9], %14 {strides = array<i32>} : memref<128x1xf32, #tpu.memory_space<vmem>>, vector<128x1xf32>,
    } else {
    }
    %c2_i32 = arith.constant 2 : i32
    %5 = arith.cmpi slt, %arg1, %c2_i32 : i32
    %6 = arith.extui %5 : i1 to i32
    %c0_i32_3 = arith.constant 0 : i32
    %7 = arith.cmpi ne, %6, %c0_i32_3 : i32
    scf.if %7 {
      %c0_8 = arith.constant 0 : index
      %c0_9 = arith.constant 0 : index
      %14 = vector.load %arg3[%c0_8, %c0_9] : memref<424x128xf32, #tpu.memory_space<vmem>>, vector<16x3xf32>
      %cst = arith.constant dense<0.000000e+00> : vector<16x512xf32>
      %15 = tpu.matmul %14, %1, %cst {dimension_numbers = #tpu.dot_dimension_numbers<[1], [0], [0], [1], [0, 0, 1, 1], [], []>} : vector<16x3xf32>, vector<3x512xf32>, vector<16x512xf32> -> vector<16x512xf32>
      %c0_10 = arith.constant 0 : index
      %c0_11 = arith.constant 0 : index
      %16 = vector.load %arg4[%c0_10, %c0_11] : memref<424x1xf32, #tpu.memory_space<vmem>>, vector<16x1xf32>
      %17 = vector.broadcast %16 : vector<16x1xf32> to vector<16x512xf32>
      %18 = arith.addf %15, %17 : vector<16x512xf32>
      %cst_12 = arith.constant 0.000000e+00 : f32
      %19 = vector.broadcast %cst_12 : f32 to vector<16x512xf32>
      %20 = arith.maximumf %18, %19 : vector<16x512xf32>
      %c16 = arith.constant 16 : index
      %c0_13 = arith.constant 0 : index
      %21 = vector.load %arg3[%c16, %c0_13] : memref<424x128xf32, #tpu.memory_space<vmem>>, vector<32x16xf32>
      %cst_14 = arith.constant dense<0.000000e+00> : vector<32x512xf32>
      %22 = tpu.matmul %21, %20, %cst_14 {dimension_numbers = #tpu.dot_dimension_numbers<[1], [0], [0], [1], [0, 0, 1, 1], [], []>} : vector<32x16xf32>, vector<16x512xf32>, vector<32x512xf32> -> vector<32x512xf32>
      %c16_15 = arith.constant 16 : index
      %c0_16 = arith.constant 0 : index
      %23 = vector.load %arg4[%c16_15, %c0_16] : memref<424x1xf32, #tpu.memory_space<vmem>>, vector<32x1xf32>
      %24 = vector.broadcast %23 : vector<32x1xf32> to vector<32x512xf32>
      %25 = arith.addf %22, %24 : vector<32x512xf32>
      %cst_17 = arith.constant 0.000000e+00 : f32
      %26 = vector.broadcast %cst_17 : f32 to vector<32x512xf32>
      %27 = arith.maximumf %25, %26 : vector<32x512xf32>
      %c48 = arith.constant 48 : index
      %c0_18 = arith.constant 0 : index
      %28 = vector.load %arg3[%c48, %c0_18] : memref<424x128xf32, #tpu.memory_space<vmem>>, vector<64x32xf32>
      %cst_19 = arith.constant dense<0.000000e+00> : vector<64x512xf32>
      %29 = tpu.matmul %28, %27, %cst_19 {dimension_numbers = #tpu.dot_dimension_numbers<[1], [0], [0], [1], [0, 0, 1, 1], [], []>} : vector<64x32xf32>, vector<32x512xf32>, vector<64x512xf32> -> vector<64x512xf32>
      %c48_20 = arith.constant 48 : index
      %c0_21 = arith.constant 0 : index
      %30 = vector.load %arg4[%c48_20, %c0_21] : memref<424x1xf32, #tpu.memory_space<vmem>>, vector<64x1xf32>
      %31 = vector.broadcast %30 : vector<64x1xf32> to vector<64x512xf32>
      %32 = arith.addf %29, %31 : vector<64x512xf32>
      %cst_22 = arith.constant 0.000000e+00 : f32
      %33 = vector.broadcast %cst_22 : f32 to vector<64x512xf32>
      %34 = arith.maximumf %32, %33 : vector<64x512xf32>
      %c112 = arith.constant 112 : index
      %c0_23 = arith.constant 0 : index
      %35 = vector.load %arg3[%c112, %c0_23] : memref<424x128xf32, #tpu.memory_space<vmem>>, vector<128x64xf32>
      %cst_24 = arith.constant dense<0.000000e+00> : vector<128x512xf32>
      %36 = tpu.matmul %35, %34, %cst_24 {dimension_numbers = #tpu.dot_dimension_numbers<[1], [0], [0], [1], [0, 0, 1, 1], [], []>} : vector<128x64xf32>, vector<64x512xf32>, vector<128x512xf32> -> vector<128x512xf32>
      %c112_25 = arith.constant 112 : index
      %c0_26 = arith.constant 0 : index
      %37 = vector.load %arg4[%c112_25, %c0_26] : memref<424x1xf32, #tpu.memory_space<vmem>>, vector<128x1xf32>
      %38 = vector.broadcast %37 : vector<128x1xf32> to vector<128x512xf32>
      %39 = arith.addf %36, %38 : vector<128x512xf32>
      %cst_27 = arith.constant 0.000000e+00 : f32
      %40 = vector.broadcast %cst_27 : f32 to vector<128x512xf32>
      %41 = arith.maximumf %39, %40 : vector<128x512xf32>
      %c512_i32 = arith.constant 512 : i32
      %42 = arith.muli %arg1, %c512_i32 : i32
      %43 = tpu.iota {dimensions = array<i32: 1>} : vector<1x512xi32>
      %44 = vector.broadcast %42 : i32 to vector<1x512xi32>
      %45 = arith.addi %44, %43 : vector<1x512xi32>
      %c1000_i32 = arith.constant 1000 : i32
      %46 = vector.broadcast %c1000_i32 : i32 to vector<1x512xi32>
      %47 = arith.cmpi slt, %45, %46 : vector<1x512xi32>
      %cst_28 = arith.constant 0xFF800000 : f32
      %48 = vector.shape_cast %47 : vector<1x512xi1> to vector<1x512xi1>
      %49 = vector.broadcast %48 : vector<1x512xi1> to vector<128x512xi1>
      %50 = vector.broadcast %cst_28 : f32 to vector<128x512xf32>
      %51 = arith.select %49, %41, %50 : vector<128x512xi1>, vector<128x512xf32>
      %c0_29 = arith.constant 0 : index
      %c0_30 = arith.constant 0 : index
      %52 = vector.load %arg6[%c0_29, %c0_30] : memref<128x1xf32, #tpu.memory_space<vmem>>, vector<128x1xf32>
      %cst_31 = arith.constant dense<0xFF800000> : vector<128xf32>
      %53 = vector.multi_reduction <maximumf>, %51, %cst_31 [1] : vector<128x512xf32> to vector<128xf32>
      %54 = vector.shape_cast %53 : vector<128xf32> to vector<128x1xf32>
      %55 = arith.maximumf %52, %54 : vector<128x1xf32>
      %c0_32 = arith.constant 0 : index
      %c0_33 = arith.constant 0 : index
      %56 = vector.load %arg6[%c0_32, %c0_33] : memref<128x1xf32, #tpu.memory_space<vmem>>, vector<128x1xf32>
      tpu.vector_store %arg6[%c0_32, %c0_33], %55 {strides = array<i32>} : memref<128x1xf32, #tpu.memory_space<vmem>>, vector<128x1xf32>,
    } else {
    }
    %c2_i32_4 = arith.constant 2 : i32
    %8 = arith.cmpi eq, %arg1, %c2_i32_4 : i32
    %9 = arith.extui %8 : i1 to i32
    %c0_i32_5 = arith.constant 0 : i32
    %10 = arith.cmpi ne, %9, %c0_i32_5 : i32
    scf.if %10 {
      %c0_8 = arith.constant 0 : index
      %c0_9 = arith.constant 0 : index
      %14 = vector.load %arg6[%c0_8, %c0_9] : memref<128x1xf32, #tpu.memory_space<vmem>>, vector<128x1xf32>
      %c240 = arith.constant 240 : index
      %c0_10 = arith.constant 0 : index
      %15 = vector.load %arg3[%c240, %c0_10] : memref<424x128xf32, #tpu.memory_space<vmem>>, vector<64x128xf32>
      %cst = arith.constant dense<0.000000e+00> : vector<64x1xf32>
      %16 = tpu.matmul %15, %14, %cst {dimension_numbers = #tpu.dot_dimension_numbers<[1], [0], [0], [1], [0, 0, 1, 1], [], []>} : vector<64x128xf32>, vector<128x1xf32>, vector<64x1xf32> -> vector<64x1xf32>
      %c240_11 = arith.constant 240 : index
      %c0_12 = arith.constant 0 : index
      %17 = vector.load %arg4[%c240_11, %c0_12] : memref<424x1xf32, #tpu.memory_space<vmem>>, vector<64x1xf32>
      %18 = arith.addf %16, %17 : vector<64x1xf32>
      %cst_13 = arith.constant 0.000000e+00 : f32
      %19 = vector.broadcast %cst_13 : f32 to vector<64x1xf32>
      %20 = arith.maximumf %18, %19 : vector<64x1xf32>
      %c304 = arith.constant 304 : index
      %c0_14 = arith.constant 0 : index
      %21 = vector.load %arg3[%c304, %c0_14] : memref<424x128xf32, #tpu.memory_space<vmem>>, vector<32x64xf32>
      %cst_15 = arith.constant dense<0.000000e+00> : vector<32x1xf32>
      %22 = tpu.matmul %21, %20, %cst_15 {dimension_numbers = #tpu.dot_dimension_numbers<[1], [0], [0], [1], [0, 0, 1, 1], [], []>} : vector<32x64xf32>, vector<64x1xf32>, vector<32x1xf32> -> vector<32x1xf32>
      %c304_16 = arith.constant 304 : index
      %c0_17 = arith.constant 0 : index
      %23 = vector.load %arg4[%c304_16, %c0_17] : memref<424x1xf32, #tpu.memory_space<vmem>>, vector<32x1xf32>
      %24 = arith.addf %22, %23 : vector<32x1xf32>
      %cst_18 = arith.constant 0.000000e+00 : f32
      %25 = vector.broadcast %cst_18 : f32 to vector<32x1xf32>
      %26 = arith.maximumf %24, %25 : vector<32x1xf32>
      %c336 = arith.constant 336 : index
      %c0_19 = arith.constant 0 : index
      %27 = vector.load %arg3[%c336, %c0_19] : memref<424x128xf32, #tpu.memory_space<vmem>>, vector<32x32xf32>
      %cst_20 = arith.constant dense<0.000000e+00> : vector<32x1xf32>
      %28 = tpu.matmul %27, %26, %cst_20 {dimension_numbers = #tpu.dot_dimension_numbers<[1], [0], [0], [1], [0, 0, 1, 1], [], []>} : vector<32x32xf32>, vector<32x1xf32>, vector<32x1xf32> -> vector<32x1xf32>
      %c336_21 = arith.constant 336 : index
      %c0_22 = arith.constant 0 : index
      %29 = vector.load %arg4[%c336_21, %c0_22] : memref<424x1xf32, #tpu.memory_space<vmem>>, vector<32x1xf32>
      %30 = arith.addf %28, %29 : vector<32x1xf32>
      %c0_23 = arith.constant 0 : index
      %c0_24 = arith.constant 0 : index
      %31 = vector.load %arg7[%c0_23, %c0_24] : memref<32x1xf32, #tpu.memory_space<vmem>>, vector<32x1xf32>
      tpu.vector_store %arg7[%c0_23, %c0_24], %30 {strides = array<i32>} : memref<32x1xf32, #tpu.memory_space<vmem>>, vector<32x1xf32>,
    } else {
    }
    %c2_i32_6 = arith.constant 2 : i32
    %11 = arith.cmpi sge, %arg1, %c2_i32_6 : i32
    %12 = arith.extui %11 : i1 to i32
    %c0_i32_7 = arith.constant 0 : i32
    %13 = arith.cmpi ne, %12, %c0_i32_7 : i32
    scf.if %13 {
      %c0_8 = arith.constant 0 : index
      %c0_9 = arith.constant 0 : index
      %14 = vector.load %arg3[%c0_8, %c0_9] : memref<424x128xf32, #tpu.memory_space<vmem>>, vector<16x3xf32>
      %cst = arith.constant dense<0.000000e+00> : vector<16x512xf32>
      %15 = tpu.matmul %14, %1, %cst {dimension_numbers = #tpu.dot_dimension_numbers<[1], [0], [0], [1], [0, 0, 1, 1], [], []>} : vector<16x3xf32>, vector<3x512xf32>, vector<16x512xf32> -> vector<16x512xf32>
      %c0_10 = arith.constant 0 : index
      %c0_11 = arith.constant 0 : index
      %16 = vector.load %arg4[%c0_10, %c0_11] : memref<424x1xf32, #tpu.memory_space<vmem>>, vector<16x1xf32>
      %17 = vector.broadcast %16 : vector<16x1xf32> to vector<16x512xf32>
      %18 = arith.addf %15, %17 : vector<16x512xf32>
      %cst_12 = arith.constant 0.000000e+00 : f32
      %19 = vector.broadcast %cst_12 : f32 to vector<16x512xf32>
      %20 = arith.maximumf %18, %19 : vector<16x512xf32>
      %c16 = arith.constant 16 : index
      %c0_13 = arith.constant 0 : index
      %21 = vector.load %arg3[%c16, %c0_13] : memref<424x128xf32, #tpu.memory_space<vmem>>, vector<32x16xf32>
      %cst_14 = arith.constant dense<0.000000e+00> : vector<32x512xf32>
      %22 = tpu.matmul %21, %20, %cst_14 {dimension_numbers = #tpu.dot_dimension_numbers<[1], [0], [0], [1], [0, 0, 1, 1], [], []>} : vector<32x16xf32>, vector<16x512xf32>, vector<32x512xf32> -> vector<32x512xf32>
      %c16_15 = arith.constant 16 : index
      %c0_16 = arith.constant 0 : index
      %23 = vector.load %arg4[%c16_15, %c0_16] : memref<424x1xf32, #tpu.memory_space<vmem>>, vector<32x1xf32>
      %24 = vector.broadcast %23 : vector<32x1xf32> to vector<32x512xf32>
      %25 = arith.addf %22, %24 : vector<32x512xf32>
      %cst_17 = arith.constant 0.000000e+00 : f32
      %26 = vector.broadcast %cst_17 : f32 to vector<32x512xf32>
      %27 = arith.maximumf %25, %26 : vector<32x512xf32>
      %c368 = arith.constant 368 : index
      %c0_18 = arith.constant 0 : index
      %28 = vector.load %arg3[%c368, %c0_18] : memref<424x128xf32, #tpu.memory_space<vmem>>, vector<32x32xf32>
      %cst_19 = arith.constant dense<0.000000e+00> : vector<32x512xf32>
      %29 = tpu.matmul %28, %27, %cst_19 {dimension_numbers = #tpu.dot_dimension_numbers<[1], [0], [0], [1], [0, 0, 1, 1], [], []>} : vector<32x32xf32>, vector<32x512xf32>, vector<32x512xf32> -> vector<32x512xf32>
      %c0_20 = arith.constant 0 : index
      %c0_21 = arith.constant 0 : index
      %30 = vector.load %arg7[%c0_20, %c0_21] : memref<32x1xf32, #tpu.memory_space<vmem>>, vector<32x1xf32>
      %31 = vector.broadcast %30 : vector<32x1xf32> to vector<32x512xf32>
      %32 = arith.addf %29, %31 : vector<32x512xf32>
      %cst_22 = arith.constant 0.000000e+00 : f32
      %33 = vector.broadcast %cst_22 : f32 to vector<32x512xf32>
      %34 = arith.maximumf %32, %33 : vector<32x512xf32>
      %c400 = arith.constant 400 : index
      %c0_23 = arith.constant 0 : index
      %35 = vector.load %arg3[%c400, %c0_23] : memref<424x128xf32, #tpu.memory_space<vmem>>, vector<16x32xf32>
      %cst_24 = arith.constant dense<0.000000e+00> : vector<16x512xf32>
      %36 = tpu.matmul %35, %34, %cst_24 {dimension_numbers = #tpu.dot_dimension_numbers<[1], [0], [0], [1], [0, 0, 1, 1], [], []>} : vector<16x32xf32>, vector<32x512xf32>, vector<16x512xf32> -> vector<16x512xf32>
      %c400_25 = arith.constant 400 : index
      %c0_26 = arith.constant 0 : index
      %37 = vector.load %arg4[%c400_25, %c0_26] : memref<424x1xf32, #tpu.memory_space<vmem>>, vector<16x1xf32>
      %38 = vector.broadcast %37 : vector<16x1xf32> to vector<16x512xf32>
      %39 = arith.addf %36, %38 : vector<16x512xf32>
      %cst_27 = arith.constant 0.000000e+00 : f32
      %40 = vector.broadcast %cst_27 : f32 to vector<16x512xf32>
      %41 = arith.maximumf %39, %40 : vector<16x512xf32>
      %c416 = arith.constant 416 : index
      %c0_28 = arith.constant 0 : index
      %42 = vector.load %arg3[%c416, %c0_28] : memref<424x128xf32, #tpu.memory_space<vmem>>, vector<4x16xf32>
      %cst_29 = arith.constant dense<0.000000e+00> : vector<4x512xf32>
      %43 = tpu.matmul %42, %41, %cst_29 {dimension_numbers = #tpu.dot_dimension_numbers<[1], [0], [0], [1], [0, 0, 1, 1], [], []>} : vector<4x16xf32>, vector<16x512xf32>, vector<4x512xf32> -> vector<4x512xf32>
      %c416_30 = arith.constant 416 : index
      %c0_31 = arith.constant 0 : index
      %44 = vector.load %arg4[%c416_30, %c0_31] : memref<424x1xf32, #tpu.memory_space<vmem>>, vector<4x1xf32>
      %45 = vector.broadcast %44 : vector<4x1xf32> to vector<4x512xf32>
      %46 = arith.addf %43, %45 : vector<4x512xf32>
      %47 = arith.negf %46 : vector<4x512xf32>
      %48 = math.exp %47 : vector<4x512xf32>
      %cst_32 = arith.constant 1.000000e+00 : f32
      %49 = vector.broadcast %cst_32 : f32 to vector<4x512xf32>
      %50 = arith.addf %49, %48 : vector<4x512xf32>
      %51 = arith.divf %49, %50 : vector<4x512xf32>
      %c0_33 = arith.constant 0 : index
      %c0_34 = arith.constant 0 : index
      %c0_35 = arith.constant 0 : index
      %52 = vector.load %arg5[%c0_33, %c0_34, %c0_35] : memref<1x4x512xf32, #tpu.memory_space<vmem>>, vector<1x4x512xf32>
      %53 = vector.shape_cast %52 : vector<1x4x512xf32> to vector<4x512xf32>
      %54 = vector.shape_cast %51 : vector<4x512xf32> to vector<1x4x512xf32>
      tpu.vector_store %arg5[%c0_33, %c0_34, %c0_35], %54 {strides = array<i32>} : memref<1x4x512xf32, #tpu.memory_space<vmem>>, vector<1x4x512xf32>,
    } else {
    }
    return
  }
  func.func @transform_0(%arg0: i32, %arg1: i32) -> (i32, i32, i32) {
    %c2_i32 = arith.constant 2 : i32
    %c0_i32 = arith.constant 0 : i32
    %0 = arith.cmpi eq, %c2_i32, %c0_i32 : i32
    %c1_i32 = arith.constant 1 : i32
    %1 = arith.select %0, %c1_i32, %c2_i32 : i32
    %2 = arith.remsi %arg1, %1 : i32
    %c0_i32_0 = arith.constant 0 : i32
    %3 = arith.cmpi ne, %2, %c0_i32_0 : i32
    %c0_i32_1 = arith.constant 0 : i32
    %4 = arith.cmpi slt, %2, %c0_i32_1 : i32
    %c0_i32_2 = arith.constant 0 : i32
    %5 = arith.cmpi slt, %1, %c0_i32_2 : i32
    %6 = arith.xori %4, %5 : i1
    %7 = arith.andi %6, %3 : i1
    %8 = arith.addi %2, %1 : i32
    %9 = arith.select %7, %8, %2 : i32
    %c0_i32_3 = arith.constant 0 : i32
    %c0_i32_4 = arith.constant 0 : i32
    return %arg0, %c0_i32_3, %9 : i32, i32, i32
  }
  func.func @transform_1(%arg0: i32, %arg1: i32) -> (i32, i32) {
    %c0_i32 = arith.constant 0 : i32
    %c0_i32_0 = arith.constant 0 : i32
    %c0_i32_1 = arith.constant 0 : i32
    return %c0_i32, %c0_i32_0 : i32, i32
  }
  func.func @transform_2(%arg0: i32, %arg1: i32) -> (i32, i32) {
    %c0_i32 = arith.constant 0 : i32
    %c0_i32_0 = arith.constant 0 : i32
    %c0_i32_1 = arith.constant 0 : i32
    return %c0_i32, %c0_i32_0 : i32, i32
  }
  func.func @transform_3(%arg0: i32, %arg1: i32) -> (i32, i32, i32) {
    %c2_i32 = arith.constant 2 : i32
    %0 = arith.subi %arg1, %c2_i32 : i32
    %c0_i32 = arith.constant 0 : i32
    %1 = arith.maxsi %0, %c0_i32 : i32
    %c0_i32_0 = arith.constant 0 : i32
    %c0_i32_1 = arith.constant 0 : i32
    return %arg0, %c0_i32_0, %1 : i32, i32, i32
  }
}

</mosaic_0001>

<llo_original>
// kernel: pointnet_seg_impulse_v1.1
$region0: #{pointnet_seg_impulse_v1.1}
  #allocation0 [shape = 'u32[]', space=smem, size = 0x4, offset = 0x4, fixed_abs, tag = 'smem constant byte address 0x4 - core index']
  #allocation1 [shape = 'u32[144,128]{1,0:T(1,128)}', space=vmem, size = 0x12000, scoped, tag = 'internal scratch']
  #allocation2 [shape = 'f32[128,1]{1,0:T(8,128)}', space=vmem, size = 0x10000, scoped, tag = 'scratch operand']
  #allocation3 [shape = 'f32[32,1]{1,0:T(8,128)}', space=vmem, size = 0x4000, scoped, tag = 'scratch operand']
  %s0 = inlined_call_operand.vmem [shape: f32[2,3,1024], index: 0, kind: input, shape index: {}]
  %s1 = inlined_call_operand.vmem [shape: f32[424,128], index: 1, kind: input, shape index: {}]
  %s2 = inlined_call_operand.vmem [shape: f32[424,1], index: 2, kind: input, shape index: {}]
  %s3 = inlined_call_operand.vmem [shape: f32[2,4,1024], index: 3, kind: output, shape index: {}]
  %s4 = sld [smem:[#allocation0]]
  $region61: #{pointnet_seg_impulse_v1.1} parent=0
    _
  %s6 = ssub.s32 1, %s4
  %s7 = scalar_select 0, %s6, %s4
  loop: start=0, step=1, limit=10
  $region2: #{pointnet_seg_impulse_v1.1} parent=0 // loop_pre_header
    _
  $region3: #{pointnet_seg_impulse_v1.1} parent=0 // loop_header
    %s9 = sphi 0, %s13
    %p10 = scmp.ge.s32.totalorder %s9, 10
    %s16 = sphi 0, %s28
    %s17 = sphi 0, %s24
    %s18 = sphi 0, %s16
    %s19 = sphi 0, %s17
    %s20 = sphi 0, %s18
    %s21 = sphi 0, %s19
    %s57 = sphi 0, %s59
    %s60 = sphi 0, %s57
    %s61 = sphi 0, %s60
    %s77 = sphi 0, %s61
    %s81 = sphi 0, %s81
    %s83 = sphi 0, %s81
    %s84 = sphi 0, %s83
    %s98 = sphi 0, %s84
    %s102 = sphi 0, %s102
    %s104 = sphi 0, %s102
    %s105 = sphi 0, %s104
    %s119 = sphi 0, %s105
    %s133 = sphi 0, %s135
    %s136 = sphi 0, %s133
    %s137 = sphi 0, %s136
    %s153 = sphi 0, %s137
  $region4: #{pointnet_seg_impulse_v1.1} parent=0 // loop_header_branch
    %12 = sbr.rel (%p10) target = $region8
  $region5: #{pointnet_seg_impulse_v1.1} parent=0 // loop_body
    %s14 = ssub.s32 %s9, 1
    %s15 = ssub.s32 %s9, 2
    %s22 = sadd.s32 1, %s17
    %p23 = scmp.ge.s32.totalorder %s22, 4
    %s24 = scalar_select %p23, 0, %s22
    %s25 = sadd.s32 1, %s16
    %s26 = scalar_select %p23, %s25, %s16
    %p27 = scmp.ge.s32.totalorder %s26, 2
    %s28 = scalar_select %p27, 0, %s26
    %p29 = scmp.lt.s32.totalorder %s17, 0
    %s30 = ssub.s32 0, %s17
    %s31 = scalar_select %p29, %s30, %s17
    %s32 = sand.u32 %s31, 1
    %s33 = ssub.s32 0, %s32
    %s34 = scalar_select %p29, %s33, %s32
    %p35 = scmp.ne.s32.totalorder %s34, 0
    %p36 = scmp.lt.s32.totalorder %s34, 0
    %p37 = pnand %p36, %p35
    %p38 = pneg %p37
    %s39 = sadd.s32 %s34, 2
    %s40 = scalar_select %p38, %s39, %s34
    %p41 = scmp.lt.s32.totalorder %s24, 0
    %s42 = ssub.s32 0, %s24
    %s43 = scalar_select %p41, %s42, %s24
    %s44 = sand.u32 %s43, 1
    %s45 = ssub.s32 0, %s44
    %s46 = scalar_select %p41, %s45, %s44
    %p47 = scmp.ne.s32.totalorder %s46, 0
    %p48 = scmp.lt.s32.totalorder %s46, 0
    %p49 = pnand %p48, %p47
    %p50 = pneg %p49
    %s51 = sadd.s32 %s46, 2
    %s52 = scalar_select %p50, %s51, %s46
    %s53 = ssub.s32 %s16, %s28
    %s54 = ssub.s32 %s40, %s52
    %s55 = sor.u32 %s53, %s54
    %p56 = scmp.eq.s32.totalorder %s55, 0
    %s58 = sadd.s32 %s57, 1
    %s59 = scalar_select %p56, %s57, %s58
    %p62 = pneg %p56
    %p63 = scmp.eq.s32.totalorder %s9, 7
    %p64 = por %p62, %p63
    %p65 = scmp.ne.s32.totalorder %s57, %s60
    %p66 = scmp.eq.s32.totalorder %s9, 0
    %p67 = por %p65, %p66
    %p68 = scmp.ne.s32.totalorder %s57, %s60
    %p69 = scmp.eq.s32.totalorder %s14, 7
    %p70 = por %p68, %p69
    %p71 = scmp.ne.s32.totalorder %s60, %s61
    %p72 = scmp.eq.s32.totalorder %s14, 0
    %p73 = por %p71, %p72
    %p74 = scmp.ne.s32.totalorder %s60, %s61
    %p75 = scmp.eq.s32.totalorder %s15, 7
    %p76 = por %p74, %p75
    %p78 = scmp.ne.s32.totalorder %s61, %s77
    %p79 = scmp.eq.s32.totalorder %s15, 0
    %p80 = por %p78, %p79
    %s82 = sadd.s32 %s81, 1
    %p85 = scmp.eq.s32.totalorder %s9, 7
    %p86 = scmp.ne.s32.totalorder %s81, %s83
    %p87 = scmp.eq.s32.totalorder %s9, 0
    %p88 = por %p86, %p87
    %p89 = scmp.ne.s32.totalorder %s81, %s83
    %p90 = scmp.eq.s32.totalorder %s14, 7
    %p91 = por %p89, %p90
    %p92 = scmp.ne.s32.totalorder %s83, %s84
    %p93 = scmp.eq.s32.totalorder %s14, 0
    %p94 = por %p92, %p93
    %p95 = scmp.ne.s32.totalorder %s83, %s84
    %p96 = scmp.eq.s32.totalorder %s15, 7
    %p97 = por %p95, %p96
    %p99 = scmp.ne.s32.totalorder %s84, %s98
    %p100 = scmp.eq.s32.totalorder %s15, 0
    %p101 = por %p99, %p100
    %s103 = sadd.s32 %s102, 1
    %p106 = scmp.eq.s32.totalorder %s9, 7
    %p107 = scmp.ne.s32.totalorder %s102, %s104
    %p108 = scmp.eq.s32.totalorder %s9, 0
    %p109 = por %p107, %p108
    %p110 = scmp.ne.s32.totalorder %s102, %s104
    %p111 = scmp.eq.s32.totalorder %s14, 7
    %p112 = por %p110, %p111
    %p113 = scmp.ne.s32.totalorder %s104, %s105
    %p114 = scmp.eq.s32.totalorder %s14, 0
    %p115 = por %p113, %p114
    %p116 = scmp.ne.s32.totalorder %s104, %s105
    %p117 = scmp.eq.s32.totalorder %s15, 7
    %p118 = por %p116, %p117
    %p120 = scmp.ne.s32.totalorder %s105, %s119
    %p121 = scmp.eq.s32.totalorder %s15, 0
    %p122 = por %p120, %p121
    %s123 = ssub.s32 %s17, 2
    %p124 = scmp.gt.s32.totalorder %s123, 0
    %s125 = scalar_select %p124, %s123, 0
    %s126 = ssub.s32 %s24, 2
    %p127 = scmp.gt.s32.totalorder %s126, 0
    %s128 = scalar_select %p127, %s126, 0
    %s129 = ssub.s32 %s16, %s28
    %s130 = ssub.s32 %s125, %s128
    %s131 = sor.u32 %s129, %s130
    %p132 = scmp.eq.s32.totalorder %s131, 0
    %s134 = sadd.s32 %s133, 1
    %s135 = scalar_select %p132, %s133, %s134
    %p138 = pneg %p132
    %p139 = scmp.eq.s32.totalorder %s9, 7
    %p140 = por %p138, %p139
    %p141 = scmp.ne.s32.totalorder %s133, %s136
    %p142 = scmp.eq.s32.totalorder %s9, 0
    %p143 = por %p141, %p142
    %p144 = scmp.ne.s32.totalorder %s133, %s136
    %p145 = scmp.eq.s32.totalorder %s14, 7
    %p146 = por %p144, %p145
    %p147 = scmp.ne.s32.totalorder %s136, %s137
    %p148 = scmp.eq.s32.totalorder %s14, 0
    %p149 = por %p147, %p148
    %p150 = scmp.ne.s32.totalorder %s136, %s137
    %p151 = scmp.eq.s32.totalorder %s15, 7
    %p152 = por %p150, %p151
    %p154 = scmp.ne.s32.totalorder %s137, %s153
    %p155 = scmp.eq.s32.totalorder %s15, 0
    %p156 = por %p154, %p155
    %p157 = scmp.le.s32.totalorder 1, %s9
    %p158 = scmp.lt.s32.totalorder %s9, 9
    %p159 = pnand %p157, %p158
    %p160 = pneg %p159
    // Predicated region
    $region9: #{pointnet_seg_impulse_v1.1} parent=5 // pred_check
      _
    $region10: #{pointnet_seg_impulse_v1.1} parent=5 // pred_check_branch
      %162 = sbr.rel (%p159) target = $region12
    $region11: #{pointnet_seg_impulse_v1.1} parent=5 // pred_region
      %s163 = ssub.s32 %s9, 1
      // Predicated region
      $region13: #{pointnet_seg_impulse_v1.1} parent=11 // pred_check
        %p164 = pneg %p94
      $region14: #{pointnet_seg_impulse_v1.1} parent=11 // pred_check_branch
        %166 = sbr.rel (%p164) target = $region16
      $region15: #{pointnet_seg_impulse_v1.1} parent=11 // pred_region
        _
      $region16: #{pointnet_seg_impulse_v1.1} parent=11 // pred_fallthru
        _
      // Predicated region
      $region17: #{pointnet_seg_impulse_v1.1} parent=11 // pred_check
        %p167 = pneg %p115
      $region18: #{pointnet_seg_impulse_v1.1} parent=11 // pred_check_branch
        %169 = sbr.rel (%p167) target = $region20
      $region19: #{pointnet_seg_impulse_v1.1} parent=11 // pred_region
        _
      $region20: #{pointnet_seg_impulse_v1.1} parent=11 // pred_fallthru
        _
    $region12: #{pointnet_seg_impulse_v1.1} parent=5 // pred_fallthru
      _
    %p170 = scmp.lt.s32.totalorder %s9, 8
    // Predicated region
    $region21: #{pointnet_seg_impulse_v1.1} parent=5 // pred_check
      %p171 = pneg %p170
    $region22: #{pointnet_seg_impulse_v1.1} parent=5 // pred_check_branch
      %173 = sbr.rel (%p171) target = $region24
    $region23: #{pointnet_seg_impulse_v1.1} parent=5 // pred_region
      // Predicated region
      $region25: #{pointnet_seg_impulse_v1.1} parent=23 // pred_check
        %p174 = pneg %p67
      $region26: #{pointnet_seg_impulse_v1.1} parent=23 // pred_check_branch
        %176 = sbr.rel (%p174) target = $region28
      $region27: #{pointnet_seg_impulse_v1.1} parent=23 // pred_region
        %p177 = scmp.lt.s32.totalorder %s17, 0
        %s178 = ssub.s32 0, %s17
        %s179 = scalar_select %p177, %s178, %s17
        %s180 = sand.u32 %s179, 1
        %s181 = ssub.s32 0, %s180
        %s182 = scalar_select %p177, %s181, %s180
        %p183 = scmp.ne.s32.totalorder %s182, 0
        %p184 = scmp.lt.s32.totalorder %s182, 0
        %p185 = pnand %p184, %p183
        %p186 = pneg %p185
        %s187 = sadd.s32 %s182, 2
        %s188 = scalar_select %p186, %s187, %s182
        %s189 = smul.u32 4, %s188
        %p190 = scmp.lt.s32.totalorder %s16, 1
        %s191 = scalar_select %p190, %s16, 1
        %p192 = scmp.lt.s32.totalorder %s189, 7
        %s193 = scalar_select %p192, %s189, 7
        %s194 = smul.addr %s191, 8
        %s195 = sadd.s32 %s193, %s194
        %s196 = smul.addr %s195, 4
        %s197 = scalar_lea.vmem %s0, %s196
        %p198 = scmp.lt.s32.totalorder %s17, 0
        %s199 = ssub.s32 0, %s17
        %s200 = scalar_select %p198, %s199, %s17
        %s201 = sand.u32 %s200, 1
        %s202 = ssub.s32 0, %s201
        %s203 = scalar_select %p198, %s202, %s201
        %p204 = scmp.ne.s32.totalorder %s203, 0
        %p205 = scmp.lt.s32.totalorder %s203, 0
        %p206 = pnand %p205, %p204
        %p207 = pneg %p206
        %s208 = sadd.s32 %s203, 2
        %s209 = scalar_select %p207, %s208, %s203
        %s210 = smul.u32 4, %s209
      $region28: #{pointnet_seg_impulse_v1.1} parent=23 // pred_fallthru
        _
    $region24: #{pointnet_seg_impulse_v1.1} parent=5 // pred_fallthru
      _
    %p211 = scmp.le.s32.totalorder 1, %s9
    %p212 = scmp.lt.s32.totalorder %s9, 9
    %p213 = pnand %p211, %p212
    %p214 = pneg %p213
    // Predicated region
    $region29: #{pointnet_seg_impulse_v1.1} parent=5 // pred_check
      _
    $region30: #{pointnet_seg_impulse_v1.1} parent=5 // pred_check_branch
      %216 = sbr.rel (%p213) target = $region32
    $region31: #{pointnet_seg_impulse_v1.1} parent=5 // pred_region
      %s217 = ssub.s32 %s9, 1
      %p218 = scmp.lt.s32.totalorder %s19, 0
      %s219 = ssub.s32 0, %s19
      %s220 = scalar_select %p218, %s219, %s19
      %s221 = sand.u32 %s220, 1
      %s222 = ssub.s32 0, %s221
      %s223 = scalar_select %p218, %s222, %s221
      %p224 = scmp.ne.s32.totalorder %s223, 0
      %p225 = scmp.lt.s32.totalorder %s223, 0
      %p226 = pnand %p225, %p224
      %p227 = pneg %p226
      %s228 = sadd.s32 %s223, 2
      %s229 = scalar_select %p227, %s228, %s223
      %s230 = smul.u32 4, %s229
      %p231 = scmp.lt.s32.totalorder %s18, 1
      %s232 = scalar_select %p231, %s18, 1
      %p233 = scmp.lt.s32.totalorder %s230, 7
      %s234 = scalar_select %p233, %s230, 7
      %s235 = smul.addr %s232, 8
      %s236 = sadd.s32 %s234, %s235
      %s237 = smul.addr %s236, 4
      %s238 = scalar_lea.vmem %s0, %s237
      %p239 = pneg %p73
      %p240 = pneg %p70
      %p241 = pneg %p94
      %p242 = pneg %p91
      %p243 = pneg %p115
      %p244 = pneg %p112
      %p245 = pneg %p149
      %p246 = pneg %p146
      %s247 = ssub.s32 %s19, 2
      %p248 = scmp.gt.s32.totalorder %s247, 0
      %s249 = scalar_select %p248, %s247, 0
      %s250 = smul.u32 4, %s249
      %p251 = scmp.lt.s32.totalorder %s18, 1
      %s252 = scalar_select %p251, %s18, 1
      %p253 = scmp.lt.s32.totalorder %s250, 7
      %s254 = scalar_select %p253, %s250, 7
      %s255 = smul.addr %s252, 8
      %s256 = sadd.s32 %s254, %s255
      %s257 = smul.addr %s256, 4
      %s258 = scalar_lea.vmem %s3, %s257
      %p259 = scmp.lt.s32.totalorder %s19, 0
      %s260 = ssub.s32 0, %s19
      %s261 = scalar_select %p259, %s260, %s19
      %s262 = sand.u32 %s261, 1
      %s263 = ssub.s32 0, %s262
      %s264 = scalar_select %p259, %s263, %s262
      %p265 = scmp.ne.s32.totalorder %s264, 0
      %p266 = scmp.lt.s32.totalorder %s264, 0
      %p267 = pnand %p266, %p265
      %p268 = pneg %p267
      %s269 = sadd.s32 %s264, 2
      %s270 = scalar_select %p268, %s269, %s264
      %s271 = smul.u32 4, %s270
      %p272 = scmp.lt.s32.totalorder %s18, 1
      %s273 = scalar_select %p272, %s18, 1
      %p274 = scmp.lt.s32.totalorder %s271, 7
      %s275 = scalar_select %p274, %s271, 7
      %s276 = smul.addr %s273, 8
      %s277 = sadd.s32 %s275, %s276
      %s278 = smul.addr %s277, 4
      %s279 = scalar_lea.vmem %s0, %s278
      %p280 = scmp.lt.s32.totalorder %s19, 0
      %s281 = ssub.s32 0, %s19
      %s282 = scalar_select %p280, %s281, %s19
      %s283 = sand.u32 %s282, 1
      %s284 = ssub.s32 0, %s283
      %s285 = scalar_select %p280, %s284, %s283
      %p286 = scmp.ne.s32.totalorder %s285, 0
      %p287 = scmp.lt.s32.totalorder %s285, 0
      %p288 = pnand %p287, %p286
      %p289 = pneg %p288
      %s290 = sadd.s32 %s285, 2
      %s291 = scalar_select %p289, %s290, %s285
      %s292 = smul.u32 4, %s291
      %s293 = ssub.s32 %s19, 2
      %p294 = scmp.gt.s32.totalorder %s293, 0
      %s295 = scalar_select %p294, %s293, 0
      %s296 = smul.u32 4, %s295
      %p297 = scmp.lt.s32.totalorder %s18, 1
      %s298 = scalar_select %p297, %s18, 1
      %p299 = scmp.lt.s32.totalorder %s296, 7
      %s300 = scalar_select %p299, %s296, 7
      %s301 = smul.addr %s298, 8
      %s302 = sadd.s32 %s300, %s301
      %s303 = smul.addr %s302, 4
      %s304 = scalar_lea.vmem %s3, %s303
      %s305 = ssub.s32 %s19, 2
      %p306 = scmp.gt.s32.totalorder %s305, 0
      %s307 = scalar_select %p306, %s305, 0
      %s308 = smul.u32 4, %s307
      %v309 = vld [vmem:[%s279] sm:$0x77]
      %v310 = vld [vmem:[%s279 + $0x8] sm:$0x77]
      %p311 = scmp.eq.s32.totalorder %s19, 0
      // Predicated region
      $region33: #{pointnet_seg_impulse_v1.1} parent=31 // pred_check
        %p312 = pneg %p311
      $region34: #{pointnet_seg_impulse_v1.1} parent=31 // pred_check_branch
        %314 = sbr.rel (%p312) target = $region36
      $region35: #{pointnet_seg_impulse_v1.1} parent=31 // pred_region
        %vm315 = vcmask 7168
        %316 = vst.msk [vmem:[#allocation2] sm:$0xff] %vm315, -inf
        %317 = vst.msk [vmem:[#allocation2 + $0x8] sm:$0xff] %vm315, -inf
        %318 = vst.msk [vmem:[#allocation2 + $0x10] sm:$0xff] %vm315, -inf
        %319 = vst.msk [vmem:[#allocation2 + $0x18] sm:$0xff] %vm315, -inf
        %320 = vst.msk [vmem:[#allocation2 + $0x20] sm:$0xff] %vm315, -inf
        %321 = vst.msk [vmem:[#allocation2 + $0x28] sm:$0xff] %vm315, -inf
        %322 = vst.msk [vmem:[#allocation2 + $0x30] sm:$0xff] %vm315, -inf
        %323 = vst.msk [vmem:[#allocation2 + $0x38] sm:$0xff] %vm315, -inf
        %324 = vst.msk [vmem:[#allocation2 + $0x40] sm:$0xff] %vm315, -inf
        %325 = vst.msk [vmem:[#allocation2 + $0x48] sm:$0xff] %vm315, -inf
        %326 = vst.msk [vmem:[#allocation2 + $0x50] sm:$0xff] %vm315, -inf
        %327 = vst.msk [vmem:[#allocation2 + $0x58] sm:$0xff] %vm315, -inf
        %328 = vst.msk [vmem:[#allocation2 + $0x60] sm:$0xff] %vm315, -inf
        %329 = vst.msk [vmem:[#allocation2 + $0x68] sm:$0xff] %vm315, -inf
        %330 = vst.msk [vmem:[#allocation2 + $0x70] sm:$0xff] %vm315, -inf
        %331 = vst.msk [vmem:[#allocation2 + $0x78] sm:$0xff] %vm315, -inf
      $region36: #{pointnet_seg_impulse_v1.1} parent=31 // pred_fallthru
        _
      %p332 = scmp.lt.s32.totalorder %s19, 2
      // Predicated region
      $region37: #{pointnet_seg_impulse_v1.1} parent=31 // pred_check
        %p333 = pneg %p332
      $region38: #{pointnet_seg_impulse_v1.1} parent=31 // pred_check_branch
        %335 = sbr.rel (%p333) target = $region40
      $region39: #{pointnet_seg_impulse_v1.1} parent=31 // pred_region
        %v336 = vld [vmem:[%s1] sm:$0xff]
        %v337 = vld [vmem:[%s1 + $0x8] sm:$0xff]
        %v338 = vld [vmem:[%s2] sm:$0xff]
        %v339 = vld [vmem:[%s2 + $0x8] sm:$0xff]
        %341 = vset.pattern.permute.xlu0 0
        %342 = vperm.xlu0 %341, %v338
        %v343 = vpop.permute.xlu0 %342
        %346 = vset.pattern.permute.xlu0 0
        %347 = vperm.xlu0 %346, %v339
        %v348 = vpop.permute.xlu0 %347
        %v352 = vcombine.high %v309, %v309
        %v353 = vcombine.high %v310, %v310
        %vm354 = vcmask 23552
        %v356 = vsel %vm354, %v336, 0
        %v359 = vsel %vm354, %v337, 0
        %vm361 = vcmask 1042432
        %v362 = vsel %vm361, %v309, 0
        %v364 = vsel %vm361, %v352, 0
        %v366 = vsel %vm361, %v310, 0
        %v368 = vsel %vm361, %v353, 0
        %370 = vmatprep.subr.mxu0 0.0
        %371 = vmatpush1.msra.mxu0 0.0
        %372 = vmatprep.subr.mxu0 0.0
        %373 = vmatpush1.msra.mxu0 0.0
        %374 = vmatprep.subr.mxu0 0.0
        %375 = vmatpush1.msra.mxu0 0.0
        %376 = vmatprep.subr.mxu0 0.0
        %377 = vmatpush1.msra.mxu0 0.0
        %378 = vmatprep.subr.mxu0 0.0
        %379 = vmatpush1.msra.mxu0 0.0
        %380 = vmatprep.subr.mxu0 0.0
        %381 = vmatpush1.msra.mxu0 0.0
        %382 = vmatprep.subr.mxu0 0.0
        %383 = vmatpush1.msra.mxu0 0.0
        %384 = vmatprep.subr.mxu0 0.0
        %385 = vmatpush1.msra.mxu0 0.0
        %386 = vmatprep.subr.mxu0 0.0
        %387 = vmatpush1.msra.mxu0 0.0
        %388 = vmatprep.subr.mxu0 0.0
        %389 = vmatpush1.msra.mxu0 0.0
        %390 = vmatprep.subr.mxu0 0.0
        %391 = vmatpush1.msra.mxu0 0.0
        %392 = vmatprep.subr.mxu0 0.0
        %393 = vmatpush1.msra.mxu0 0.0
        %394 = vmatprep.subr.mxu0 0.0
        %395 = vmatpush1.msra.mxu0 0.0
        %396 = vmatprep.subr.mxu0 0.0
        %397 = vmatpush1.msra.mxu0 0.0
        %398 = vmatprep.subr.mxu0 0.0
        %399 = vmatpush1.msra.mxu0 0.0
        %400 = vmatprep.subr.mxu0 %v364
        %401 = vmatpush1.msra.mxu0 %v362
        %402 = vmatprep.subr.mxu0 0.0
        %403 = vmatpush2.msra.mxu0 0.0
        %404 = vmatprep.subr.mxu0 0.0
        %405 = vmatpush2.msra.mxu0 0.0
        %406 = vmatprep.subr.mxu0 0.0
        %407 = vmatpush2.msra.mxu0 0.0
        %408 = vmatprep.subr.mxu0 0.0
        %409 = vmatpush2.msra.mxu0 0.0
        %410 = vmatprep.subr.mxu0 0.0
        %411 = vmatpush2.msra.mxu0 0.0
        %412 = vmatprep.subr.mxu0 0.0
        %413 = vmatpush2.msra.mxu0 0.0
        %414 = vmatprep.subr.mxu0 0.0
        %415 = vmatpush2.msra.mxu0 0.0
        %416 = vmatprep.subr.mxu0 0.0
        %417 = vmatpush2.msra.mxu0 0.0
        %418 = vmatprep.subr.mxu0 0.0
        %419 = vmatpush2.msra.mxu0 0.0
        %420 = vmatprep.subr.mxu0 0.0
        %421 = vmatpush2.msra.mxu0 0.0
        %422 = vmatprep.subr.mxu0 0.0
        %423 = vmatpush2.msra.mxu0 0.0
        %424 = vmatprep.subr.mxu0 0.0
        %425 = vmatpush2.msra.mxu0 0.0
        %426 = vmatprep.subr.mxu0 0.0
        %427 = vmatpush2.msra.mxu0 0.0
        %428 = vmatprep.subr.mxu0 0.0
        %429 = vmatpush2.msra.mxu0 0.0
        %430 = vmatprep.subr.mxu0 0.0
        %431 = vmatpush2.msra.mxu0 0.0
        %432 = vmatprep.subr.mxu0 0.0
        %433 = vmatpush2.msra.mxu0 0.0
        %434 = vmatprep.mubr.f32.mxu0 0.0
        %435 = vmatmul.mubr.f32.gmra.mxu0 %v356
        %v436 = vpop.f32.mrf.mxu0
        %v437 = vadd.f32 %v343, %v436
        %v438 = vpop.f32.mrf.mxu0
        %v439 = vadd.f32 %v343, %v438
        %440 = vmatprep.mubr.f32.mxu0 0.0
        %441 = vmatmul.mubr.f32.gmra.mxu0 %v359
        %v442 = vpop.f32.mrf.mxu0
        %v443 = vadd.f32 %v348, %v442
        %v444 = vpop.f32.mrf.mxu0
        %v445 = vadd.f32 %v348, %v444
        %446 = vdwg.mxu0
        %447 = vmatprep.subr.mxu0 0.0
        %448 = vmatpush1.msra.mxu0 0.0
        %449 = vmatprep.subr.mxu0 0.0
        %450 = vmatpush1.msra.mxu0 0.0
        %451 = vmatprep.subr.mxu0 0.0
        %452 = vmatpush1.msra.mxu0 0.0
        %453 = vmatprep.subr.mxu0 0.0
        %454 = vmatpush1.msra.mxu0 0.0
        %455 = vmatprep.subr.mxu0 0.0
        %456 = vmatpush1.msra.mxu0 0.0
        %457 = vmatprep.subr.mxu0 0.0
        %458 = vmatpush1.msra.mxu0 0.0
        %459 = vmatprep.subr.mxu0 0.0
        %460 = vmatpush1.msra.mxu0 0.0
        %461 = vmatprep.subr.mxu0 0.0
        %462 = vmatpush1.msra.mxu0 0.0
        %463 = vmatprep.subr.mxu0 0.0
        %464 = vmatpush1.msra.mxu0 0.0
        %465 = vmatprep.subr.mxu0 0.0
        %466 = vmatpush1.msra.mxu0 0.0
        %467 = vmatprep.subr.mxu0 0.0
        %468 = vmatpush1.msra.mxu0 0.0
        %469 = vmatprep.subr.mxu0 0.0
        %470 = vmatpush1.msra.mxu0 0.0
        %471 = vmatprep.subr.mxu0 0.0
        %472 = vmatpush1.msra.mxu0 0.0
        %473 = vmatprep.subr.mxu0 0.0
        %474 = vmatpush1.msra.mxu0 0.0
        %475 = vmatprep.subr.mxu0 0.0
        %476 = vmatpush1.msra.mxu0 0.0
        %477 = vmatprep.subr.mxu0 %v368
        %478 = vmatpush1.msra.mxu0 %v366
        %479 = vmatprep.subr.mxu0 0.0
        %480 = vmatpush2.msra.mxu0 0.0
        %481 = vmatprep.subr.mxu0 0.0
        %482 = vmatpush2.msra.mxu0 0.0
        %483 = vmatprep.subr.mxu0 0.0
        %484 = vmatpush2.msra.mxu0 0.0
        %485 = vmatprep.subr.mxu0 0.0
        %486 = vmatpush2.msra.mxu0 0.0
        %487 = vmatprep.subr.mxu0 0.0
        %488 = vmatpush2.msra.mxu0 0.0
        %489 = vmatprep.subr.mxu0 0.0
        %490 = vmatpush2.msra.mxu0 0.0
        %491 = vmatprep.subr.mxu0 0.0
        %492 = vmatpush2.msra.mxu0 0.0
        %493 = vmatprep.subr.mxu0 0.0
        %494 = vmatpush2.msra.mxu0 0.0
        %495 = vmatprep.subr.mxu0 0.0
        %496 = vmatpush2.msra.mxu0 0.0
        %497 = vmatprep.subr.mxu0 0.0
        %498 = vmatpush2.msra.mxu0 0.0
        %499 = vmatprep.subr.mxu0 0.0
        %500 = vmatpush2.msra.mxu0 0.0
        %501 = vmatprep.subr.mxu0 0.0
        %502 = vmatpush2.msra.mxu0 0.0
        %503 = vmatprep.subr.mxu0 0.0
        %504 = vmatpush2.msra.mxu0 0.0
        %505 = vmatprep.subr.mxu0 0.0
        %506 = vmatpush2.msra.mxu0 0.0
        %507 = vmatprep.subr.mxu0 0.0
        %508 = vmatpush2.msra.mxu0 0.0
        %509 = vmatprep.subr.mxu0 0.0
        %510 = vmatpush2.msra.mxu0 0.0
        %511 = vmatprep.mubr.f32.mxu0 0.0
        %512 = vmatmul.mubr.f32.gmra.mxu0 %v356
        %v513 = vpop.f32.mrf.mxu0
        %v514 = vadd.f32 %v343, %v513
        %v515 = vpop.f32.mrf.mxu0
        %v516 = vadd.f32 %v343, %v515
        %517 = vmatprep.mubr.f32.mxu0 0.0
        %518 = vmatmul.mubr.f32.gmra.mxu0 %v359
        %v519 = vpop.f32.mrf.mxu0
        %v520 = vadd.f32 %v348, %v519
        %v521 = vpop.f32.mrf.mxu0
        %v522 = vadd.f32 %v348, %v521
        %523 = vdwg.mxu0
        %v524 = vmax.f32 %v437, 0.0
        %v525 = vmax.f32 %v439, 0.0
        %v526 = vmax.f32 %v514, 0.0
        %v527 = vmax.f32 %v516, 0.0
        %v528 = vmax.f32 %v443, 0.0
        %v529 = vmax.f32 %v445, 0.0
        %v530 = vmax.f32 %v520, 0.0
        %v531 = vmax.f32 %v522, 0.0
        %v532 = vld [vmem:[%s1 + $0x10] sm:$0xff]
        %v533 = vld [vmem:[%s1 + $0x18] sm:$0xff]
        %v534 = vld [vmem:[%s1 + $0x20] sm:$0xff]
        %v535 = vld [vmem:[%s1 + $0x28] sm:$0xff]
        %v536 = vld [vmem:[%s2 + $0x10] sm:$0xff]
        %v537 = vld [vmem:[%s2 + $0x18] sm:$0xff]
        %v538 = vld [vmem:[%s2 + $0x20] sm:$0xff]
        %v539 = vld [vmem:[%s2 + $0x28] sm:$0xff]
        %541 = vset.pattern.permute.xlu0 0
        %542 = vperm.xlu0 %541, %v536
        %v543 = vpop.permute.xlu0 %542
        %546 = vset.pattern.permute.xlu0 0
        %547 = vperm.xlu0 %546, %v537
        %v548 = vpop.permute.xlu0 %547
        %551 = vset.pattern.permute.xlu0 0
        %552 = vperm.xlu0 %551, %v538
        %v553 = vpop.permute.xlu0 %552
        %556 = vset.pattern.permute.xlu0 0
        %557 = vperm.xlu0 %556, %v539
        %v558 = vpop.permute.xlu0 %557
        %vm560 = vcmask 130048
        %v562 = vsel %vm560, %v532, 0
        %v565 = vsel %vm560, %v533, 0
        %v568 = vsel %vm560, %v534, 0
        %v571 = vsel %vm560, %v535, 0
        %573 = vmatprep.subr.mxu0 0.0
        %574 = vmatpush1.msra.mxu0 0.0
        %575 = vmatprep.subr.mxu0 0.0
        %576 = vmatpush1.msra.mxu0 0.0
        %577 = vmatprep.subr.mxu0 0.0
        %578 = vmatpush1.msra.mxu0 0.0
        %579 = vmatprep.subr.mxu0 0.0
        %580 = vmatpush1.msra.mxu0 0.0
        %581 = vmatprep.subr.mxu0 0.0
        %582 = vmatpush1.msra.mxu0 0.0
        %583 = vmatprep.subr.mxu0 0.0
        %584 = vmatpush1.msra.mxu0 0.0
        %585 = vmatprep.subr.mxu0 0.0
        %586 = vmatpush1.msra.mxu0 0.0
        %587 = vmatprep.subr.mxu0 0.0
        %588 = vmatpush1.msra.mxu0 0.0
        %589 = vmatprep.subr.mxu0 0.0
        %590 = vmatpush1.msra.mxu0 0.0
        %591 = vmatprep.subr.mxu0 0.0
        %592 = vmatpush1.msra.mxu0 0.0
        %593 = vmatprep.subr.mxu0 0.0
        %594 = vmatpush1.msra.mxu0 0.0
        %595 = vmatprep.subr.mxu0 0.0
        %596 = vmatpush1.msra.mxu0 0.0
        %597 = vmatprep.subr.mxu0 0.0
        %598 = vmatpush1.msra.mxu0 0.0
        %599 = vmatprep.subr.mxu0 0.0
        %600 = vmatpush1.msra.mxu0 0.0
        %601 = vmatprep.subr.mxu0 %v529
        %602 = vmatpush1.msra.mxu0 %v528
        %603 = vmatprep.subr.mxu0 %v525
        %604 = vmatpush1.msra.mxu0 %v524
        %605 = vmatprep.subr.mxu0 0.0
        %606 = vmatpush2.msra.mxu0 0.0
        %607 = vmatprep.subr.mxu0 0.0
        %608 = vmatpush2.msra.mxu0 0.0
        %609 = vmatprep.subr.mxu0 0.0
        %610 = vmatpush2.msra.mxu0 0.0
        %611 = vmatprep.subr.mxu0 0.0
        %612 = vmatpush2.msra.mxu0 0.0
        %613 = vmatprep.subr.mxu0 0.0
        %614 = vmatpush2.msra.mxu0 0.0
        %615 = vmatprep.subr.mxu0 0.0
        %616 = vmatpush2.msra.mxu0 0.0
        %617 = vmatprep.subr.mxu0 0.0
        %618 = vmatpush2.msra.mxu0 0.0
        %619 = vmatprep.subr.mxu0 0.0
        %620 = vmatpush2.msra.mxu0 0.0
        %621 = vmatprep.subr.mxu0 0.0
        %622 = vmatpush2.msra.mxu0 0.0
        %623 = vmatprep.subr.mxu0 0.0
        %624 = vmatpush2.msra.mxu0 0.0
        %625 = vmatprep.subr.mxu0 0.0
        %626 = vmatpush2.msra.mxu0 0.0
        %627 = vmatprep.subr.mxu0 0.0
        %628 = vmatpush2.msra.mxu0 0.0
        %629 = vmatprep.subr.mxu0 0.0
        %630 = vmatpush2.msra.mxu0 0.0
        %631 = vmatprep.subr.mxu0 0.0
        %632 = vmatpush2.msra.mxu0 0.0
        %633 = vmatprep.subr.mxu0 0.0
        %634 = vmatpush2.msra.mxu0 0.0
        %635 = vmatprep.subr.mxu0 0.0
        %636 = vmatpush2.msra.mxu0 0.0
        %637 = vmatprep.mubr.f32.mxu0 0.0
        %638 = vmatmul.mubr.f32.gmra.mxu0 %v562
        %v639 = vpop.f32.mrf.mxu0
        %v640 = vadd.f32 %v543, %v639
        %v641 = vpop.f32.mrf.mxu0
        %v642 = vadd.f32 %v543, %v641
        %643 = vmatprep.mubr.f32.mxu0 0.0
        %644 = vmatmul.mubr.f32.gmra.mxu0 %v565
        %v645 = vpop.f32.mrf.mxu0
        %v646 = vadd.f32 %v548, %v645
        %v647 = vpop.f32.mrf.mxu0
        %v648 = vadd.f32 %v548, %v647
        %649 = vmatprep.mubr.f32.mxu0 0.0
        %650 = vmatmul.mubr.f32.gmra.mxu0 %v568
        %v651 = vpop.f32.mrf.mxu0
        %v652 = vadd.f32 %v553, %v651
        %v653 = vpop.f32.mrf.mxu0
        %v654 = vadd.f32 %v553, %v653
        %655 = vmatprep.mubr.f32.mxu0 0.0
        %656 = vmatmul.mubr.f32.gmra.mxu0 %v571
        %v657 = vpop.f32.mrf.mxu0
        %v658 = vadd.f32 %v558, %v657
        %v659 = vpop.f32.mrf.mxu0
        %v660 = vadd.f32 %v558, %v659
        %661 = vdwg.mxu0
        %662 = vmatprep.subr.mxu0 0.0
        %663 = vmatpush1.msra.mxu0 0.0
        %664 = vmatprep.subr.mxu0 0.0
        %665 = vmatpush1.msra.mxu0 0.0
        %666 = vmatprep.subr.mxu0 0.0
        %667 = vmatpush1.msra.mxu0 0.0
        %668 = vmatprep.subr.mxu0 0.0
        %669 = vmatpush1.msra.mxu0 0.0
        %670 = vmatprep.subr.mxu0 0.0
        %671 = vmatpush1.msra.mxu0 0.0
        %672 = vmatprep.subr.mxu0 0.0
        %673 = vmatpush1.msra.mxu0 0.0
        %674 = vmatprep.subr.mxu0 0.0
        %675 = vmatpush1.msra.mxu0 0.0
        %676 = vmatprep.subr.mxu0 0.0
        %677 = vmatpush1.msra.mxu0 0.0
        %678 = vmatprep.subr.mxu0 0.0
        %679 = vmatpush1.msra.mxu0 0.0
        %680 = vmatprep.subr.mxu0 0.0
        %681 = vmatpush1.msra.mxu0 0.0
        %682 = vmatprep.subr.mxu0 0.0
        %683 = vmatpush1.msra.mxu0 0.0
        %684 = vmatprep.subr.mxu0 0.0
        %685 = vmatpush1.msra.mxu0 0.0
        %686 = vmatprep.subr.mxu0 0.0
        %687 = vmatpush1.msra.mxu0 0.0
        %688 = vmatprep.subr.mxu0 0.0
        %689 = vmatpush1.msra.mxu0 0.0
        %690 = vmatprep.subr.mxu0 %v531
        %691 = vmatpush1.msra.mxu0 %v530
        %692 = vmatprep.subr.mxu0 %v527
        %693 = vmatpush1.msra.mxu0 %v526
        %694 = vmatprep.subr.mxu0 0.0
        %695 = vmatpush2.msra.mxu0 0.0
        %696 = vmatprep.subr.mxu0 0.0
        %697 = vmatpush2.msra.mxu0 0.0
        %698 = vmatprep.subr.mxu0 0.0
        %699 = vmatpush2.msra.mxu0 0.0
        %700 = vmatprep.subr.mxu0 0.0
        %701 = vmatpush2.msra.mxu0 0.0
        %702 = vmatprep.subr.mxu0 0.0
        %703 = vmatpush2.msra.mxu0 0.0
        %704 = vmatprep.subr.mxu0 0.0
        %705 = vmatpush2.msra.mxu0 0.0
        %706 = vmatprep.subr.mxu0 0.0
        %707 = vmatpush2.msra.mxu0 0.0
        %708 = vmatprep.subr.mxu0 0.0
        %709 = vmatpush2.msra.mxu0 0.0
        %710 = vmatprep.subr.mxu0 0.0
        %711 = vmatpush2.msra.mxu0 0.0
        %712 = vmatprep.subr.mxu0 0.0
        %713 = vmatpush2.msra.mxu0 0.0
        %714 = vmatprep.subr.mxu0 0.0
        %715 = vmatpush2.msra.mxu0 0.0
        %716 = vmatprep.subr.mxu0 0.0
        %717 = vmatpush2.msra.mxu0 0.0
        %718 = vmatprep.subr.mxu0 0.0
        %719 = vmatpush2.msra.mxu0 0.0
        %720 = vmatprep.subr.mxu0 0.0
        %721 = vmatpush2.msra.mxu0 0.0
        %722 = vmatprep.subr.mxu0 0.0
        %723 = vmatpush2.msra.mxu0 0.0
        %724 = vmatprep.subr.mxu0 0.0
        %725 = vmatpush2.msra.mxu0 0.0
        %726 = vmatprep.mubr.f32.mxu0 0.0
        %727 = vmatmul.mubr.f32.gmra.mxu0 %v562
        %v728 = vpop.f32.mrf.mxu0
        %v729 = vadd.f32 %v543, %v728
        %v730 = vpop.f32.mrf.mxu0
        %v731 = vadd.f32 %v543, %v730
        %732 = vmatprep.mubr.f32.mxu0 0.0
        %733 = vmatmul.mubr.f32.gmra.mxu0 %v565
        %v734 = vpop.f32.mrf.mxu0
        %v735 = vadd.f32 %v548, %v734
        %v736 = vpop.f32.mrf.mxu0
        %v737 = vadd.f32 %v548, %v736
        %738 = vmatprep.mubr.f32.mxu0 0.0
        %739 = vmatmul.mubr.f32.gmra.mxu0 %v568
        %v740 = vpop.f32.mrf.mxu0
        %v741 = vadd.f32 %v553, %v740
        %v742 = vpop.f32.mrf.mxu0
        %v743 = vadd.f32 %v553, %v742
        %744 = vmatprep.mubr.f32.mxu0 0.0
        %745 = vmatmul.mubr.f32.gmra.mxu0 %v571
        %v746 = vpop.f32.mrf.mxu0
        %v747 = vadd.f32 %v558, %v746
        %v748 = vpop.f32.mrf.mxu0
        %v749 = vadd.f32 %v558, %v748
        %750 = vdwg.mxu0
        %v751 = vmax.f32 %v640, 0.0
        %v752 = vmax.f32 %v642, 0.0
        %v753 = vmax.f32 %v729, 0.0
        %v754 = vmax.f32 %v731, 0.0
        %v755 = vmax.f32 %v646, 0.0
        %v756 = vmax.f32 %v648, 0.0
        %v757 = vmax.f32 %v735, 0.0
        %v758 = vmax.f32 %v737, 0.0
        %v759 = vmax.f32 %v652, 0.0
        %v760 = vmax.f32 %v654, 0.0
        %v761 = vmax.f32 %v741, 0.0
        %v762 = vmax.f32 %v743, 0.0
        %v763 = vmax.f32 %v658, 0.0
        %v764 = vmax.f32 %v660, 0.0
        %v765 = vmax.f32 %v747, 0.0
        %v766 = vmax.f32 %v749, 0.0
        %v767 = vld [vmem:[%s1 + $0x30] sm:$0xff]
        %v768 = vld [vmem:[%s1 + $0x38] sm:$0xff]
        %v769 = vld [vmem:[%s1 + $0x40] sm:$0xff]
        %v770 = vld [vmem:[%s1 + $0x48] sm:$0xff]
        %v771 = vld [vmem:[%s1 + $0x50] sm:$0xff]
        %v772 = vld [vmem:[%s1 + $0x58] sm:$0xff]
        %v773 = vld [vmem:[%s1 + $0x60] sm:$0xff]
        %v774 = vld [vmem:[%s1 + $0x68] sm:$0xff]
        %v775 = vld [vmem:[%s2 + $0x30] sm:$0xff]
        %v776 = vld [vmem:[%s2 + $0x38] sm:$0xff]
        %v777 = vld [vmem:[%s2 + $0x40] sm:$0xff]
        %v778 = vld [vmem:[%s2 + $0x48] sm:$0xff]
        %v779 = vld [vmem:[%s2 + $0x50] sm:$0xff]
        %v780 = vld [vmem:[%s2 + $0x58] sm:$0xff]
        %v781 = vld [vmem:[%s2 + $0x60] sm:$0xff]
        %v782 = vld [vmem:[%s2 + $0x68] sm:$0xff]
        %784 = vset.pattern.permute.xlu0 0
        %785 = vperm.xlu0 %784, %v775
        %v786 = vpop.permute.xlu0 %785
        %789 = vset.pattern.permute.xlu0 0
        %790 = vperm.xlu0 %789, %v776
        %v791 = vpop.permute.xlu0 %790
        %794 = vset.pattern.permute.xlu0 0
        %795 = vperm.xlu0 %794, %v777
        %v796 = vpop.permute.xlu0 %795
        %799 = vset.pattern.permute.xlu0 0
        %800 = vperm.xlu0 %799, %v778
        %v801 = vpop.permute.xlu0 %800
        %804 = vset.pattern.permute.xlu0 0
        %805 = vperm.xlu0 %804, %v779
        %v806 = vpop.permute.xlu0 %805
        %809 = vset.pattern.permute.xlu0 0
        %810 = vperm.xlu0 %809, %v780
        %v811 = vpop.permute.xlu0 %810
        %814 = vset.pattern.permute.xlu0 0
        %815 = vperm.xlu0 %814, %v781
        %v816 = vpop.permute.xlu0 %815
        %819 = vset.pattern.permute.xlu0 0
        %820 = vperm.xlu0 %819, %v782
        %v821 = vpop.permute.xlu0 %820
        %vm823 = vcmask 261120
        %v825 = vsel %vm823, %v767, 0
        %v828 = vsel %vm823, %v768, 0
        %v831 = vsel %vm823, %v769, 0
        %v834 = vsel %vm823, %v770, 0
        %v837 = vsel %vm823, %v771, 0
        %v840 = vsel %vm823, %v772, 0
        %v843 = vsel %vm823, %v773, 0
        %v846 = vsel %vm823, %v774, 0
        %848 = vmatprep.subr.mxu0 0.0
        %849 = vmatpush1.msra.mxu0 0.0
        %850 = vmatprep.subr.mxu0 0.0
        %851 = vmatpush1.msra.mxu0 0.0
        %852 = vmatprep.subr.mxu0 0.0
        %853 = vmatpush1.msra.mxu0 0.0
        %854 = vmatprep.subr.mxu0 0.0
        %855 = vmatpush1.msra.mxu0 0.0
        %856 = vmatprep.subr.mxu0 0.0
        %857 = vmatpush1.msra.mxu0 0.0
        %858 = vmatprep.subr.mxu0 0.0
        %859 = vmatpush1.msra.mxu0 0.0
        %860 = vmatprep.subr.mxu0 0.0
        %861 = vmatpush1.msra.mxu0 0.0
        %862 = vmatprep.subr.mxu0 0.0
        %863 = vmatpush1.msra.mxu0 0.0
        %864 = vmatprep.subr.mxu0 0.0
        %865 = vmatpush1.msra.mxu0 0.0
        %866 = vmatprep.subr.mxu0 0.0
        %867 = vmatpush1.msra.mxu0 0.0
        %868 = vmatprep.subr.mxu0 0.0
        %869 = vmatpush1.msra.mxu0 0.0
        %870 = vmatprep.subr.mxu0 0.0
        %871 = vmatpush1.msra.mxu0 0.0
        %872 = vmatprep.subr.mxu0 %v764
        %873 = vmatpush1.msra.mxu0 %v763
        %874 = vmatprep.subr.mxu0 %v760
        %875 = vmatpush1.msra.mxu0 %v759
        %876 = vmatprep.subr.mxu0 %v756
        %877 = vmatpush1.msra.mxu0 %v755
        %878 = vmatprep.subr.mxu0 %v752
        %879 = vmatpush1.msra.mxu0 %v751
        %880 = vmatprep.subr.mxu0 0.0
        %881 = vmatpush2.msra.mxu0 0.0
        %882 = vmatprep.subr.mxu0 0.0
        %883 = vmatpush2.msra.mxu0 0.0
        %884 = vmatprep.subr.mxu0 0.0
        %885 = vmatpush2.msra.mxu0 0.0
        %886 = vmatprep.subr.mxu0 0.0
        %887 = vmatpush2.msra.mxu0 0.0
        %888 = vmatprep.subr.mxu0 0.0
        %889 = vmatpush2.msra.mxu0 0.0
        %890 = vmatprep.subr.mxu0 0.0
        %891 = vmatpush2.msra.mxu0 0.0
        %892 = vmatprep.subr.mxu0 0.0
        %893 = vmatpush2.msra.mxu0 0.0
        %894 = vmatprep.subr.mxu0 0.0
        %895 = vmatpush2.msra.mxu0 0.0
        %896 = vmatprep.subr.mxu0 0.0
        %897 = vmatpush2.msra.mxu0 0.0
        %898 = vmatprep.subr.mxu0 0.0
        %899 = vmatpush2.msra.mxu0 0.0
        %900 = vmatprep.subr.mxu0 0.0
        %901 = vmatpush2.msra.mxu0 0.0
        %902 = vmatprep.subr.mxu0 0.0
        %903 = vmatpush2.msra.mxu0 0.0
        %904 = vmatprep.subr.mxu0 0.0
        %905 = vmatpush2.msra.mxu0 0.0
        %906 = vmatprep.subr.mxu0 0.0
        %907 = vmatpush2.msra.mxu0 0.0
        %908 = vmatprep.subr.mxu0 0.0
        %909 = vmatpush2.msra.mxu0 0.0
        %910 = vmatprep.subr.mxu0 0.0
        %911 = vmatpush2.msra.mxu0 0.0
        %912 = vmatprep.mubr.f32.mxu0 0.0
        %913 = vmatmul.mubr.f32.gmra.mxu0 %v825
        %v914 = vpop.f32.mrf.mxu0
        %v915 = vadd.f32 %v786, %v914
        %v916 = vpop.f32.mrf.mxu0
        %v917 = vadd.f32 %v786, %v916
        %918 = vmatprep.mubr.f32.mxu0 0.0
        %919 = vmatmul.mubr.f32.gmra.mxu0 %v828
        %v920 = vpop.f32.mrf.mxu0
        %v921 = vadd.f32 %v791, %v920
        %v922 = vpop.f32.mrf.mxu0
        %v923 = vadd.f32 %v791, %v922
        %924 = vmatprep.mubr.f32.mxu0 0.0
        %925 = vmatmul.mubr.f32.gmra.mxu0 %v831
        %v926 = vpop.f32.mrf.mxu0
        %v927 = vadd.f32 %v796, %v926
        %v928 = vpop.f32.mrf.mxu0
        %v929 = vadd.f32 %v796, %v928
        %930 = vmatprep.mubr.f32.mxu0 0.0
        %931 = vmatmul.mubr.f32.gmra.mxu0 %v834
        %v932 = vpop.f32.mrf.mxu0
        %v933 = vadd.f32 %v801, %v932
        %v934 = vpop.f32.mrf.mxu0
        %v935 = vadd.f32 %v801, %v934
        %936 = vmatprep.mubr.f32.mxu0 0.0
        %937 = vmatmul.mubr.f32.gmra.mxu0 %v837
        %v938 = vpop.f32.mrf.mxu0
        %v939 = vadd.f32 %v806, %v938
        %v940 = vpop.f32.mrf.mxu0
        %v941 = vadd.f32 %v806, %v940
        %942 = vmatprep.mubr.f32.mxu0 0.0
        %943 = vmatmul.mubr.f32.gmra.mxu0 %v840
        %v944 = vpop.f32.mrf.mxu0
        %v945 = vadd.f32 %v811, %v944
        %v946 = vpop.f32.mrf.mxu0
        %v947 = vadd.f32 %v811, %v946
        %948 = vmatprep.mubr.f32.mxu0 0.0
        %949 = vmatmul.mubr.f32.gmra.mxu0 %v843
        %v950 = vpop.f32.mrf.mxu0
        %v951 = vadd.f32 %v816, %v950
        %v952 = vpop.f32.mrf.mxu0
        %v953 = vadd.f32 %v816, %v952
        %954 = vmatprep.mubr.f32.mxu0 0.0
        %955 = vmatmul.mubr.f32.gmra.mxu0 %v846
        %v956 = vpop.f32.mrf.mxu0
        %v957 = vadd.f32 %v821, %v956
        %v958 = vpop.f32.mrf.mxu0
        %v959 = vadd.f32 %v821, %v958
        %960 = vdwg.mxu0
        %961 = vmatprep.subr.mxu0 0.0
        %962 = vmatpush1.msra.mxu0 0.0
        %963 = vmatprep.subr.mxu0 0.0
        %964 = vmatpush1.msra.mxu0 0.0
        %965 = vmatprep.subr.mxu0 0.0
        %966 = vmatpush1.msra.mxu0 0.0
        %967 = vmatprep.subr.mxu0 0.0
        %968 = vmatpush1.msra.mxu0 0.0
        %969 = vmatprep.subr.mxu0 0.0
        %970 = vmatpush1.msra.mxu0 0.0
        %971 = vmatprep.subr.mxu0 0.0
        %972 = vmatpush1.msra.mxu0 0.0
        %973 = vmatprep.subr.mxu0 0.0
        %974 = vmatpush1.msra.mxu0 0.0
        %975 = vmatprep.subr.mxu0 0.0
        %976 = vmatpush1.msra.mxu0 0.0
        %977 = vmatprep.subr.mxu0 0.0
        %978 = vmatpush1.msra.mxu0 0.0
        %979 = vmatprep.subr.mxu0 0.0
        %980 = vmatpush1.msra.mxu0 0.0
        %981 = vmatprep.subr.mxu0 0.0
        %982 = vmatpush1.msra.mxu0 0.0
        %983 = vmatprep.subr.mxu0 0.0
        %984 = vmatpush1.msra.mxu0 0.0
        %985 = vmatprep.subr.mxu0 %v766
        %986 = vmatpush1.msra.mxu0 %v765
        %987 = vmatprep.subr.mxu0 %v762
        %988 = vmatpush1.msra.mxu0 %v761
        %989 = vmatprep.subr.mxu0 %v758
        %990 = vmatpush1.msra.mxu0 %v757
        %991 = vmatprep.subr.mxu0 %v754
        %992 = vmatpush1.msra.mxu0 %v753
        %993 = vmatprep.subr.mxu0 0.0
        %994 = vmatpush2.msra.mxu0 0.0
        %995 = vmatprep.subr.mxu0 0.0
        %996 = vmatpush2.msra.mxu0 0.0
        %997 = vmatprep.subr.mxu0 0.0
        %998 = vmatpush2.msra.mxu0 0.0
        %999 = vmatprep.subr.mxu0 0.0
        %1000 = vmatpush2.msra.mxu0 0.0
        %1001 = vmatprep.subr.mxu0 0.0
        %1002 = vmatpush2.msra.mxu0 0.0
        %1003 = vmatprep.subr.mxu0 0.0
        %1004 = vmatpush2.msra.mxu0 0.0
        %1005 = vmatprep.subr.mxu0 0.0
        %1006 = vmatpush2.msra.mxu0 0.0
        %1007 = vmatprep.subr.mxu0 0.0
        %1008 = vmatpush2.msra.mxu0 0.0
        %1009 = vmatprep.subr.mxu0 0.0
        %1010 = vmatpush2.msra.mxu0 0.0
        %1011 = vmatprep.subr.mxu0 0.0
        %1012 = vmatpush2.msra.mxu0 0.0
        %1013 = vmatprep.subr.mxu0 0.0
        %1014 = vmatpush2.msra.mxu0 0.0
        %1015 = vmatprep.subr.mxu0 0.0
        %1016 = vmatpush2.msra.mxu0 0.0
        %1017 = vmatprep.subr.mxu0 0.0
        %1018 = vmatpush2.msra.mxu0 0.0
        %1019 = vmatprep.subr.mxu0 0.0
        %1020 = vmatpush2.msra.mxu0 0.0
        %1021 = vmatprep.subr.mxu0 0.0
        %1022 = vmatpush2.msra.mxu0 0.0
        %1023 = vmatprep.subr.mxu0 0.0
        %1024 = vmatpush2.msra.mxu0 0.0
        %1025 = vmatprep.mubr.f32.mxu0 0.0
        %1026 = vmatmul.mubr.f32.gmra.mxu0 %v825
        %v1027 = vpop.f32.mrf.mxu0
        %v1028 = vadd.f32 %v786, %v1027
        %v1029 = vpop.f32.mrf.mxu0
        %v1030 = vadd.f32 %v786, %v1029
        %1031 = vmatprep.mubr.f32.mxu0 0.0
        %1032 = vmatmul.mubr.f32.gmra.mxu0 %v828
        %v1033 = vpop.f32.mrf.mxu0
        %v1034 = vadd.f32 %v791, %v1033
        %v1035 = vpop.f32.mrf.mxu0
        %v1036 = vadd.f32 %v791, %v1035
        %1037 = vmatprep.mubr.f32.mxu0 0.0
        %1038 = vmatmul.mubr.f32.gmra.mxu0 %v831
        %v1039 = vpop.f32.mrf.mxu0
        %v1040 = vadd.f32 %v796, %v1039
        %v1041 = vpop.f32.mrf.mxu0
        %v1042 = vadd.f32 %v796, %v1041
        %1043 = vmatprep.mubr.f32.mxu0 0.0
        %1044 = vmatmul.mubr.f32.gmra.mxu0 %v834
        %v1045 = vpop.f32.mrf.mxu0
        %v1046 = vadd.f32 %v801, %v1045
        %v1047 = vpop.f32.mrf.mxu0
        %v1048 = vadd.f32 %v801, %v1047
        %1049 = vmatprep.mubr.f32.mxu0 0.0
        %1050 = vmatmul.mubr.f32.gmra.mxu0 %v837
        %v1051 = vpop.f32.mrf.mxu0
        %v1052 = vadd.f32 %v806, %v1051
        %v1053 = vpop.f32.mrf.mxu0
        %v1054 = vadd.f32 %v806, %v1053
        %1055 = vmatprep.mubr.f32.mxu0 0.0
        %1056 = vmatmul.mubr.f32.gmra.mxu0 %v840
        %v1057 = vpop.f32.mrf.mxu0
        %v1058 = vadd.f32 %v811, %v1057
        %v1059 = vpop.f32.mrf.mxu0
        %v1060 = vadd.f32 %v811, %v1059
        %1061 = vmatprep.mubr.f32.mxu0 0.0
        %1062 = vmatmul.mubr.f32.gmra.mxu0 %v843
        %v1063 = vpop.f32.mrf.mxu0
        %v1064 = vadd.f32 %v816, %v1063
        %v1065 = vpop.f32.mrf.mxu0
        %v1066 = vadd.f32 %v816, %v1065
        %1067 = vmatprep.mubr.f32.mxu0 0.0
        %1068 = vmatmul.mubr.f32.gmra.mxu0 %v846
        %v1069 = vpop.f32.mrf.mxu0
        %v1070 = vadd.f32 %v821, %v1069
        %v1071 = vpop.f32.mrf.mxu0
        %v1072 = vadd.f32 %v821, %v1071
        %1073 = vdwg.mxu0
        %v1074 = vmax.f32 %v915, 0.0
        %v1075 = vmax.f32 %v917, 0.0
        %v1076 = vmax.f32 %v1028, 0.0
        %v1077 = vmax.f32 %v1030, 0.0
        %v1078 = vmax.f32 %v921, 0.0
        %v1079 = vmax.f32 %v923, 0.0
        %v1080 = vmax.f32 %v1034, 0.0
        %v1081 = vmax.f32 %v1036, 0.0
        %v1082 = vmax.f32 %v927, 0.0
        %v1083 = vmax.f32 %v929, 0.0
        %v1084 = vmax.f32 %v1040, 0.0
        %v1085 = vmax.f32 %v1042, 0.0
        %v1086 = vmax.f32 %v933, 0.0
        %v1087 = vmax.f32 %v935, 0.0
        %v1088 = vmax.f32 %v1046, 0.0
        %v1089 = vmax.f32 %v1048, 0.0
        %v1090 = vmax.f32 %v939, 0.0
        %v1091 = vmax.f32 %v941, 0.0
        %v1092 = vmax.f32 %v1052, 0.0
        %v1093 = vmax.f32 %v1054, 0.0
        %v1094 = vmax.f32 %v945, 0.0
        %v1095 = vmax.f32 %v947, 0.0
        %v1096 = vmax.f32 %v1058, 0.0
        %v1097 = vmax.f32 %v1060, 0.0
        %v1098 = vmax.f32 %v951, 0.0
        %v1099 = vmax.f32 %v953, 0.0
        %v1100 = vmax.f32 %v1064, 0.0
        %v1101 = vmax.f32 %v1066, 0.0
        %v1102 = vmax.f32 %v957, 0.0
        %v1103 = vmax.f32 %v959, 0.0
        %v1104 = vmax.f32 %v1070, 0.0
        %v1105 = vmax.f32 %v1072, 0.0
        %v1106 = vld [vmem:[%s1 + $0x70] sm:$0xff]
        %v1107 = vld [vmem:[%s1 + $0x78] sm:$0xff]
        %v1108 = vld [vmem:[%s1 + $0x80] sm:$0xff]
        %v1109 = vld [vmem:[%s1 + $0x88] sm:$0xff]
        %v1110 = vld [vmem:[%s1 + $0x90] sm:$0xff]
        %v1111 = vld [vmem:[%s1 + $0x98] sm:$0xff]
        %v1112 = vld [vmem:[%s1 + $0xa0] sm:$0xff]
        %v1113 = vld [vmem:[%s1 + $0xa8] sm:$0xff]
        %v1114 = vld [vmem:[%s1 + $0xb0] sm:$0xff]
        %v1115 = vld [vmem:[%s1 + $0xb8] sm:$0xff]
        %v1116 = vld [vmem:[%s1 + $0xc0] sm:$0xff]
        %v1117 = vld [vmem:[%s1 + $0xc8] sm:$0xff]
        %v1118 = vld [vmem:[%s1 + $0xd0] sm:$0xff]
        %v1119 = vld [vmem:[%s1 + $0xd8] sm:$0xff]
        %v1120 = vld [vmem:[%s1 + $0xe0] sm:$0xff]
        %v1121 = vld [vmem:[%s1 + $0xe8] sm:$0xff]
        %v1122 = vld [vmem:[%s2 + $0x70] sm:$0xff]
        %v1123 = vld [vmem:[%s2 + $0x78] sm:$0xff]
        %v1124 = vld [vmem:[%s2 + $0x80] sm:$0xff]
        %v1125 = vld [vmem:[%s2 + $0x88] sm:$0xff]
        %v1126 = vld [vmem:[%s2 + $0x90] sm:$0xff]
        %v1127 = vld [vmem:[%s2 + $0x98] sm:$0xff]
        %v1128 = vld [vmem:[%s2 + $0xa0] sm:$0xff]
        %v1129 = vld [vmem:[%s2 + $0xa8] sm:$0xff]
        %v1130 = vld [vmem:[%s2 + $0xb0] sm:$0xff]
        %v1131 = vld [vmem:[%s2 + $0xb8] sm:$0xff]
        %v1132 = vld [vmem:[%s2 + $0xc0] sm:$0xff]
        %v1133 = vld [vmem:[%s2 + $0xc8] sm:$0xff]
        %v1134 = vld [vmem:[%s2 + $0xd0] sm:$0xff]
        %v1135 = vld [vmem:[%s2 + $0xd8] sm:$0xff]
        %v1136 = vld [vmem:[%s2 + $0xe0] sm:$0xff]
        %v1137 = vld [vmem:[%s2 + $0xe8] sm:$0xff]
        %1139 = vset.pattern.permute.xlu0 0
        %1140 = vperm.xlu0 %1139, %v1122
        %v1141 = vpop.permute.xlu0 %1140
        %1144 = vset.pattern.permute.xlu0 0
        %1145 = vperm.xlu0 %1144, %v1123
        %v1146 = vpop.permute.xlu0 %1145
        %1149 = vset.pattern.permute.xlu0 0
        %1150 = vperm.xlu0 %1149, %v1124
        %v1151 = vpop.permute.xlu0 %1150
        %1154 = vset.pattern.permute.xlu0 0
        %1155 = vperm.xlu0 %1154, %v1125
        %v1156 = vpop.permute.xlu0 %1155
        %1159 = vset.pattern.permute.xlu0 0
        %1160 = vperm.xlu0 %1159, %v1126
        %v1161 = vpop.permute.xlu0 %1160
        %1164 = vset.pattern.permute.xlu0 0
        %1165 = vperm.xlu0 %1164, %v1127
        %v1166 = vpop.permute.xlu0 %1165
        %1169 = vset.pattern.permute.xlu0 0
        %1170 = vperm.xlu0 %1169, %v1128
        %v1171 = vpop.permute.xlu0 %1170
        %1174 = vset.pattern.permute.xlu0 0
        %1175 = vperm.xlu0 %1174, %v1129
        %v1176 = vpop.permute.xlu0 %1175
        %1179 = vset.pattern.permute.xlu0 0
        %1180 = vperm.xlu0 %1179, %v1130
        %v1181 = vpop.permute.xlu0 %1180
        %1184 = vset.pattern.permute.xlu0 0
        %1185 = vperm.xlu0 %1184, %v1131
        %v1186 = vpop.permute.xlu0 %1185
        %1189 = vset.pattern.permute.xlu0 0
        %1190 = vperm.xlu0 %1189, %v1132
        %v1191 = vpop.permute.xlu0 %1190
        %1194 = vset.pattern.permute.xlu0 0
        %1195 = vperm.xlu0 %1194, %v1133
        %v1196 = vpop.permute.xlu0 %1195
        %1199 = vset.pattern.permute.xlu0 0
        %1200 = vperm.xlu0 %1199, %v1134
        %v1201 = vpop.permute.xlu0 %1200
        %1204 = vset.pattern.permute.xlu0 0
        %1205 = vperm.xlu0 %1204, %v1135
        %v1206 = vpop.permute.xlu0 %1205
        %1209 = vset.pattern.permute.xlu0 0
        %1210 = vperm.xlu0 %1209, %v1136
        %v1211 = vpop.permute.xlu0 %1210
        %1214 = vset.pattern.permute.xlu0 0
        %1215 = vperm.xlu0 %1214, %v1137
        %v1216 = vpop.permute.xlu0 %1215
        %vm1218 = vcmask 523264
        %v1220 = vsel %vm1218, %v1106, 0
        %v1223 = vsel %vm1218, %v1107, 0
        %v1226 = vsel %vm1218, %v1108, 0
        %v1229 = vsel %vm1218, %v1109, 0
        %v1232 = vsel %vm1218, %v1110, 0
        %v1235 = vsel %vm1218, %v1111, 0
        %v1238 = vsel %vm1218, %v1112, 0
        %v1241 = vsel %vm1218, %v1113, 0
        %v1244 = vsel %vm1218, %v1114, 0
        %v1247 = vsel %vm1218, %v1115, 0
        %v1250 = vsel %vm1218, %v1116, 0
        %v1253 = vsel %vm1218, %v1117, 0
        %v1256 = vsel %vm1218, %v1118, 0
        %v1259 = vsel %vm1218, %v1119, 0
        %v1262 = vsel %vm1218, %v1120, 0
        %v1265 = vsel %vm1218, %v1121, 0
        %1267 = vmatprep.subr.mxu0 0.0
        %1268 = vmatpush1.msra.mxu0 0.0
        %1269 = vmatprep.subr.mxu0 0.0
        %1270 = vmatpush1.msra.mxu0 0.0
        %1271 = vmatprep.subr.mxu0 0.0
        %1272 = vmatpush1.msra.mxu0 0.0
        %1273 = vmatprep.subr.mxu0 0.0
        %1274 = vmatpush1.msra.mxu0 0.0
        %1275 = vmatprep.subr.mxu0 0.0
        %1276 = vmatpush1.msra.mxu0 0.0
        %1277 = vmatprep.subr.mxu0 0.0
        %1278 = vmatpush1.msra.mxu0 0.0
        %1279 = vmatprep.subr.mxu0 0.0
        %1280 = vmatpush1.msra.mxu0 0.0
        %1281 = vmatprep.subr.mxu0 0.0
        %1282 = vmatpush1.msra.mxu0 0.0
        %1283 = vmatprep.subr.mxu0 %v1103
        %1284 = vmatpush1.msra.mxu0 %v1102
        %1285 = vmatprep.subr.mxu0 %v1099
        %1286 = vmatpush1.msra.mxu0 %v1098
        %1287 = vmatprep.subr.mxu0 %v1095
        %1288 = vmatpush1.msra.mxu0 %v1094
        %1289 = vmatprep.subr.mxu0 %v1091
        %1290 = vmatpush1.msra.mxu0 %v1090
        %1291 = vmatprep.subr.mxu0 %v1087
        %1292 = vmatpush1.msra.mxu0 %v1086
        %1293 = vmatprep.subr.mxu0 %v1083
        %1294 = vmatpush1.msra.mxu0 %v1082
        %1295 = vmatprep.subr.mxu0 %v1079
        %1296 = vmatpush1.msra.mxu0 %v1078
        %1297 = vmatprep.subr.mxu0 %v1075
        %1298 = vmatpush1.msra.mxu0 %v1074
        %1299 = vmatprep.subr.mxu0 0.0
        %1300 = vmatpush2.msra.mxu0 0.0
        %1301 = vmatprep.subr.mxu0 0.0
        %1302 = vmatpush2.msra.mxu0 0.0
        %1303 = vmatprep.subr.mxu0 0.0
        %1304 = vmatpush2.msra.mxu0 0.0
        %1305 = vmatprep.subr.mxu0 0.0
        %1306 = vmatpush2.msra.mxu0 0.0
        %1307 = vmatprep.subr.mxu0 0.0
        %1308 = vmatpush2.msra.mxu0 0.0
        %1309 = vmatprep.subr.mxu0 0.0
        %1310 = vmatpush2.msra.mxu0 0.0
        %1311 = vmatprep.subr.mxu0 0.0
        %1312 = vmatpush2.msra.mxu0 0.0
        %1313 = vmatprep.subr.mxu0 0.0
        %1314 = vmatpush2.msra.mxu0 0.0
        %1315 = vmatprep.subr.mxu0 0.0
        %1316 = vmatpush2.msra.mxu0 0.0
        %1317 = vmatprep.subr.mxu0 0.0
        %1318 = vmatpush2.msra.mxu0 0.0
        %1319 = vmatprep.subr.mxu0 0.0
        %1320 = vmatpush2.msra.mxu0 0.0
        %1321 = vmatprep.subr.mxu0 0.0
        %1322 = vmatpush2.msra.mxu0 0.0
        %1323 = vmatprep.subr.mxu0 0.0
        %1324 = vmatpush2.msra.mxu0 0.0
        %1325 = vmatprep.subr.mxu0 0.0
        %1326 = vmatpush2.msra.mxu0 0.0
        %1327 = vmatprep.subr.mxu0 0.0
        %1328 = vmatpush2.msra.mxu0 0.0
        %1329 = vmatprep.subr.mxu0 0.0
        %1330 = vmatpush2.msra.mxu0 0.0
        %1331 = vmatprep.mubr.f32.mxu0 0.0
        %1332 = vmatmul.mubr.f32.gmra.mxu0 %v1220
        %v1333 = vpop.f32.mrf.mxu0
        %v1334 = vadd.f32 %v1141, %v1333
        %v1335 = vpop.f32.mrf.mxu0
        %v1336 = vadd.f32 %v1141, %v1335
        %1337 = vmatprep.mubr.f32.mxu0 0.0
        %1338 = vmatmul.mubr.f32.gmra.mxu0 %v1223
        %v1339 = vpop.f32.mrf.mxu0
        %v1340 = vadd.f32 %v1146, %v1339
        %v1341 = vpop.f32.mrf.mxu0
        %v1342 = vadd.f32 %v1146, %v1341
        %1343 = vmatprep.mubr.f32.mxu0 0.0
        %1344 = vmatmul.mubr.f32.gmra.mxu0 %v1226
        %v1345 = vpop.f32.mrf.mxu0
        %v1346 = vadd.f32 %v1151, %v1345
        %v1347 = vpop.f32.mrf.mxu0
        %v1348 = vadd.f32 %v1151, %v1347
        %1349 = vmatprep.mubr.f32.mxu0 0.0
        %1350 = vmatmul.mubr.f32.gmra.mxu0 %v1229
        %v1351 = vpop.f32.mrf.mxu0
        %v1352 = vadd.f32 %v1156, %v1351
        %v1353 = vpop.f32.mrf.mxu0
        %v1354 = vadd.f32 %v1156, %v1353
        %1355 = vmatprep.mubr.f32.mxu0 0.0
        %1356 = vmatmul.mubr.f32.gmra.mxu0 %v1232
        %v1357 = vpop.f32.mrf.mxu0
        %v1358 = vadd.f32 %v1161, %v1357
        %v1359 = vpop.f32.mrf.mxu0
        %v1360 = vadd.f32 %v1161, %v1359
        %1361 = vmatprep.mubr.f32.mxu0 0.0
        %1362 = vmatmul.mubr.f32.gmra.mxu0 %v1235
        %v1363 = vpop.f32.mrf.mxu0
        %v1364 = vadd.f32 %v1166, %v1363
        %v1365 = vpop.f32.mrf.mxu0
        %v1366 = vadd.f32 %v1166, %v1365
        %1367 = vmatprep.mubr.f32.mxu0 0.0
        %1368 = vmatmul.mubr.f32.gmra.mxu0 %v1238
        %v1369 = vpop.f32.mrf.mxu0
        %v1370 = vadd.f32 %v1171, %v1369
        %v1371 = vpop.f32.mrf.mxu0
        %v1372 = vadd.f32 %v1171, %v1371
        %1373 = vmatprep.mubr.f32.mxu0 0.0
        %1374 = vmatmul.mubr.f32.gmra.mxu0 %v1241
        %v1375 = vpop.f32.mrf.mxu0
        %v1376 = vadd.f32 %v1176, %v1375
        %v1377 = vpop.f32.mrf.mxu0
        %v1378 = vadd.f32 %v1176, %v1377
        %1379 = vmatprep.mubr.f32.mxu0 0.0
        %1380 = vmatmul.mubr.f32.gmra.mxu0 %v1244
        %v1381 = vpop.f32.mrf.mxu0
        %v1382 = vadd.f32 %v1181, %v1381
        %v1383 = vpop.f32.mrf.mxu0
        %v1384 = vadd.f32 %v1181, %v1383
        %1385 = vmatprep.mubr.f32.mxu0 0.0
        %1386 = vmatmul.mubr.f32.gmra.mxu0 %v1247
        %v1387 = vpop.f32.mrf.mxu0
        %v1388 = vadd.f32 %v1186, %v1387
        %v1389 = vpop.f32.mrf.mxu0
        %v1390 = vadd.f32 %v1186, %v1389
        %1391 = vmatprep.mubr.f32.mxu0 0.0
        %1392 = vmatmul.mubr.f32.gmra.mxu0 %v1250
        %v1393 = vpop.f32.mrf.mxu0
        %v1394 = vadd.f32 %v1191, %v1393
        %v1395 = vpop.f32.mrf.mxu0
        %v1396 = vadd.f32 %v1191, %v1395
        %1397 = vmatprep.mubr.f32.mxu0 0.0
        %1398 = vmatmul.mubr.f32.gmra.mxu0 %v1253
        %v1399 = vpop.f32.mrf.mxu0
        %v1400 = vadd.f32 %v1196, %v1399
        %v1401 = vpop.f32.mrf.mxu0
        %v1402 = vadd.f32 %v1196, %v1401
        %1403 = vmatprep.mubr.f32.mxu0 0.0
        %1404 = vmatmul.mubr.f32.gmra.mxu0 %v1256
        %v1405 = vpop.f32.mrf.mxu0
        %v1406 = vadd.f32 %v1201, %v1405
        %v1407 = vpop.f32.mrf.mxu0
        %v1408 = vadd.f32 %v1201, %v1407
        %1409 = vmatprep.mubr.f32.mxu0 0.0
        %1410 = vmatmul.mubr.f32.gmra.mxu0 %v1259
        %v1411 = vpop.f32.mrf.mxu0
        %v1412 = vadd.f32 %v1206, %v1411
        %v1413 = vpop.f32.mrf.mxu0
        %v1414 = vadd.f32 %v1206, %v1413
        %1415 = vmatprep.mubr.f32.mxu0 0.0
        %1416 = vmatmul.mubr.f32.gmra.mxu0 %v1262
        %v1417 = vpop.f32.mrf.mxu0
        %v1418 = vadd.f32 %v1211, %v1417
        %v1419 = vpop.f32.mrf.mxu0
        %v1420 = vadd.f32 %v1211, %v1419
        %1421 = vmatprep.mubr.f32.mxu0 0.0
        %1422 = vmatmul.mubr.f32.gmra.mxu0 %v1265
        %v1423 = vpop.f32.mrf.mxu0
        %v1424 = vadd.f32 %v1216, %v1423
        %v1425 = vpop.f32.mrf.mxu0
        %v1426 = vadd.f32 %v1216, %v1425
        %1427 = vdwg.mxu0
        %1428 = vmatprep.subr.mxu0 0.0
        %1429 = vmatpush1.msra.mxu0 0.0
        %1430 = vmatprep.subr.mxu0 0.0
        %1431 = vmatpush1.msra.mxu0 0.0
        %1432 = vmatprep.subr.mxu0 0.0
        %1433 = vmatpush1.msra.mxu0 0.0
        %1434 = vmatprep.subr.mxu0 0.0
        %1435 = vmatpush1.msra.mxu0 0.0
        %1436 = vmatprep.subr.mxu0 0.0
        %1437 = vmatpush1.msra.mxu0 0.0
        %1438 = vmatprep.subr.mxu0 0.0
        %1439 = vmatpush1.msra.mxu0 0.0
        %1440 = vmatprep.subr.mxu0 0.0
        %1441 = vmatpush1.msra.mxu0 0.0
        %1442 = vmatprep.subr.mxu0 0.0
        %1443 = vmatpush1.msra.mxu0 0.0
        %1444 = vmatprep.subr.mxu0 %v1105
        %1445 = vmatpush1.msra.mxu0 %v1104
        %1446 = vmatprep.subr.mxu0 %v1101
        %1447 = vmatpush1.msra.mxu0 %v1100
        %1448 = vmatprep.subr.mxu0 %v1097
        %1449 = vmatpush1.msra.mxu0 %v1096
        %1450 = vmatprep.subr.mxu0 %v1093
        %1451 = vmatpush1.msra.mxu0 %v1092
        %1452 = vmatprep.subr.mxu0 %v1089
        %1453 = vmatpush1.msra.mxu0 %v1088
        %1454 = vmatprep.subr.mxu0 %v1085
        %1455 = vmatpush1.msra.mxu0 %v1084
        %1456 = vmatprep.subr.mxu0 %v1081
        %1457 = vmatpush1.msra.mxu0 %v1080
        %1458 = vmatprep.subr.mxu0 %v1077
        %1459 = vmatpush1.msra.mxu0 %v1076
        %1460 = vmatprep.subr.mxu0 0.0
        %1461 = vmatpush2.msra.mxu0 0.0
        %1462 = vmatprep.subr.mxu0 0.0
        %1463 = vmatpush2.msra.mxu0 0.0
        %1464 = vmatprep.subr.mxu0 0.0
        %1465 = vmatpush2.msra.mxu0 0.0
        %1466 = vmatprep.subr.mxu0 0.0
        %1467 = vmatpush2.msra.mxu0 0.0
        %1468 = vmatprep.subr.mxu0 0.0
        %1469 = vmatpush2.msra.mxu0 0.0
        %1470 = vmatprep.subr.mxu0 0.0
        %1471 = vmatpush2.msra.mxu0 0.0
        %1472 = vmatprep.subr.mxu0 0.0
        %1473 = vmatpush2.msra.mxu0 0.0
        %1474 = vmatprep.subr.mxu0 0.0
        %1475 = vmatpush2.msra.mxu0 0.0
        %1476 = vmatprep.subr.mxu0 0.0
        %1477 = vmatpush2.msra.mxu0 0.0
        %1478 = vmatprep.subr.mxu0 0.0
        %1479 = vmatpush2.msra.mxu0 0.0
        %1480 = vmatprep.subr.mxu0 0.0
        %1481 = vmatpush2.msra.mxu0 0.0
        %1482 = vmatprep.subr.mxu0 0.0
        %1483 = vmatpush2.msra.mxu0 0.0
        %1484 = vmatprep.subr.mxu0 0.0
        %1485 = vmatpush2.msra.mxu0 0.0
        %1486 = vmatprep.subr.mxu0 0.0
        %1487 = vmatpush2.msra.mxu0 0.0
        %1488 = vmatprep.subr.mxu0 0.0
        %1489 = vmatpush2.msra.mxu0 0.0
        %1490 = vmatprep.subr.mxu0 0.0
        %1491 = vmatpush2.msra.mxu0 0.0
        %1492 = vmatprep.mubr.f32.mxu0 0.0
        %1493 = vmatmul.mubr.f32.gmra.mxu0 %v1220
        %v1494 = vpop.f32.mrf.mxu0
        %v1495 = vadd.f32 %v1141, %v1494
        %v1496 = vpop.f32.mrf.mxu0
        %v1497 = vadd.f32 %v1141, %v1496
        %1498 = vmatprep.mubr.f32.mxu0 0.0
        %1499 = vmatmul.mubr.f32.gmra.mxu0 %v1223
        %v1500 = vpop.f32.mrf.mxu0
        %v1501 = vadd.f32 %v1146, %v1500
        %v1502 = vpop.f32.mrf.mxu0
        %v1503 = vadd.f32 %v1146, %v1502
        %1504 = vmatprep.mubr.f32.mxu0 0.0
        %1505 = vmatmul.mubr.f32.gmra.mxu0 %v1226
        %v1506 = vpop.f32.mrf.mxu0
        %v1507 = vadd.f32 %v1151, %v1506
        %v1508 = vpop.f32.mrf.mxu0
        %v1509 = vadd.f32 %v1151, %v1508
        %1510 = vmatprep.mubr.f32.mxu0 0.0
        %1511 = vmatmul.mubr.f32.gmra.mxu0 %v1229
        %v1512 = vpop.f32.mrf.mxu0
        %v1513 = vadd.f32 %v1156, %v1512
        %v1514 = vpop.f32.mrf.mxu0
        %v1515 = vadd.f32 %v1156, %v1514
        %1516 = vmatprep.mubr.f32.mxu0 0.0
        %1517 = vmatmul.mubr.f32.gmra.mxu0 %v1232
        %v1518 = vpop.f32.mrf.mxu0
        %v1519 = vadd.f32 %v1161, %v1518
        %v1520 = vpop.f32.mrf.mxu0
        %v1521 = vadd.f32 %v1161, %v1520
        %1522 = vmatprep.mubr.f32.mxu0 0.0
        %1523 = vmatmul.mubr.f32.gmra.mxu0 %v1235
        %v1524 = vpop.f32.mrf.mxu0
        %v1525 = vadd.f32 %v1166, %v1524
        %v1526 = vpop.f32.mrf.mxu0
        %v1527 = vadd.f32 %v1166, %v1526
        %1528 = vmatprep.mubr.f32.mxu0 0.0
        %1529 = vmatmul.mubr.f32.gmra.mxu0 %v1238
        %v1530 = vpop.f32.mrf.mxu0
        %v1531 = vadd.f32 %v1171, %v1530
        %v1532 = vpop.f32.mrf.mxu0
        %v1533 = vadd.f32 %v1171, %v1532
        %1534 = vmatprep.mubr.f32.mxu0 0.0
        %1535 = vmatmul.mubr.f32.gmra.mxu0 %v1241
        %v1536 = vpop.f32.mrf.mxu0
        %v1537 = vadd.f32 %v1176, %v1536
        %v1538 = vpop.f32.mrf.mxu0
        %v1539 = vadd.f32 %v1176, %v1538
        %1540 = vmatprep.mubr.f32.mxu0 0.0
        %1541 = vmatmul.mubr.f32.gmra.mxu0 %v1244
        %v1542 = vpop.f32.mrf.mxu0
        %v1543 = vadd.f32 %v1181, %v1542
        %v1544 = vpop.f32.mrf.mxu0
        %v1545 = vadd.f32 %v1181, %v1544
        %1546 = vmatprep.mubr.f32.mxu0 0.0
        %1547 = vmatmul.mubr.f32.gmra.mxu0 %v1247
        %v1548 = vpop.f32.mrf.mxu0
        %v1549 = vadd.f32 %v1186, %v1548
        %v1550 = vpop.f32.mrf.mxu0
        %v1551 = vadd.f32 %v1186, %v1550
        %1552 = vmatprep.mubr.f32.mxu0 0.0
        %1553 = vmatmul.mubr.f32.gmra.mxu0 %v1250
        %v1554 = vpop.f32.mrf.mxu0
        %v1555 = vadd.f32 %v1191, %v1554
        %v1556 = vpop.f32.mrf.mxu0
        %v1557 = vadd.f32 %v1191, %v1556
        %1558 = vmatprep.mubr.f32.mxu0 0.0
        %1559 = vmatmul.mubr.f32.gmra.mxu0 %v1253
        %v1560 = vpop.f32.mrf.mxu0
        %v1561 = vadd.f32 %v1196, %v1560
        %v1562 = vpop.f32.mrf.mxu0
        %v1563 = vadd.f32 %v1196, %v1562
        %1564 = vmatprep.mubr.f32.mxu0 0.0
        %1565 = vmatmul.mubr.f32.gmra.mxu0 %v1256
        %v1566 = vpop.f32.mrf.mxu0
        %v1567 = vadd.f32 %v1201, %v1566
        %v1568 = vpop.f32.mrf.mxu0
        %v1569 = vadd.f32 %v1201, %v1568
        %1570 = vmatprep.mubr.f32.mxu0 0.0
        %1571 = vmatmul.mubr.f32.gmra.mxu0 %v1259
        %v1572 = vpop.f32.mrf.mxu0
        %v1573 = vadd.f32 %v1206, %v1572
        %v1574 = vpop.f32.mrf.mxu0
        %v1575 = vadd.f32 %v1206, %v1574
        %1576 = vmatprep.mubr.f32.mxu0 0.0
        %1577 = vmatmul.mubr.f32.gmra.mxu0 %v1262
        %v1578 = vpop.f32.mrf.mxu0
        %v1579 = vadd.f32 %v1211, %v1578
        %v1580 = vpop.f32.mrf.mxu0
        %v1581 = vadd.f32 %v1211, %v1580
        %1582 = vmatprep.mubr.f32.mxu0 0.0
        %1583 = vmatmul.mubr.f32.gmra.mxu0 %v1265
        %v1584 = vpop.f32.mrf.mxu0
        %v1585 = vadd.f32 %v1216, %v1584
        %v1586 = vpop.f32.mrf.mxu0
        %v1587 = vadd.f32 %v1216, %v1586
        %1588 = vdwg.mxu0
        %v1589 = vmax.f32 %v1334, 0.0
        %v1590 = vmax.f32 %v1336, 0.0
        %v1591 = vmax.f32 %v1495, 0.0
        %v1592 = vmax.f32 %v1497, 0.0
        %v1593 = vmax.f32 %v1340, 0.0
        %v1594 = vmax.f32 %v1342, 0.0
        %v1595 = vmax.f32 %v1501, 0.0
        %v1596 = vmax.f32 %v1503, 0.0
        %v1597 = vmax.f32 %v1346, 0.0
        %v1598 = vmax.f32 %v1348, 0.0
        %v1599 = vmax.f32 %v1507, 0.0
        %v1600 = vmax.f32 %v1509, 0.0
        %v1601 = vmax.f32 %v1352, 0.0
        %v1602 = vmax.f32 %v1354, 0.0
        %v1603 = vmax.f32 %v1513, 0.0
        %v1604 = vmax.f32 %v1515, 0.0
        %v1605 = vmax.f32 %v1358, 0.0
        %v1606 = vmax.f32 %v1360, 0.0
        %v1607 = vmax.f32 %v1519, 0.0
        %v1608 = vmax.f32 %v1521, 0.0
        %v1609 = vmax.f32 %v1364, 0.0
        %v1610 = vmax.f32 %v1366, 0.0
        %v1611 = vmax.f32 %v1525, 0.0
        %v1612 = vmax.f32 %v1527, 0.0
        %v1613 = vmax.f32 %v1370, 0.0
        %v1614 = vmax.f32 %v1372, 0.0
        %v1615 = vmax.f32 %v1531, 0.0
        %v1616 = vmax.f32 %v1533, 0.0
        %v1617 = vmax.f32 %v1376, 0.0
        %v1618 = vmax.f32 %v1378, 0.0
        %v1619 = vmax.f32 %v1537, 0.0
        %v1620 = vmax.f32 %v1539, 0.0
        %v1621 = vmax.f32 %v1382, 0.0
        %v1622 = vmax.f32 %v1384, 0.0
        %v1623 = vmax.f32 %v1543, 0.0
        %v1624 = vmax.f32 %v1545, 0.0
        %v1625 = vmax.f32 %v1388, 0.0
        %v1626 = vmax.f32 %v1390, 0.0
        %v1627 = vmax.f32 %v1549, 0.0
        %v1628 = vmax.f32 %v1551, 0.0
        %v1629 = vmax.f32 %v1394, 0.0
        %v1630 = vmax.f32 %v1396, 0.0
        %v1631 = vmax.f32 %v1555, 0.0
        %v1632 = vmax.f32 %v1557, 0.0
        %v1633 = vmax.f32 %v1400, 0.0
        %v1634 = vmax.f32 %v1402, 0.0
        %v1635 = vmax.f32 %v1561, 0.0
        %v1636 = vmax.f32 %v1563, 0.0
        %v1637 = vmax.f32 %v1406, 0.0
        %v1638 = vmax.f32 %v1408, 0.0
        %v1639 = vmax.f32 %v1567, 0.0
        %v1640 = vmax.f32 %v1569, 0.0
        %v1641 = vmax.f32 %v1412, 0.0
        %v1642 = vmax.f32 %v1414, 0.0
        %v1643 = vmax.f32 %v1573, 0.0
        %v1644 = vmax.f32 %v1575, 0.0
        %v1645 = vmax.f32 %v1418, 0.0
        %v1646 = vmax.f32 %v1420, 0.0
        %v1647 = vmax.f32 %v1579, 0.0
        %v1648 = vmax.f32 %v1581, 0.0
        %v1649 = vmax.f32 %v1424, 0.0
        %v1650 = vmax.f32 %v1426, 0.0
        %v1651 = vmax.f32 %v1585, 0.0
        %v1652 = vmax.f32 %v1587, 0.0
        %s1653 = smul.u32 %s19, 512
        %v1654 = vlaneseq
        %v1655 = vand.u32 %v1654, 127
        %v1656 = vadd.s32 %v1655, 128
        %v1657 = vadd.s32 %v1655, 256
        %v1658 = vadd.s32 %v1655, 384
        %v1659 = vstv %s1653
        %v1660 = vadd.s32 %v1659, %v1655
        %v1661 = vadd.s32 %v1659, %v1656
        %v1662 = vadd.s32 %v1659, %v1657
        %v1663 = vadd.s32 %v1659, %v1658
        %vm1664 = vcmp.lt.s32.totalorder %v1660, 1000
        %vm1665 = vcmp.lt.s32.totalorder %v1661, 1000
        %vm1666 = vcmp.lt.s32.totalorder %v1662, 1000
        %vm1667 = vcmp.lt.s32.totalorder %v1663, 1000
        %v1668 = vsel %vm1664, 1, 0
        %v1669 = vsel %vm1665, 1, 0
        %v1670 = vsel %vm1666, 1, 0
        %v1671 = vsel %vm1667, 1, 0
        %vm1672 = vcmp.eq.s32.totalorder %v1668, 1
        %vm1673 = vcmp.eq.s32.totalorder %v1669, 1
        %vm1674 = vcmp.eq.s32.totalorder %v1670, 1
        %vm1675 = vcmp.eq.s32.totalorder %v1671, 1
        %v1676 = vsel %vm1672, %v1589, -inf
        %v1677 = vsel %vm1673, %v1590, -inf
        %v1678 = vsel %vm1674, %v1591, -inf
        %v1679 = vsel %vm1675, %v1592, -inf
        %v1680 = vsel %vm1672, %v1593, -inf
        %v1681 = vsel %vm1673, %v1594, -inf
        %v1682 = vsel %vm1674, %v1595, -inf
        %v1683 = vsel %vm1675, %v1596, -inf
        %v1684 = vsel %vm1672, %v1597, -inf
        %v1685 = vsel %vm1673, %v1598, -inf
        %v1686 = vsel %vm1674, %v1599, -inf
        %v1687 = vsel %vm1675, %v1600, -inf
        %v1688 = vsel %vm1672, %v1601, -inf
        %v1689 = vsel %vm1673, %v1602, -inf
        %v1690 = vsel %vm1674, %v1603, -inf
        %v1691 = vsel %vm1675, %v1604, -inf
        %v1692 = vsel %vm1672, %v1605, -inf
        %v1693 = vsel %vm1673, %v1606, -inf
        %v1694 = vsel %vm1674, %v1607, -inf
        %v1695 = vsel %vm1675, %v1608, -inf
        %v1696 = vsel %vm1672, %v1609, -inf
        %v1697 = vsel %vm1673, %v1610, -inf
        %v1698 = vsel %vm1674, %v1611, -inf
        %v1699 = vsel %vm1675, %v1612, -inf
        %v1700 = vsel %vm1672, %v1613, -inf
        %v1701 = vsel %vm1673, %v1614, -inf
        %v1702 = vsel %vm1674, %v1615, -inf
        %v1703 = vsel %vm1675, %v1616, -inf
        %v1704 = vsel %vm1672, %v1617, -inf
        %v1705 = vsel %vm1673, %v1618, -inf
        %v1706 = vsel %vm1674, %v1619, -inf
        %v1707 = vsel %vm1675, %v1620, -inf
        %v1708 = vsel %vm1672, %v1621, -inf
        %v1709 = vsel %vm1673, %v1622, -inf
        %v1710 = vsel %vm1674, %v1623, -inf
        %v1711 = vsel %vm1675, %v1624, -inf
        %v1712 = vsel %vm1672, %v1625, -inf
        %v1713 = vsel %vm1673, %v1626, -inf
        %v1714 = vsel %vm1674, %v1627, -inf
        %v1715 = vsel %vm1675, %v1628, -inf
        %v1716 = vsel %vm1672, %v1629, -inf
        %v1717 = vsel %vm1673, %v1630, -inf
        %v1718 = vsel %vm1674, %v1631, -inf
        %v1719 = vsel %vm1675, %v1632, -inf
        %v1720 = vsel %vm1672, %v1633, -inf
        %v1721 = vsel %vm1673, %v1634, -inf
        %v1722 = vsel %vm1674, %v1635, -inf
        %v1723 = vsel %vm1675, %v1636, -inf
        %v1724 = vsel %vm1672, %v1637, -inf
        %v1725 = vsel %vm1673, %v1638, -inf
        %v1726 = vsel %vm1674, %v1639, -inf
        %v1727 = vsel %vm1675, %v1640, -inf
        %v1728 = vsel %vm1672, %v1641, -inf
        %v1729 = vsel %vm1673, %v1642, -inf
        %v1730 = vsel %vm1674, %v1643, -inf
        %v1731 = vsel %vm1675, %v1644, -inf
        %v1732 = vsel %vm1672, %v1645, -inf
        %v1733 = vsel %vm1673, %v1646, -inf
        %v1734 = vsel %vm1674, %v1647, -inf
        %v1735 = vsel %vm1675, %v1648, -inf
        %v1736 = vsel %vm1672, %v1649, -inf
        %v1737 = vsel %vm1673, %v1650, -inf
        %v1738 = vsel %vm1674, %v1651, -inf
        %v1739 = vsel %vm1675, %v1652, -inf
        %v1740 = vld [vmem:[#allocation2] sm:$0xff]
        %v1741 = vld [vmem:[#allocation2 + $0x8] sm:$0xff]
        %v1742 = vld [vmem:[#allocation2 + $0x10] sm:$0xff]
        %v1743 = vld [vmem:[#allocation2 + $0x18] sm:$0xff]
        %v1744 = vld [vmem:[#allocation2 + $0x20] sm:$0xff]
        %v1745 = vld [vmem:[#allocation2 + $0x28] sm:$0xff]
        %v1746 = vld [vmem:[#allocation2 + $0x30] sm:$0xff]
        %v1747 = vld [vmem:[#allocation2 + $0x38] sm:$0xff]
        %v1748 = vld [vmem:[#allocation2 + $0x40] sm:$0xff]
        %v1749 = vld [vmem:[#allocation2 + $0x48] sm:$0xff]
        %v1750 = vld [vmem:[#allocation2 + $0x50] sm:$0xff]
        %v1751 = vld [vmem:[#allocation2 + $0x58] sm:$0xff]
        %v1752 = vld [vmem:[#allocation2 + $0x60] sm:$0xff]
        %v1753 = vld [vmem:[#allocation2 + $0x68] sm:$0xff]
        %v1754 = vld [vmem:[#allocation2 + $0x70] sm:$0xff]
        %v1755 = vld [vmem:[#allocation2 + $0x78] sm:$0xff]
        %v1756 = vmax.f32 %v1676, %v1677
        %v1757 = vmax.f32 %v1756, %v1678
        %v1758 = vmax.f32 %v1757, %v1679
        %1759 = vmax.xlane.f32.xlu0 %v1758
        %v1760 = vpop.xlane.xlu0 %1759
        %v1761 = vmax.f32 %v1680, %v1681
        %v1762 = vmax.f32 %v1761, %v1682
        %v1763 = vmax.f32 %v1762, %v1683
        %1764 = vmax.xlane.f32.xlu0 %v1763
        %v1765 = vpop.xlane.xlu0 %1764
        %v1766 = vmax.f32 %v1684, %v1685
        %v1767 = vmax.f32 %v1766, %v1686
        %v1768 = vmax.f32 %v1767, %v1687
        %1769 = vmax.xlane.f32.xlu0 %v1768
        %v1770 = vpop.xlane.xlu0 %1769
        %v1771 = vmax.f32 %v1688, %v1689
        %v1772 = vmax.f32 %v1771, %v1690
        %v1773 = vmax.f32 %v1772, %v1691
        %1774 = vmax.xlane.f32.xlu0 %v1773
        %v1775 = vpop.xlane.xlu0 %1774
        %v1776 = vmax.f32 %v1692, %v1693
        %v1777 = vmax.f32 %v1776, %v1694
        %v1778 = vmax.f32 %v1777, %v1695
        %1779 = vmax.xlane.f32.xlu0 %v1778
        %v1780 = vpop.xlane.xlu0 %1779
        %v1781 = vmax.f32 %v1696, %v1697
        %v1782 = vmax.f32 %v1781, %v1698
        %v1783 = vmax.f32 %v1782, %v1699
        %1784 = vmax.xlane.f32.xlu0 %v1783
        %v1785 = vpop.xlane.xlu0 %1784
        %v1786 = vmax.f32 %v1700, %v1701
        %v1787 = vmax.f32 %v1786, %v1702
        %v1788 = vmax.f32 %v1787, %v1703
        %1789 = vmax.xlane.f32.xlu0 %v1788
        %v1790 = vpop.xlane.xlu0 %1789
        %v1791 = vmax.f32 %v1704, %v1705
        %v1792 = vmax.f32 %v1791, %v1706
        %v1793 = vmax.f32 %v1792, %v1707
        %1794 = vmax.xlane.f32.xlu0 %v1793
        %v1795 = vpop.xlane.xlu0 %1794
        %v1796 = vmax.f32 %v1708, %v1709
        %v1797 = vmax.f32 %v1796, %v1710
        %v1798 = vmax.f32 %v1797, %v1711
        %1799 = vmax.xlane.f32.xlu0 %v1798
        %v1800 = vpop.xlane.xlu0 %1799
        %v1801 = vmax.f32 %v1712, %v1713
        %v1802 = vmax.f32 %v1801, %v1714
        %v1803 = vmax.f32 %v1802, %v1715
        %1804 = vmax.xlane.f32.xlu0 %v1803
        %v1805 = vpop.xlane.xlu0 %1804
        %v1806 = vmax.f32 %v1716, %v1717
        %v1807 = vmax.f32 %v1806, %v1718
        %v1808 = vmax.f32 %v1807, %v1719
        %1809 = vmax.xlane.f32.xlu0 %v1808
        %v1810 = vpop.xlane.xlu0 %1809
        %v1811 = vmax.f32 %v1720, %v1721
        %v1812 = vmax.f32 %v1811, %v1722
        %v1813 = vmax.f32 %v1812, %v1723
        %1814 = vmax.xlane.f32.xlu0 %v1813
        %v1815 = vpop.xlane.xlu0 %1814
        %v1816 = vmax.f32 %v1724, %v1725
        %v1817 = vmax.f32 %v1816, %v1726
        %v1818 = vmax.f32 %v1817, %v1727
        %1819 = vmax.xlane.f32.xlu0 %v1818
        %v1820 = vpop.xlane.xlu0 %1819
        %v1821 = vmax.f32 %v1728, %v1729
        %v1822 = vmax.f32 %v1821, %v1730
        %v1823 = vmax.f32 %v1822, %v1731
        %1824 = vmax.xlane.f32.xlu0 %v1823
        %v1825 = vpop.xlane.xlu0 %1824
        %v1826 = vmax.f32 %v1732, %v1733
        %v1827 = vmax.f32 %v1826, %v1734
        %v1828 = vmax.f32 %v1827, %v1735
        %1829 = vmax.xlane.f32.xlu0 %v1828
        %v1830 = vpop.xlane.xlu0 %1829
        %v1831 = vmax.f32 %v1736, %v1737
        %v1832 = vmax.f32 %v1831, %v1738
        %v1833 = vmax.f32 %v1832, %v1739
        %1834 = vmax.xlane.f32.xlu0 %v1833
        %v1835 = vpop.xlane.xlu0 %1834
        %v1836 = vmax.f32 %v1740, %v1760
        %v1837 = vmax.f32 %v1741, %v1765
        %v1838 = vmax.f32 %v1742, %v1770
        %v1839 = vmax.f32 %v1743, %v1775
        %v1840 = vmax.f32 %v1744, %v1780
        %v1841 = vmax.f32 %v1745, %v1785
        %v1842 = vmax.f32 %v1746, %v1790
        %v1843 = vmax.f32 %v1747, %v1795
        %v1844 = vmax.f32 %v1748, %v1800
        %v1845 = vmax.f32 %v1749, %v1805
        %v1846 = vmax.f32 %v1750, %v1810
        %v1847 = vmax.f32 %v1751, %v1815
        %v1848 = vmax.f32 %v1752, %v1820
        %v1849 = vmax.f32 %v1753, %v1825
        %v1850 = vmax.f32 %v1754, %v1830
        %v1851 = vmax.f32 %v1755, %v1835
        %vm1852 = vcmask 7168
        %1853 = vst.msk [vmem:[#allocation2] sm:$0xff] %vm1852, %v1836
        %1854 = vst.msk [vmem:[#allocation2 + $0x8] sm:$0xff] %vm1852, %v1837
        %1855 = vst.msk [vmem:[#allocation2 + $0x10] sm:$0xff] %vm1852, %v1838
        %1856 = vst.msk [vmem:[#allocation2 + $0x18] sm:$0xff] %vm1852, %v1839
        %1857 = vst.msk [vmem:[#allocation2 + $0x20] sm:$0xff] %vm1852, %v1840
        %1858 = vst.msk [vmem:[#allocation2 + $0x28] sm:$0xff] %vm1852, %v1841
        %1859 = vst.msk [vmem:[#allocation2 + $0x30] sm:$0xff] %vm1852, %v1842
        %1860 = vst.msk [vmem:[#allocation2 + $0x38] sm:$0xff] %vm1852, %v1843
        %1861 = vst.msk [vmem:[#allocation2 + $0x40] sm:$0xff] %vm1852, %v1844
        %1862 = vst.msk [vmem:[#allocation2 + $0x48] sm:$0xff] %vm1852, %v1845
        %1863 = vst.msk [vmem:[#allocation2 + $0x50] sm:$0xff] %vm1852, %v1846
        %1864 = vst.msk [vmem:[#allocation2 + $0x58] sm:$0xff] %vm1852, %v1847
        %1865 = vst.msk [vmem:[#allocation2 + $0x60] sm:$0xff] %vm1852, %v1848
        %1866 = vst.msk [vmem:[#allocation2 + $0x68] sm:$0xff] %vm1852, %v1849
        %1867 = vst.msk [vmem:[#allocation2 + $0x70] sm:$0xff] %vm1852, %v1850
        %1868 = vst.msk [vmem:[#allocation2 + $0x78] sm:$0xff] %vm1852, %v1851
      $region40: #{pointnet_seg_impulse_v1.1} parent=31 // pred_fallthru
        _
      %p1869 = scmp.eq.s32.totalorder %s19, 2
      // Predicated region
      $region41: #{pointnet_seg_impulse_v1.1} parent=31 // pred_check
        %p1870 = pneg %p1869
      $region42: #{pointnet_seg_impulse_v1.1} parent=31 // pred_check_branch
        %1872 = sbr.rel (%p1870) target = $region44
      $region43: #{pointnet_seg_impulse_v1.1} parent=31 // pred_region
        %v1873 = vld [vmem:[#allocation2] sm:$0xff]
        %v1874 = vld [vmem:[#allocation2 + $0x8] sm:$0xff]
        %v1875 = vld [vmem:[#allocation2 + $0x10] sm:$0xff]
        %v1876 = vld [vmem:[#allocation2 + $0x18] sm:$0xff]
        %v1877 = vld [vmem:[#allocation2 + $0x20] sm:$0xff]
        %v1878 = vld [vmem:[#allocation2 + $0x28] sm:$0xff]
        %v1879 = vld [vmem:[#allocation2 + $0x30] sm:$0xff]
        %v1880 = vld [vmem:[#allocation2 + $0x38] sm:$0xff]
        %v1881 = vld [vmem:[#allocation2 + $0x40] sm:$0xff]
        %v1882 = vld [vmem:[#allocation2 + $0x48] sm:$0xff]
        %v1883 = vld [vmem:[#allocation2 + $0x50] sm:$0xff]
        %v1884 = vld [vmem:[#allocation2 + $0x58] sm:$0xff]
        %v1885 = vld [vmem:[#allocation2 + $0x60] sm:$0xff]
        %v1886 = vld [vmem:[#allocation2 + $0x68] sm:$0xff]
        %v1887 = vld [vmem:[#allocation2 + $0x70] sm:$0xff]
        %v1888 = vld [vmem:[#allocation2 + $0x78] sm:$0xff]
        %v1889 = vld [vmem:[%s1 + $0xf0] sm:$0xff]
        %v1890 = vld [vmem:[%s1 + $0xf8] sm:$0xff]
        %v1891 = vld [vmem:[%s1 + $0x100] sm:$0xff]
        %v1892 = vld [vmem:[%s1 + $0x108] sm:$0xff]
        %v1893 = vld [vmem:[%s1 + $0x110] sm:$0xff]
        %v1894 = vld [vmem:[%s1 + $0x118] sm:$0xff]
        %v1895 = vld [vmem:[%s1 + $0x120] sm:$0xff]
        %v1896 = vld [vmem:[%s1 + $0x128] sm:$0xff]
        %v1897 = vld [vmem:[%s2 + $0xf0] sm:$0xff]
        %v1898 = vld [vmem:[%s2 + $0xf8] sm:$0xff]
        %v1899 = vld [vmem:[%s2 + $0x100] sm:$0xff]
        %v1900 = vld [vmem:[%s2 + $0x108] sm:$0xff]
        %v1901 = vld [vmem:[%s2 + $0x110] sm:$0xff]
        %v1902 = vld [vmem:[%s2 + $0x118] sm:$0xff]
        %v1903 = vld [vmem:[%s2 + $0x120] sm:$0xff]
        %v1904 = vld [vmem:[%s2 + $0x128] sm:$0xff]
        %1905 = vmatprep.subr.mxu0 0.0
        %1906 = vmatpush1.msra.mxu0 %v1888
        %1907 = vmatprep.subr.mxu0 0.0
        %1908 = vmatpush1.msra.mxu0 %v1887
        %1909 = vmatprep.subr.mxu0 0.0
        %1910 = vmatpush1.msra.mxu0 %v1886
        %1911 = vmatprep.subr.mxu0 0.0
        %1912 = vmatpush1.msra.mxu0 %v1885
        %1913 = vmatprep.subr.mxu0 0.0
        %1914 = vmatpush1.msra.mxu0 %v1884
        %1915 = vmatprep.subr.mxu0 0.0
        %1916 = vmatpush1.msra.mxu0 %v1883
        %1917 = vmatprep.subr.mxu0 0.0
        %1918 = vmatpush1.msra.mxu0 %v1882
        %1919 = vmatprep.subr.mxu0 0.0
        %1920 = vmatpush1.msra.mxu0 %v1881
        %1921 = vmatprep.subr.mxu0 0.0
        %1922 = vmatpush1.msra.mxu0 %v1880
        %1923 = vmatprep.subr.mxu0 0.0
        %1924 = vmatpush1.msra.mxu0 %v1879
        %1925 = vmatprep.subr.mxu0 0.0
        %1926 = vmatpush1.msra.mxu0 %v1878
        %1927 = vmatprep.subr.mxu0 0.0
        %1928 = vmatpush1.msra.mxu0 %v1877
        %1929 = vmatprep.subr.mxu0 0.0
        %1930 = vmatpush1.msra.mxu0 %v1876
        %1931 = vmatprep.subr.mxu0 0.0
        %1932 = vmatpush1.msra.mxu0 %v1875
        %1933 = vmatprep.subr.mxu0 0.0
        %1934 = vmatpush1.msra.mxu0 %v1874
        %1935 = vmatprep.subr.mxu0 0.0
        %1936 = vmatpush1.msra.mxu0 %v1873
        %1937 = vmatprep.subr.mxu0 0.0
        %1938 = vmatpush2.msra.mxu0 0.0
        %1939 = vmatprep.subr.mxu0 0.0
        %1940 = vmatpush2.msra.mxu0 0.0
        %1941 = vmatprep.subr.mxu0 0.0
        %1942 = vmatpush2.msra.mxu0 0.0
        %1943 = vmatprep.subr.mxu0 0.0
        %1944 = vmatpush2.msra.mxu0 0.0
        %1945 = vmatprep.subr.mxu0 0.0
        %1946 = vmatpush2.msra.mxu0 0.0
        %1947 = vmatprep.subr.mxu0 0.0
        %1948 = vmatpush2.msra.mxu0 0.0
        %1949 = vmatprep.subr.mxu0 0.0
        %1950 = vmatpush2.msra.mxu0 0.0
        %1951 = vmatprep.subr.mxu0 0.0
        %1952 = vmatpush2.msra.mxu0 0.0
        %1953 = vmatprep.subr.mxu0 0.0
        %1954 = vmatpush2.msra.mxu0 0.0
        %1955 = vmatprep.subr.mxu0 0.0
        %1956 = vmatpush2.msra.mxu0 0.0
        %1957 = vmatprep.subr.mxu0 0.0
        %1958 = vmatpush2.msra.mxu0 0.0
        %1959 = vmatprep.subr.mxu0 0.0
        %1960 = vmatpush2.msra.mxu0 0.0
        %1961 = vmatprep.subr.mxu0 0.0
        %1962 = vmatpush2.msra.mxu0 0.0
        %1963 = vmatprep.subr.mxu0 0.0
        %1964 = vmatpush2.msra.mxu0 0.0
        %1965 = vmatprep.subr.mxu0 0.0
        %1966 = vmatpush2.msra.mxu0 0.0
        %1967 = vmatprep.subr.mxu0 0.0
        %1968 = vmatpush2.msra.mxu0 0.0
        %1969 = vmatprep.mubr.f32.mxu0 0.0
        %1970 = vmatmul.mubr.f32.gmra.mxu0 %v1889
        %v1971 = vpop.f32.mrf.mxu0
        %v1972 = vadd.f32 %v1897, %v1971
        %v1973 = vpop.f32.mrf.mxu0
        %1974 = vmatprep.mubr.f32.mxu0 0.0
        %1975 = vmatmul.mubr.f32.gmra.mxu0 %v1890
        %v1976 = vpop.f32.mrf.mxu0
        %v1977 = vadd.f32 %v1898, %v1976
        %v1978 = vpop.f32.mrf.mxu0
        %1979 = vmatprep.mubr.f32.mxu0 0.0
        %1980 = vmatmul.mubr.f32.gmra.mxu0 %v1891
        %v1981 = vpop.f32.mrf.mxu0
        %v1982 = vadd.f32 %v1899, %v1981
        %v1983 = vpop.f32.mrf.mxu0
        %1984 = vmatprep.mubr.f32.mxu0 0.0
        %1985 = vmatmul.mubr.f32.gmra.mxu0 %v1892
        %v1986 = vpop.f32.mrf.mxu0
        %v1987 = vadd.f32 %v1900, %v1986
        %v1988 = vpop.f32.mrf.mxu0
        %1989 = vmatprep.mubr.f32.mxu0 0.0
        %1990 = vmatmul.mubr.f32.gmra.mxu0 %v1893
        %v1991 = vpop.f32.mrf.mxu0
        %v1992 = vadd.f32 %v1901, %v1991
        %v1993 = vpop.f32.mrf.mxu0
        %1994 = vmatprep.mubr.f32.mxu0 0.0
        %1995 = vmatmul.mubr.f32.gmra.mxu0 %v1894
        %v1996 = vpop.f32.mrf.mxu0
        %v1997 = vadd.f32 %v1902, %v1996
        %v1998 = vpop.f32.mrf.mxu0
        %1999 = vmatprep.mubr.f32.mxu0 0.0
        %2000 = vmatmul.mubr.f32.gmra.mxu0 %v1895
        %v2001 = vpop.f32.mrf.mxu0
        %v2002 = vadd.f32 %v1903, %v2001
        %v2003 = vpop.f32.mrf.mxu0
        %2004 = vmatprep.mubr.f32.mxu0 0.0
        %2005 = vmatmul.mubr.f32.gmra.mxu0 %v1896
        %v2006 = vpop.f32.mrf.mxu0
        %v2007 = vadd.f32 %v1904, %v2006
        %v2008 = vpop.f32.mrf.mxu0
        %2009 = vdwg.mxu0
        %v2010 = vmax.f32 %v1972, 0.0
        %v2011 = vmax.f32 %v1977, 0.0
        %v2012 = vmax.f32 %v1982, 0.0
        %v2013 = vmax.f32 %v1987, 0.0
        %v2014 = vmax.f32 %v1992, 0.0
        %v2015 = vmax.f32 %v1997, 0.0
        %v2016 = vmax.f32 %v2002, 0.0
        %v2017 = vmax.f32 %v2007, 0.0
        %v2018 = vld [vmem:[%s1 + $0x130] sm:$0xff]
        %v2019 = vld [vmem:[%s1 + $0x138] sm:$0xff]
        %v2020 = vld [vmem:[%s1 + $0x140] sm:$0xff]
        %v2021 = vld [vmem:[%s1 + $0x148] sm:$0xff]
        %v2022 = vld [vmem:[%s2 + $0x130] sm:$0xff]
        %v2023 = vld [vmem:[%s2 + $0x138] sm:$0xff]
        %v2024 = vld [vmem:[%s2 + $0x140] sm:$0xff]
        %v2025 = vld [vmem:[%s2 + $0x148] sm:$0xff]
        %vm2026 = vcmask 523264
        %v2028 = vsel %vm2026, %v2018, 0
        %v2031 = vsel %vm2026, %v2019, 0
        %v2034 = vsel %vm2026, %v2020, 0
        %v2037 = vsel %vm2026, %v2021, 0
        %2039 = vmatprep.subr.mxu0 0.0
        %2040 = vmatpush1.msra.mxu0 0.0
        %2041 = vmatprep.subr.mxu0 0.0
        %2042 = vmatpush1.msra.mxu0 0.0
        %2043 = vmatprep.subr.mxu0 0.0
        %2044 = vmatpush1.msra.mxu0 0.0
        %2045 = vmatprep.subr.mxu0 0.0
        %2046 = vmatpush1.msra.mxu0 0.0
        %2047 = vmatprep.subr.mxu0 0.0
        %2048 = vmatpush1.msra.mxu0 0.0
        %2049 = vmatprep.subr.mxu0 0.0
        %2050 = vmatpush1.msra.mxu0 0.0
        %2051 = vmatprep.subr.mxu0 0.0
        %2052 = vmatpush1.msra.mxu0 0.0
        %2053 = vmatprep.subr.mxu0 0.0
        %2054 = vmatpush1.msra.mxu0 0.0
        %2055 = vmatprep.subr.mxu0 0.0
        %2056 = vmatpush1.msra.mxu0 %v2017
        %2057 = vmatprep.subr.mxu0 0.0
        %2058 = vmatpush1.msra.mxu0 %v2016
        %2059 = vmatprep.subr.mxu0 0.0
        %2060 = vmatpush1.msra.mxu0 %v2015
        %2061 = vmatprep.subr.mxu0 0.0
        %2062 = vmatpush1.msra.mxu0 %v2014
        %2063 = vmatprep.subr.mxu0 0.0
        %2064 = vmatpush1.msra.mxu0 %v2013
        %2065 = vmatprep.subr.mxu0 0.0
        %2066 = vmatpush1.msra.mxu0 %v2012
        %2067 = vmatprep.subr.mxu0 0.0
        %2068 = vmatpush1.msra.mxu0 %v2011
        %2069 = vmatprep.subr.mxu0 0.0
        %2070 = vmatpush1.msra.mxu0 %v2010
        %2071 = vmatprep.subr.mxu0 0.0
        %2072 = vmatpush2.msra.mxu0 0.0
        %2073 = vmatprep.subr.mxu0 0.0
        %2074 = vmatpush2.msra.mxu0 0.0
        %2075 = vmatprep.subr.mxu0 0.0
        %2076 = vmatpush2.msra.mxu0 0.0
        %2077 = vmatprep.subr.mxu0 0.0
        %2078 = vmatpush2.msra.mxu0 0.0
        %2079 = vmatprep.subr.mxu0 0.0
        %2080 = vmatpush2.msra.mxu0 0.0
        %2081 = vmatprep.subr.mxu0 0.0
        %2082 = vmatpush2.msra.mxu0 0.0
        %2083 = vmatprep.subr.mxu0 0.0
        %2084 = vmatpush2.msra.mxu0 0.0
        %2085 = vmatprep.subr.mxu0 0.0
        %2086 = vmatpush2.msra.mxu0 0.0
        %2087 = vmatprep.subr.mxu0 0.0
        %2088 = vmatpush2.msra.mxu0 0.0
        %2089 = vmatprep.subr.mxu0 0.0
        %2090 = vmatpush2.msra.mxu0 0.0
        %2091 = vmatprep.subr.mxu0 0.0
        %2092 = vmatpush2.msra.mxu0 0.0
        %2093 = vmatprep.subr.mxu0 0.0
        %2094 = vmatpush2.msra.mxu0 0.0
        %2095 = vmatprep.subr.mxu0 0.0
        %2096 = vmatpush2.msra.mxu0 0.0
        %2097 = vmatprep.subr.mxu0 0.0
        %2098 = vmatpush2.msra.mxu0 0.0
        %2099 = vmatprep.subr.mxu0 0.0
        %2100 = vmatpush2.msra.mxu0 0.0
        %2101 = vmatprep.subr.mxu0 0.0
        %2102 = vmatpush2.msra.mxu0 0.0
        %2103 = vmatprep.mubr.f32.mxu0 0.0
        %2104 = vmatmul.mubr.f32.gmra.mxu0 %v2028
        %v2105 = vpop.f32.mrf.mxu0
        %v2106 = vadd.f32 %v2022, %v2105
        %v2107 = vpop.f32.mrf.mxu0
        %2108 = vmatprep.mubr.f32.mxu0 0.0
        %2109 = vmatmul.mubr.f32.gmra.mxu0 %v2031
        %v2110 = vpop.f32.mrf.mxu0
        %v2111 = vadd.f32 %v2023, %v2110
        %v2112 = vpop.f32.mrf.mxu0
        %2113 = vmatprep.mubr.f32.mxu0 0.0
        %2114 = vmatmul.mubr.f32.gmra.mxu0 %v2034
        %v2115 = vpop.f32.mrf.mxu0
        %v2116 = vadd.f32 %v2024, %v2115
        %v2117 = vpop.f32.mrf.mxu0
        %2118 = vmatprep.mubr.f32.mxu0 0.0
        %2119 = vmatmul.mubr.f32.gmra.mxu0 %v2037
        %v2120 = vpop.f32.mrf.mxu0
        %v2121 = vadd.f32 %v2025, %v2120
        %v2122 = vpop.f32.mrf.mxu0
        %2123 = vdwg.mxu0
        %v2124 = vmax.f32 %v2106, 0.0
        %v2125 = vmax.f32 %v2111, 0.0
        %v2126 = vmax.f32 %v2116, 0.0
        %v2127 = vmax.f32 %v2121, 0.0
        %v2128 = vld [vmem:[%s1 + $0x150] sm:$0xff]
        %v2129 = vld [vmem:[%s1 + $0x158] sm:$0xff]
        %v2130 = vld [vmem:[%s1 + $0x160] sm:$0xff]
        %v2131 = vld [vmem:[%s1 + $0x168] sm:$0xff]
        %v2132 = vld [vmem:[%s2 + $0x150] sm:$0xff]
        %v2133 = vld [vmem:[%s2 + $0x158] sm:$0xff]
        %v2134 = vld [vmem:[%s2 + $0x160] sm:$0xff]
        %v2135 = vld [vmem:[%s2 + $0x168] sm:$0xff]
        %vm2136 = vcmask 261120
        %v2138 = vsel %vm2136, %v2128, 0
        %v2141 = vsel %vm2136, %v2129, 0
        %v2144 = vsel %vm2136, %v2130, 0
        %v2147 = vsel %vm2136, %v2131, 0
        %2149 = vmatprep.subr.mxu0 0.0
        %2150 = vmatpush1.msra.mxu0 0.0
        %2151 = vmatprep.subr.mxu0 0.0
        %2152 = vmatpush1.msra.mxu0 0.0
        %2153 = vmatprep.subr.mxu0 0.0
        %2154 = vmatpush1.msra.mxu0 0.0
        %2155 = vmatprep.subr.mxu0 0.0
        %2156 = vmatpush1.msra.mxu0 0.0
        %2157 = vmatprep.subr.mxu0 0.0
        %2158 = vmatpush1.msra.mxu0 0.0
        %2159 = vmatprep.subr.mxu0 0.0
        %2160 = vmatpush1.msra.mxu0 0.0
        %2161 = vmatprep.subr.mxu0 0.0
        %2162 = vmatpush1.msra.mxu0 0.0
        %2163 = vmatprep.subr.mxu0 0.0
        %2164 = vmatpush1.msra.mxu0 0.0
        %2165 = vmatprep.subr.mxu0 0.0
        %2166 = vmatpush1.msra.mxu0 0.0
        %2167 = vmatprep.subr.mxu0 0.0
        %2168 = vmatpush1.msra.mxu0 0.0
        %2169 = vmatprep.subr.mxu0 0.0
        %2170 = vmatpush1.msra.mxu0 0.0
        %2171 = vmatprep.subr.mxu0 0.0
        %2172 = vmatpush1.msra.mxu0 0.0
        %2173 = vmatprep.subr.mxu0 0.0
        %2174 = vmatpush1.msra.mxu0 %v2127
        %2175 = vmatprep.subr.mxu0 0.0
        %2176 = vmatpush1.msra.mxu0 %v2126
        %2177 = vmatprep.subr.mxu0 0.0
        %2178 = vmatpush1.msra.mxu0 %v2125
        %2179 = vmatprep.subr.mxu0 0.0
        %2180 = vmatpush1.msra.mxu0 %v2124
        %2181 = vmatprep.subr.mxu0 0.0
        %2182 = vmatpush2.msra.mxu0 0.0
        %2183 = vmatprep.subr.mxu0 0.0
        %2184 = vmatpush2.msra.mxu0 0.0
        %2185 = vmatprep.subr.mxu0 0.0
        %2186 = vmatpush2.msra.mxu0 0.0
        %2187 = vmatprep.subr.mxu0 0.0
        %2188 = vmatpush2.msra.mxu0 0.0
        %2189 = vmatprep.subr.mxu0 0.0
        %2190 = vmatpush2.msra.mxu0 0.0
        %2191 = vmatprep.subr.mxu0 0.0
        %2192 = vmatpush2.msra.mxu0 0.0
        %2193 = vmatprep.subr.mxu0 0.0
        %2194 = vmatpush2.msra.mxu0 0.0
        %2195 = vmatprep.subr.mxu0 0.0
        %2196 = vmatpush2.msra.mxu0 0.0
        %2197 = vmatprep.subr.mxu0 0.0
        %2198 = vmatpush2.msra.mxu0 0.0
        %2199 = vmatprep.subr.mxu0 0.0
        %2200 = vmatpush2.msra.mxu0 0.0
        %2201 = vmatprep.subr.mxu0 0.0
        %2202 = vmatpush2.msra.mxu0 0.0
        %2203 = vmatprep.subr.mxu0 0.0
        %2204 = vmatpush2.msra.mxu0 0.0
        %2205 = vmatprep.subr.mxu0 0.0
        %2206 = vmatpush2.msra.mxu0 0.0
        %2207 = vmatprep.subr.mxu0 0.0
        %2208 = vmatpush2.msra.mxu0 0.0
        %2209 = vmatprep.subr.mxu0 0.0
        %2210 = vmatpush2.msra.mxu0 0.0
        %2211 = vmatprep.subr.mxu0 0.0
        %2212 = vmatpush2.msra.mxu0 0.0
        %2213 = vmatprep.mubr.f32.mxu0 0.0
        %2214 = vmatmul.mubr.f32.gmra.mxu0 %v2138
        %v2215 = vpop.f32.mrf.mxu0
        %v2216 = vadd.f32 %v2132, %v2215
        %v2217 = vpop.f32.mrf.mxu0
        %2218 = vmatprep.mubr.f32.mxu0 0.0
        %2219 = vmatmul.mubr.f32.gmra.mxu0 %v2141
        %v2220 = vpop.f32.mrf.mxu0
        %v2221 = vadd.f32 %v2133, %v2220
        %v2222 = vpop.f32.mrf.mxu0
        %2223 = vmatprep.mubr.f32.mxu0 0.0
        %2224 = vmatmul.mubr.f32.gmra.mxu0 %v2144
        %v2225 = vpop.f32.mrf.mxu0
        %v2226 = vadd.f32 %v2134, %v2225
        %v2227 = vpop.f32.mrf.mxu0
        %2228 = vmatprep.mubr.f32.mxu0 0.0
        %2229 = vmatmul.mubr.f32.gmra.mxu0 %v2147
        %v2230 = vpop.f32.mrf.mxu0
        %v2231 = vadd.f32 %v2135, %v2230
        %v2232 = vpop.f32.mrf.mxu0
        %2233 = vdwg.mxu0
        %vm2234 = vcmask 7168
        %2235 = vst.msk [vmem:[#allocation3] sm:$0xff] %vm2234, %v2216
        %2236 = vst.msk [vmem:[#allocation3 + $0x8] sm:$0xff] %vm2234, %v2221
        %2237 = vst.msk [vmem:[#allocation3 + $0x10] sm:$0xff] %vm2234, %v2226
        %2238 = vst.msk [vmem:[#allocation3 + $0x18] sm:$0xff] %vm2234, %v2231
      $region44: #{pointnet_seg_impulse_v1.1} parent=31 // pred_fallthru
        _
      %p2239 = scmp.ge.s32.totalorder %s19, 2
      // Predicated region
      $region45: #{pointnet_seg_impulse_v1.1} parent=31 // pred_check
        %p2240 = pneg %p2239
      $region46: #{pointnet_seg_impulse_v1.1} parent=31 // pred_check_branch
        %2242 = sbr.rel (%p2240) target = $region48
      $region47: #{pointnet_seg_impulse_v1.1} parent=31 // pred_region
        %v2243 = vld [vmem:[%s1] sm:$0xff]
        %v2244 = vld [vmem:[%s1 + $0x8] sm:$0xff]
        %v2245 = vld [vmem:[%s2] sm:$0xff]
        %v2246 = vld [vmem:[%s2 + $0x8] sm:$0xff]
        %2248 = vset.pattern.permute.xlu0 0
        %2249 = vperm.xlu0 %2248, %v2245
        %v2250 = vpop.permute.xlu0 %2249
        %2253 = vset.pattern.permute.xlu0 0
        %2254 = vperm.xlu0 %2253, %v2246
        %v2255 = vpop.permute.xlu0 %2254
        %v2259 = vcombine.high %v309, %v309
        %v2260 = vcombine.high %v310, %v310
        %vm2261 = vcmask 23552
        %v2263 = vsel %vm2261, %v2243, 0
        %v2266 = vsel %vm2261, %v2244, 0
        %vm2268 = vcmask 1042432
        %v2269 = vsel %vm2268, %v309, 0
        %v2271 = vsel %vm2268, %v2259, 0
        %v2273 = vsel %vm2268, %v310, 0
        %v2275 = vsel %vm2268, %v2260, 0
        %2277 = vmatprep.subr.mxu0 0.0
        %2278 = vmatpush1.msra.mxu0 0.0
        %2279 = vmatprep.subr.mxu0 0.0
        %2280 = vmatpush1.msra.mxu0 0.0
        %2281 = vmatprep.subr.mxu0 0.0
        %2282 = vmatpush1.msra.mxu0 0.0
        %2283 = vmatprep.subr.mxu0 0.0
        %2284 = vmatpush1.msra.mxu0 0.0
        %2285 = vmatprep.subr.mxu0 0.0
        %2286 = vmatpush1.msra.mxu0 0.0
        %2287 = vmatprep.subr.mxu0 0.0
        %2288 = vmatpush1.msra.mxu0 0.0
        %2289 = vmatprep.subr.mxu0 0.0
        %2290 = vmatpush1.msra.mxu0 0.0
        %2291 = vmatprep.subr.mxu0 0.0
        %2292 = vmatpush1.msra.mxu0 0.0
        %2293 = vmatprep.subr.mxu0 0.0
        %2294 = vmatpush1.msra.mxu0 0.0
        %2295 = vmatprep.subr.mxu0 0.0
        %2296 = vmatpush1.msra.mxu0 0.0
        %2297 = vmatprep.subr.mxu0 0.0
        %2298 = vmatpush1.msra.mxu0 0.0
        %2299 = vmatprep.subr.mxu0 0.0
        %2300 = vmatpush1.msra.mxu0 0.0
        %2301 = vmatprep.subr.mxu0 0.0
        %2302 = vmatpush1.msra.mxu0 0.0
        %2303 = vmatprep.subr.mxu0 0.0
        %2304 = vmatpush1.msra.mxu0 0.0
        %2305 = vmatprep.subr.mxu0 0.0
        %2306 = vmatpush1.msra.mxu0 0.0
        %2307 = vmatprep.subr.mxu0 %v2271
        %2308 = vmatpush1.msra.mxu0 %v2269
        %2309 = vmatprep.subr.mxu0 0.0
        %2310 = vmatpush2.msra.mxu0 0.0
        %2311 = vmatprep.subr.mxu0 0.0
        %2312 = vmatpush2.msra.mxu0 0.0
        %2313 = vmatprep.subr.mxu0 0.0
        %2314 = vmatpush2.msra.mxu0 0.0
        %2315 = vmatprep.subr.mxu0 0.0
        %2316 = vmatpush2.msra.mxu0 0.0
        %2317 = vmatprep.subr.mxu0 0.0
        %2318 = vmatpush2.msra.mxu0 0.0
        %2319 = vmatprep.subr.mxu0 0.0
        %2320 = vmatpush2.msra.mxu0 0.0
        %2321 = vmatprep.subr.mxu0 0.0
        %2322 = vmatpush2.msra.mxu0 0.0
        %2323 = vmatprep.subr.mxu0 0.0
        %2324 = vmatpush2.msra.mxu0 0.0
        %2325 = vmatprep.subr.mxu0 0.0
        %2326 = vmatpush2.msra.mxu0 0.0
        %2327 = vmatprep.subr.mxu0 0.0
        %2328 = vmatpush2.msra.mxu0 0.0
        %2329 = vmatprep.subr.mxu0 0.0
        %2330 = vmatpush2.msra.mxu0 0.0
        %2331 = vmatprep.subr.mxu0 0.0
        %2332 = vmatpush2.msra.mxu0 0.0
        %2333 = vmatprep.subr.mxu0 0.0
        %2334 = vmatpush2.msra.mxu0 0.0
        %2335 = vmatprep.subr.mxu0 0.0
        %2336 = vmatpush2.msra.mxu0 0.0
        %2337 = vmatprep.subr.mxu0 0.0
        %2338 = vmatpush2.msra.mxu0 0.0
        %2339 = vmatprep.subr.mxu0 0.0
        %2340 = vmatpush2.msra.mxu0 0.0
        %2341 = vmatprep.mubr.f32.mxu0 0.0
        %2342 = vmatmul.mubr.f32.gmra.mxu0 %v2263
        %v2343 = vpop.f32.mrf.mxu0
        %v2344 = vadd.f32 %v2250, %v2343
        %v2345 = vpop.f32.mrf.mxu0
        %v2346 = vadd.f32 %v2250, %v2345
        %2347 = vmatprep.mubr.f32.mxu0 0.0
        %2348 = vmatmul.mubr.f32.gmra.mxu0 %v2266
        %v2349 = vpop.f32.mrf.mxu0
        %v2350 = vadd.f32 %v2255, %v2349
        %v2351 = vpop.f32.mrf.mxu0
        %v2352 = vadd.f32 %v2255, %v2351
        %2353 = vdwg.mxu0
        %2354 = vmatprep.subr.mxu0 0.0
        %2355 = vmatpush1.msra.mxu0 0.0
        %2356 = vmatprep.subr.mxu0 0.0
        %2357 = vmatpush1.msra.mxu0 0.0
        %2358 = vmatprep.subr.mxu0 0.0
        %2359 = vmatpush1.msra.mxu0 0.0
        %2360 = vmatprep.subr.mxu0 0.0
        %2361 = vmatpush1.msra.mxu0 0.0
        %2362 = vmatprep.subr.mxu0 0.0
        %2363 = vmatpush1.msra.mxu0 0.0
        %2364 = vmatprep.subr.mxu0 0.0
        %2365 = vmatpush1.msra.mxu0 0.0
        %2366 = vmatprep.subr.mxu0 0.0
        %2367 = vmatpush1.msra.mxu0 0.0
        %2368 = vmatprep.subr.mxu0 0.0
        %2369 = vmatpush1.msra.mxu0 0.0
        %2370 = vmatprep.subr.mxu0 0.0
        %2371 = vmatpush1.msra.mxu0 0.0
        %2372 = vmatprep.subr.mxu0 0.0
        %2373 = vmatpush1.msra.mxu0 0.0
        %2374 = vmatprep.subr.mxu0 0.0
        %2375 = vmatpush1.msra.mxu0 0.0
        %2376 = vmatprep.subr.mxu0 0.0
        %2377 = vmatpush1.msra.mxu0 0.0
        %2378 = vmatprep.subr.mxu0 0.0
        %2379 = vmatpush1.msra.mxu0 0.0
        %2380 = vmatprep.subr.mxu0 0.0
        %2381 = vmatpush1.msra.mxu0 0.0
        %2382 = vmatprep.subr.mxu0 0.0
        %2383 = vmatpush1.msra.mxu0 0.0
        %2384 = vmatprep.subr.mxu0 %v2275
        %2385 = vmatpush1.msra.mxu0 %v2273
        %2386 = vmatprep.subr.mxu0 0.0
        %2387 = vmatpush2.msra.mxu0 0.0
        %2388 = vmatprep.subr.mxu0 0.0
        %2389 = vmatpush2.msra.mxu0 0.0
        %2390 = vmatprep.subr.mxu0 0.0
        %2391 = vmatpush2.msra.mxu0 0.0
        %2392 = vmatprep.subr.mxu0 0.0
        %2393 = vmatpush2.msra.mxu0 0.0
        %2394 = vmatprep.subr.mxu0 0.0
        %2395 = vmatpush2.msra.mxu0 0.0
        %2396 = vmatprep.subr.mxu0 0.0
        %2397 = vmatpush2.msra.mxu0 0.0
        %2398 = vmatprep.subr.mxu0 0.0
        %2399 = vmatpush2.msra.mxu0 0.0
        %2400 = vmatprep.subr.mxu0 0.0
        %2401 = vmatpush2.msra.mxu0 0.0
        %2402 = vmatprep.subr.mxu0 0.0
        %2403 = vmatpush2.msra.mxu0 0.0
        %2404 = vmatprep.subr.mxu0 0.0
        %2405 = vmatpush2.msra.mxu0 0.0
        %2406 = vmatprep.subr.mxu0 0.0
        %2407 = vmatpush2.msra.mxu0 0.0
        %2408 = vmatprep.subr.mxu0 0.0
        %2409 = vmatpush2.msra.mxu0 0.0
        %2410 = vmatprep.subr.mxu0 0.0
        %2411 = vmatpush2.msra.mxu0 0.0
        %2412 = vmatprep.subr.mxu0 0.0
        %2413 = vmatpush2.msra.mxu0 0.0
        %2414 = vmatprep.subr.mxu0 0.0
        %2415 = vmatpush2.msra.mxu0 0.0
        %2416 = vmatprep.subr.mxu0 0.0
        %2417 = vmatpush2.msra.mxu0 0.0
        %2418 = vmatprep.mubr.f32.mxu0 0.0
        %2419 = vmatmul.mubr.f32.gmra.mxu0 %v2263
        %v2420 = vpop.f32.mrf.mxu0
        %v2421 = vadd.f32 %v2250, %v2420
        %v2422 = vpop.f32.mrf.mxu0
        %v2423 = vadd.f32 %v2250, %v2422
        %2424 = vmatprep.mubr.f32.mxu0 0.0
        %2425 = vmatmul.mubr.f32.gmra.mxu0 %v2266
        %v2426 = vpop.f32.mrf.mxu0
        %v2427 = vadd.f32 %v2255, %v2426
        %v2428 = vpop.f32.mrf.mxu0
        %v2429 = vadd.f32 %v2255, %v2428
        %2430 = vdwg.mxu0
        %v2431 = vmax.f32 %v2344, 0.0
        %v2432 = vmax.f32 %v2346, 0.0
        %v2433 = vmax.f32 %v2421, 0.0
        %v2434 = vmax.f32 %v2423, 0.0
        %v2435 = vmax.f32 %v2350, 0.0
        %v2436 = vmax.f32 %v2352, 0.0
        %v2437 = vmax.f32 %v2427, 0.0
        %v2438 = vmax.f32 %v2429, 0.0
        %v2439 = vld [vmem:[%s1 + $0x10] sm:$0xff]
        %v2440 = vld [vmem:[%s1 + $0x18] sm:$0xff]
        %v2441 = vld [vmem:[%s1 + $0x20] sm:$0xff]
        %v2442 = vld [vmem:[%s1 + $0x28] sm:$0xff]
        %v2443 = vld [vmem:[%s2 + $0x10] sm:$0xff]
        %v2444 = vld [vmem:[%s2 + $0x18] sm:$0xff]
        %v2445 = vld [vmem:[%s2 + $0x20] sm:$0xff]
        %v2446 = vld [vmem:[%s2 + $0x28] sm:$0xff]
        %2448 = vset.pattern.permute.xlu0 0
        %2449 = vperm.xlu0 %2448, %v2443
        %v2450 = vpop.permute.xlu0 %2449
        %2453 = vset.pattern.permute.xlu0 0
        %2454 = vperm.xlu0 %2453, %v2444
        %v2455 = vpop.permute.xlu0 %2454
        %2458 = vset.pattern.permute.xlu0 0
        %2459 = vperm.xlu0 %2458, %v2445
        %v2460 = vpop.permute.xlu0 %2459
        %2463 = vset.pattern.permute.xlu0 0
        %2464 = vperm.xlu0 %2463, %v2446
        %v2465 = vpop.permute.xlu0 %2464
        %vm2467 = vcmask 130048
        %v2469 = vsel %vm2467, %v2439, 0
        %v2472 = vsel %vm2467, %v2440, 0
        %v2475 = vsel %vm2467, %v2441, 0
        %v2478 = vsel %vm2467, %v2442, 0
        %2480 = vmatprep.subr.mxu0 0.0
        %2481 = vmatpush1.msra.mxu0 0.0
        %2482 = vmatprep.subr.mxu0 0.0
        %2483 = vmatpush1.msra.mxu0 0.0
        %2484 = vmatprep.subr.mxu0 0.0
        %2485 = vmatpush1.msra.mxu0 0.0
        %2486 = vmatprep.subr.mxu0 0.0
        %2487 = vmatpush1.msra.mxu0 0.0
        %2488 = vmatprep.subr.mxu0 0.0
        %2489 = vmatpush1.msra.mxu0 0.0
        %2490 = vmatprep.subr.mxu0 0.0
        %2491 = vmatpush1.msra.mxu0 0.0
        %2492 = vmatprep.subr.mxu0 0.0
        %2493 = vmatpush1.msra.mxu0 0.0
        %2494 = vmatprep.subr.mxu0 0.0
        %2495 = vmatpush1.msra.mxu0 0.0
        %2496 = vmatprep.subr.mxu0 0.0
        %2497 = vmatpush1.msra.mxu0 0.0
        %2498 = vmatprep.subr.mxu0 0.0
        %2499 = vmatpush1.msra.mxu0 0.0
        %2500 = vmatprep.subr.mxu0 0.0
        %2501 = vmatpush1.msra.mxu0 0.0
        %2502 = vmatprep.subr.mxu0 0.0
        %2503 = vmatpush1.msra.mxu0 0.0
        %2504 = vmatprep.subr.mxu0 0.0
        %2505 = vmatpush1.msra.mxu0 0.0
        %2506 = vmatprep.subr.mxu0 0.0
        %2507 = vmatpush1.msra.mxu0 0.0
        %2508 = vmatprep.subr.mxu0 %v2436
        %2509 = vmatpush1.msra.mxu0 %v2435
        %2510 = vmatprep.subr.mxu0 %v2432
        %2511 = vmatpush1.msra.mxu0 %v2431
        %2512 = vmatprep.subr.mxu0 0.0
        %2513 = vmatpush2.msra.mxu0 0.0
        %2514 = vmatprep.subr.mxu0 0.0
        %2515 = vmatpush2.msra.mxu0 0.0
        %2516 = vmatprep.subr.mxu0 0.0
        %2517 = vmatpush2.msra.mxu0 0.0
        %2518 = vmatprep.subr.mxu0 0.0
        %2519 = vmatpush2.msra.mxu0 0.0
        %2520 = vmatprep.subr.mxu0 0.0
        %2521 = vmatpush2.msra.mxu0 0.0
        %2522 = vmatprep.subr.mxu0 0.0
        %2523 = vmatpush2.msra.mxu0 0.0
        %2524 = vmatprep.subr.mxu0 0.0
        %2525 = vmatpush2.msra.mxu0 0.0
        %2526 = vmatprep.subr.mxu0 0.0
        %2527 = vmatpush2.msra.mxu0 0.0
        %2528 = vmatprep.subr.mxu0 0.0
        %2529 = vmatpush2.msra.mxu0 0.0
        %2530 = vmatprep.subr.mxu0 0.0
        %2531 = vmatpush2.msra.mxu0 0.0
        %2532 = vmatprep.subr.mxu0 0.0
        %2533 = vmatpush2.msra.mxu0 0.0
        %2534 = vmatprep.subr.mxu0 0.0
        %2535 = vmatpush2.msra.mxu0 0.0
        %2536 = vmatprep.subr.mxu0 0.0
        %2537 = vmatpush2.msra.mxu0 0.0
        %2538 = vmatprep.subr.mxu0 0.0
        %2539 = vmatpush2.msra.mxu0 0.0
        %2540 = vmatprep.subr.mxu0 0.0
        %2541 = vmatpush2.msra.mxu0 0.0
        %2542 = vmatprep.subr.mxu0 0.0
        %2543 = vmatpush2.msra.mxu0 0.0
        %2544 = vmatprep.mubr.f32.mxu0 0.0
        %2545 = vmatmul.mubr.f32.gmra.mxu0 %v2469
        %v2546 = vpop.f32.mrf.mxu0
        %v2547 = vadd.f32 %v2450, %v2546
        %v2548 = vpop.f32.mrf.mxu0
        %v2549 = vadd.f32 %v2450, %v2548
        %2550 = vmatprep.mubr.f32.mxu0 0.0
        %2551 = vmatmul.mubr.f32.gmra.mxu0 %v2472
        %v2552 = vpop.f32.mrf.mxu0
        %v2553 = vadd.f32 %v2455, %v2552
        %v2554 = vpop.f32.mrf.mxu0
        %v2555 = vadd.f32 %v2455, %v2554
        %2556 = vmatprep.mubr.f32.mxu0 0.0
        %2557 = vmatmul.mubr.f32.gmra.mxu0 %v2475
        %v2558 = vpop.f32.mrf.mxu0
        %v2559 = vadd.f32 %v2460, %v2558
        %v2560 = vpop.f32.mrf.mxu0
        %v2561 = vadd.f32 %v2460, %v2560
        %2562 = vmatprep.mubr.f32.mxu0 0.0
        %2563 = vmatmul.mubr.f32.gmra.mxu0 %v2478
        %v2564 = vpop.f32.mrf.mxu0
        %v2565 = vadd.f32 %v2465, %v2564
        %v2566 = vpop.f32.mrf.mxu0
        %v2567 = vadd.f32 %v2465, %v2566
        %2568 = vdwg.mxu0
        %2569 = vmatprep.subr.mxu0 0.0
        %2570 = vmatpush1.msra.mxu0 0.0
        %2571 = vmatprep.subr.mxu0 0.0
        %2572 = vmatpush1.msra.mxu0 0.0
        %2573 = vmatprep.subr.mxu0 0.0
        %2574 = vmatpush1.msra.mxu0 0.0
        %2575 = vmatprep.subr.mxu0 0.0
        %2576 = vmatpush1.msra.mxu0 0.0
        %2577 = vmatprep.subr.mxu0 0.0
        %2578 = vmatpush1.msra.mxu0 0.0
        %2579 = vmatprep.subr.mxu0 0.0
        %2580 = vmatpush1.msra.mxu0 0.0
        %2581 = vmatprep.subr.mxu0 0.0
        %2582 = vmatpush1.msra.mxu0 0.0
        %2583 = vmatprep.subr.mxu0 0.0
        %2584 = vmatpush1.msra.mxu0 0.0
        %2585 = vmatprep.subr.mxu0 0.0
        %2586 = vmatpush1.msra.mxu0 0.0
        %2587 = vmatprep.subr.mxu0 0.0
        %2588 = vmatpush1.msra.mxu0 0.0
        %2589 = vmatprep.subr.mxu0 0.0
        %2590 = vmatpush1.msra.mxu0 0.0
        %2591 = vmatprep.subr.mxu0 0.0
        %2592 = vmatpush1.msra.mxu0 0.0
        %2593 = vmatprep.subr.mxu0 0.0
        %2594 = vmatpush1.msra.mxu0 0.0
        %2595 = vmatprep.subr.mxu0 0.0
        %2596 = vmatpush1.msra.mxu0 0.0
        %2597 = vmatprep.subr.mxu0 %v2438
        %2598 = vmatpush1.msra.mxu0 %v2437
        %2599 = vmatprep.subr.mxu0 %v2434
        %2600 = vmatpush1.msra.mxu0 %v2433
        %2601 = vmatprep.subr.mxu0 0.0
        %2602 = vmatpush2.msra.mxu0 0.0
        %2603 = vmatprep.subr.mxu0 0.0
        %2604 = vmatpush2.msra.mxu0 0.0
        %2605 = vmatprep.subr.mxu0 0.0
        %2606 = vmatpush2.msra.mxu0 0.0
        %2607 = vmatprep.subr.mxu0 0.0
        %2608 = vmatpush2.msra.mxu0 0.0
        %2609 = vmatprep.subr.mxu0 0.0
        %2610 = vmatpush2.msra.mxu0 0.0
        %2611 = vmatprep.subr.mxu0 0.0
        %2612 = vmatpush2.msra.mxu0 0.0
        %2613 = vmatprep.subr.mxu0 0.0
        %2614 = vmatpush2.msra.mxu0 0.0
        %2615 = vmatprep.subr.mxu0 0.0
        %2616 = vmatpush2.msra.mxu0 0.0
        %2617 = vmatprep.subr.mxu0 0.0
        %2618 = vmatpush2.msra.mxu0 0.0
        %2619 = vmatprep.subr.mxu0 0.0
        %2620 = vmatpush2.msra.mxu0 0.0
        %2621 = vmatprep.subr.mxu0 0.0
        %2622 = vmatpush2.msra.mxu0 0.0
        %2623 = vmatprep.subr.mxu0 0.0
        %2624 = vmatpush2.msra.mxu0 0.0
        %2625 = vmatprep.subr.mxu0 0.0
        %2626 = vmatpush2.msra.mxu0 0.0
        %2627 = vmatprep.subr.mxu0 0.0
        %2628 = vmatpush2.msra.mxu0 0.0
        %2629 = vmatprep.subr.mxu0 0.0
        %2630 = vmatpush2.msra.mxu0 0.0
        %2631 = vmatprep.subr.mxu0 0.0
        %2632 = vmatpush2.msra.mxu0 0.0
        %2633 = vmatprep.mubr.f32.mxu0 0.0
        %2634 = vmatmul.mubr.f32.gmra.mxu0 %v2469
        %v2635 = vpop.f32.mrf.mxu0
        %v2636 = vadd.f32 %v2450, %v2635
        %v2637 = vpop.f32.mrf.mxu0
        %v2638 = vadd.f32 %v2450, %v2637
        %2639 = vmatprep.mubr.f32.mxu0 0.0
        %2640 = vmatmul.mubr.f32.gmra.mxu0 %v2472
        %v2641 = vpop.f32.mrf.mxu0
        %v2642 = vadd.f32 %v2455, %v2641
        %v2643 = vpop.f32.mrf.mxu0
        %v2644 = vadd.f32 %v2455, %v2643
        %2645 = vmatprep.mubr.f32.mxu0 0.0
        %2646 = vmatmul.mubr.f32.gmra.mxu0 %v2475
        %v2647 = vpop.f32.mrf.mxu0
        %v2648 = vadd.f32 %v2460, %v2647
        %v2649 = vpop.f32.mrf.mxu0
        %v2650 = vadd.f32 %v2460, %v2649
        %2651 = vmatprep.mubr.f32.mxu0 0.0
        %2652 = vmatmul.mubr.f32.gmra.mxu0 %v2478
        %v2653 = vpop.f32.mrf.mxu0
        %v2654 = vadd.f32 %v2465, %v2653
        %v2655 = vpop.f32.mrf.mxu0
        %v2656 = vadd.f32 %v2465, %v2655
        %2657 = vdwg.mxu0
        %v2658 = vmax.f32 %v2547, 0.0
        %v2659 = vmax.f32 %v2549, 0.0
        %v2660 = vmax.f32 %v2636, 0.0
        %v2661 = vmax.f32 %v2638, 0.0
        %v2662 = vmax.f32 %v2553, 0.0
        %v2663 = vmax.f32 %v2555, 0.0
        %v2664 = vmax.f32 %v2642, 0.0
        %v2665 = vmax.f32 %v2644, 0.0
        %v2666 = vmax.f32 %v2559, 0.0
        %v2667 = vmax.f32 %v2561, 0.0
        %v2668 = vmax.f32 %v2648, 0.0
        %v2669 = vmax.f32 %v2650, 0.0
        %v2670 = vmax.f32 %v2565, 0.0
        %v2671 = vmax.f32 %v2567, 0.0
        %v2672 = vmax.f32 %v2654, 0.0
        %v2673 = vmax.f32 %v2656, 0.0
        %v2674 = vld [vmem:[%s1 + $0x170] sm:$0xff]
        %v2675 = vld [vmem:[%s1 + $0x178] sm:$0xff]
        %v2676 = vld [vmem:[%s1 + $0x180] sm:$0xff]
        %v2677 = vld [vmem:[%s1 + $0x188] sm:$0xff]
        %v2678 = vld [vmem:[#allocation3] sm:$0xff]
        %v2679 = vld [vmem:[#allocation3 + $0x8] sm:$0xff]
        %v2680 = vld [vmem:[#allocation3 + $0x10] sm:$0xff]
        %v2681 = vld [vmem:[#allocation3 + $0x18] sm:$0xff]
        %2683 = vset.pattern.permute.xlu0 0
        %2684 = vperm.xlu0 %2683, %v2678
        %v2685 = vpop.permute.xlu0 %2684
        %2688 = vset.pattern.permute.xlu0 0
        %2689 = vperm.xlu0 %2688, %v2679
        %v2690 = vpop.permute.xlu0 %2689
        %2693 = vset.pattern.permute.xlu0 0
        %2694 = vperm.xlu0 %2693, %v2680
        %v2695 = vpop.permute.xlu0 %2694
        %2698 = vset.pattern.permute.xlu0 0
        %2699 = vperm.xlu0 %2698, %v2681
        %v2700 = vpop.permute.xlu0 %2699
        %vm2702 = vcmask 261120
        %v2704 = vsel %vm2702, %v2674, 0
        %v2707 = vsel %vm2702, %v2675, 0
        %v2710 = vsel %vm2702, %v2676, 0
        %v2713 = vsel %vm2702, %v2677, 0
        %2715 = vmatprep.subr.mxu0 0.0
        %2716 = vmatpush1.msra.mxu0 0.0
        %2717 = vmatprep.subr.mxu0 0.0
        %2718 = vmatpush1.msra.mxu0 0.0
        %2719 = vmatprep.subr.mxu0 0.0
        %2720 = vmatpush1.msra.mxu0 0.0
        %2721 = vmatprep.subr.mxu0 0.0
        %2722 = vmatpush1.msra.mxu0 0.0
        %2723 = vmatprep.subr.mxu0 0.0
        %2724 = vmatpush1.msra.mxu0 0.0
        %2725 = vmatprep.subr.mxu0 0.0
        %2726 = vmatpush1.msra.mxu0 0.0
        %2727 = vmatprep.subr.mxu0 0.0
        %2728 = vmatpush1.msra.mxu0 0.0
        %2729 = vmatprep.subr.mxu0 0.0
        %2730 = vmatpush1.msra.mxu0 0.0
        %2731 = vmatprep.subr.mxu0 0.0
        %2732 = vmatpush1.msra.mxu0 0.0
        %2733 = vmatprep.subr.mxu0 0.0
        %2734 = vmatpush1.msra.mxu0 0.0
        %2735 = vmatprep.subr.mxu0 0.0
        %2736 = vmatpush1.msra.mxu0 0.0
        %2737 = vmatprep.subr.mxu0 0.0
        %2738 = vmatpush1.msra.mxu0 0.0
        %2739 = vmatprep.subr.mxu0 %v2671
        %2740 = vmatpush1.msra.mxu0 %v2670
        %2741 = vmatprep.subr.mxu0 %v2667
        %2742 = vmatpush1.msra.mxu0 %v2666
        %2743 = vmatprep.subr.mxu0 %v2663
        %2744 = vmatpush1.msra.mxu0 %v2662
        %2745 = vmatprep.subr.mxu0 %v2659
        %2746 = vmatpush1.msra.mxu0 %v2658
        %2747 = vmatprep.subr.mxu0 0.0
        %2748 = vmatpush2.msra.mxu0 0.0
        %2749 = vmatprep.subr.mxu0 0.0
        %2750 = vmatpush2.msra.mxu0 0.0
        %2751 = vmatprep.subr.mxu0 0.0
        %2752 = vmatpush2.msra.mxu0 0.0
        %2753 = vmatprep.subr.mxu0 0.0
        %2754 = vmatpush2.msra.mxu0 0.0
        %2755 = vmatprep.subr.mxu0 0.0
        %2756 = vmatpush2.msra.mxu0 0.0
        %2757 = vmatprep.subr.mxu0 0.0
        %2758 = vmatpush2.msra.mxu0 0.0
        %2759 = vmatprep.subr.mxu0 0.0
        %2760 = vmatpush2.msra.mxu0 0.0
        %2761 = vmatprep.subr.mxu0 0.0
        %2762 = vmatpush2.msra.mxu0 0.0
        %2763 = vmatprep.subr.mxu0 0.0
        %2764 = vmatpush2.msra.mxu0 0.0
        %2765 = vmatprep.subr.mxu0 0.0
        %2766 = vmatpush2.msra.mxu0 0.0
        %2767 = vmatprep.subr.mxu0 0.0
        %2768 = vmatpush2.msra.mxu0 0.0
        %2769 = vmatprep.subr.mxu0 0.0
        %2770 = vmatpush2.msra.mxu0 0.0
        %2771 = vmatprep.subr.mxu0 0.0
        %2772 = vmatpush2.msra.mxu0 0.0
        %2773 = vmatprep.subr.mxu0 0.0
        %2774 = vmatpush2.msra.mxu0 0.0
        %2775 = vmatprep.subr.mxu0 0.0
        %2776 = vmatpush2.msra.mxu0 0.0
        %2777 = vmatprep.subr.mxu0 0.0
        %2778 = vmatpush2.msra.mxu0 0.0
        %2779 = vmatprep.mubr.f32.mxu0 0.0
        %2780 = vmatmul.mubr.f32.gmra.mxu0 %v2704
        %v2781 = vpop.f32.mrf.mxu0
        %v2782 = vadd.f32 %v2685, %v2781
        %v2783 = vpop.f32.mrf.mxu0
        %v2784 = vadd.f32 %v2685, %v2783
        %2785 = vmatprep.mubr.f32.mxu0 0.0
        %2786 = vmatmul.mubr.f32.gmra.mxu0 %v2707
        %v2787 = vpop.f32.mrf.mxu0
        %v2788 = vadd.f32 %v2690, %v2787
        %v2789 = vpop.f32.mrf.mxu0
        %v2790 = vadd.f32 %v2690, %v2789
        %2791 = vmatprep.mubr.f32.mxu0 0.0
        %2792 = vmatmul.mubr.f32.gmra.mxu0 %v2710
        %v2793 = vpop.f32.mrf.mxu0
        %v2794 = vadd.f32 %v2695, %v2793
        %v2795 = vpop.f32.mrf.mxu0
        %v2796 = vadd.f32 %v2695, %v2795
        %2797 = vmatprep.mubr.f32.mxu0 0.0
        %2798 = vmatmul.mubr.f32.gmra.mxu0 %v2713
        %v2799 = vpop.f32.mrf.mxu0
        %v2800 = vadd.f32 %v2700, %v2799
        %v2801 = vpop.f32.mrf.mxu0
        %v2802 = vadd.f32 %v2700, %v2801
        %2803 = vdwg.mxu0
        %2804 = vmatprep.subr.mxu0 0.0
        %2805 = vmatpush1.msra.mxu0 0.0
        %2806 = vmatprep.subr.mxu0 0.0
        %2807 = vmatpush1.msra.mxu0 0.0
        %2808 = vmatprep.subr.mxu0 0.0
        %2809 = vmatpush1.msra.mxu0 0.0
        %2810 = vmatprep.subr.mxu0 0.0
        %2811 = vmatpush1.msra.mxu0 0.0
        %2812 = vmatprep.subr.mxu0 0.0
        %2813 = vmatpush1.msra.mxu0 0.0
        %2814 = vmatprep.subr.mxu0 0.0
        %2815 = vmatpush1.msra.mxu0 0.0
        %2816 = vmatprep.subr.mxu0 0.0
        %2817 = vmatpush1.msra.mxu0 0.0
        %2818 = vmatprep.subr.mxu0 0.0
        %2819 = vmatpush1.msra.mxu0 0.0
        %2820 = vmatprep.subr.mxu0 0.0
        %2821 = vmatpush1.msra.mxu0 0.0
        %2822 = vmatprep.subr.mxu0 0.0
        %2823 = vmatpush1.msra.mxu0 0.0
        %2824 = vmatprep.subr.mxu0 0.0
        %2825 = vmatpush1.msra.mxu0 0.0
        %2826 = vmatprep.subr.mxu0 0.0
        %2827 = vmatpush1.msra.mxu0 0.0
        %2828 = vmatprep.subr.mxu0 %v2673
        %2829 = vmatpush1.msra.mxu0 %v2672
        %2830 = vmatprep.subr.mxu0 %v2669
        %2831 = vmatpush1.msra.mxu0 %v2668
        %2832 = vmatprep.subr.mxu0 %v2665
        %2833 = vmatpush1.msra.mxu0 %v2664
        %2834 = vmatprep.subr.mxu0 %v2661
        %2835 = vmatpush1.msra.mxu0 %v2660
        %2836 = vmatprep.subr.mxu0 0.0
        %2837 = vmatpush2.msra.mxu0 0.0
        %2838 = vmatprep.subr.mxu0 0.0
        %2839 = vmatpush2.msra.mxu0 0.0
        %2840 = vmatprep.subr.mxu0 0.0
        %2841 = vmatpush2.msra.mxu0 0.0
        %2842 = vmatprep.subr.mxu0 0.0
        %2843 = vmatpush2.msra.mxu0 0.0
        %2844 = vmatprep.subr.mxu0 0.0
        %2845 = vmatpush2.msra.mxu0 0.0
        %2846 = vmatprep.subr.mxu0 0.0
        %2847 = vmatpush2.msra.mxu0 0.0
        %2848 = vmatprep.subr.mxu0 0.0
        %2849 = vmatpush2.msra.mxu0 0.0
        %2850 = vmatprep.subr.mxu0 0.0
        %2851 = vmatpush2.msra.mxu0 0.0
        %2852 = vmatprep.subr.mxu0 0.0
        %2853 = vmatpush2.msra.mxu0 0.0
        %2854 = vmatprep.subr.mxu0 0.0
        %2855 = vmatpush2.msra.mxu0 0.0
        %2856 = vmatprep.subr.mxu0 0.0
        %2857 = vmatpush2.msra.mxu0 0.0
        %2858 = vmatprep.subr.mxu0 0.0
        %2859 = vmatpush2.msra.mxu0 0.0
        %2860 = vmatprep.subr.mxu0 0.0
        %2861 = vmatpush2.msra.mxu0 0.0
        %2862 = vmatprep.subr.mxu0 0.0
        %2863 = vmatpush2.msra.mxu0 0.0
        %2864 = vmatprep.subr.mxu0 0.0
        %2865 = vmatpush2.msra.mxu0 0.0
        %2866 = vmatprep.subr.mxu0 0.0
        %2867 = vmatpush2.msra.mxu0 0.0
        %2868 = vmatprep.mubr.f32.mxu0 0.0
        %2869 = vmatmul.mubr.f32.gmra.mxu0 %v2704
        %v2870 = vpop.f32.mrf.mxu0
        %v2871 = vadd.f32 %v2685, %v2870
        %v2872 = vpop.f32.mrf.mxu0
        %v2873 = vadd.f32 %v2685, %v2872
        %2874 = vmatprep.mubr.f32.mxu0 0.0
        %2875 = vmatmul.mubr.f32.gmra.mxu0 %v2707
        %v2876 = vpop.f32.mrf.mxu0
        %v2877 = vadd.f32 %v2690, %v2876
        %v2878 = vpop.f32.mrf.mxu0
        %v2879 = vadd.f32 %v2690, %v2878
        %2880 = vmatprep.mubr.f32.mxu0 0.0
        %2881 = vmatmul.mubr.f32.gmra.mxu0 %v2710
        %v2882 = vpop.f32.mrf.mxu0
        %v2883 = vadd.f32 %v2695, %v2882
        %v2884 = vpop.f32.mrf.mxu0
        %v2885 = vadd.f32 %v2695, %v2884
        %2886 = vmatprep.mubr.f32.mxu0 0.0
        %2887 = vmatmul.mubr.f32.gmra.mxu0 %v2713
        %v2888 = vpop.f32.mrf.mxu0
        %v2889 = vadd.f32 %v2700, %v2888
        %v2890 = vpop.f32.mrf.mxu0
        %v2891 = vadd.f32 %v2700, %v2890
        %2892 = vdwg.mxu0
        %v2893 = vmax.f32 %v2782, 0.0
        %v2894 = vmax.f32 %v2784, 0.0
        %v2895 = vmax.f32 %v2871, 0.0
        %v2896 = vmax.f32 %v2873, 0.0
        %v2897 = vmax.f32 %v2788, 0.0
        %v2898 = vmax.f32 %v2790, 0.0
        %v2899 = vmax.f32 %v2877, 0.0
        %v2900 = vmax.f32 %v2879, 0.0
        %v2901 = vmax.f32 %v2794, 0.0
        %v2902 = vmax.f32 %v2796, 0.0
        %v2903 = vmax.f32 %v2883, 0.0
        %v2904 = vmax.f32 %v2885, 0.0
        %v2905 = vmax.f32 %v2800, 0.0
        %v2906 = vmax.f32 %v2802, 0.0
        %v2907 = vmax.f32 %v2889, 0.0
        %v2908 = vmax.f32 %v2891, 0.0
        %v2909 = vld [vmem:[%s1 + $0x190] sm:$0xff]
        %v2910 = vld [vmem:[%s1 + $0x198] sm:$0xff]
        %v2911 = vld [vmem:[%s2 + $0x190] sm:$0xff]
        %v2912 = vld [vmem:[%s2 + $0x198] sm:$0xff]
        %2914 = vset.pattern.permute.xlu0 0
        %2915 = vperm.xlu0 %2914, %v2911
        %v2916 = vpop.permute.xlu0 %2915
        %2919 = vset.pattern.permute.xlu0 0
        %2920 = vperm.xlu0 %2919, %v2912
        %v2921 = vpop.permute.xlu0 %2920
        %v2924 = vsel %vm2702, %v2909, 0
        %v2927 = vsel %vm2702, %v2910, 0
        %2929 = vmatprep.subr.mxu0 0.0
        %2930 = vmatpush1.msra.mxu0 0.0
        %2931 = vmatprep.subr.mxu0 0.0
        %2932 = vmatpush1.msra.mxu0 0.0
        %2933 = vmatprep.subr.mxu0 0.0
        %2934 = vmatpush1.msra.mxu0 0.0
        %2935 = vmatprep.subr.mxu0 0.0
        %2936 = vmatpush1.msra.mxu0 0.0
        %2937 = vmatprep.subr.mxu0 0.0
        %2938 = vmatpush1.msra.mxu0 0.0
        %2939 = vmatprep.subr.mxu0 0.0
        %2940 = vmatpush1.msra.mxu0 0.0
        %2941 = vmatprep.subr.mxu0 0.0
        %2942 = vmatpush1.msra.mxu0 0.0
        %2943 = vmatprep.subr.mxu0 0.0
        %2944 = vmatpush1.msra.mxu0 0.0
        %2945 = vmatprep.subr.mxu0 0.0
        %2946 = vmatpush1.msra.mxu0 0.0
        %2947 = vmatprep.subr.mxu0 0.0
        %2948 = vmatpush1.msra.mxu0 0.0
        %2949 = vmatprep.subr.mxu0 0.0
        %2950 = vmatpush1.msra.mxu0 0.0
        %2951 = vmatprep.subr.mxu0 0.0
        %2952 = vmatpush1.msra.mxu0 0.0
        %2953 = vmatprep.subr.mxu0 %v2906
        %2954 = vmatpush1.msra.mxu0 %v2905
        %2955 = vmatprep.subr.mxu0 %v2902
        %2956 = vmatpush1.msra.mxu0 %v2901
        %2957 = vmatprep.subr.mxu0 %v2898
        %2958 = vmatpush1.msra.mxu0 %v2897
        %2959 = vmatprep.subr.mxu0 %v2894
        %2960 = vmatpush1.msra.mxu0 %v2893
        %2961 = vmatprep.subr.mxu0 0.0
        %2962 = vmatpush2.msra.mxu0 0.0
        %2963 = vmatprep.subr.mxu0 0.0
        %2964 = vmatpush2.msra.mxu0 0.0
        %2965 = vmatprep.subr.mxu0 0.0
        %2966 = vmatpush2.msra.mxu0 0.0
        %2967 = vmatprep.subr.mxu0 0.0
        %2968 = vmatpush2.msra.mxu0 0.0
        %2969 = vmatprep.subr.mxu0 0.0
        %2970 = vmatpush2.msra.mxu0 0.0
        %2971 = vmatprep.subr.mxu0 0.0
        %2972 = vmatpush2.msra.mxu0 0.0
        %2973 = vmatprep.subr.mxu0 0.0
        %2974 = vmatpush2.msra.mxu0 0.0
        %2975 = vmatprep.subr.mxu0 0.0
        %2976 = vmatpush2.msra.mxu0 0.0
        %2977 = vmatprep.subr.mxu0 0.0
        %2978 = vmatpush2.msra.mxu0 0.0
        %2979 = vmatprep.subr.mxu0 0.0
        %2980 = vmatpush2.msra.mxu0 0.0
        %2981 = vmatprep.subr.mxu0 0.0
        %2982 = vmatpush2.msra.mxu0 0.0
        %2983 = vmatprep.subr.mxu0 0.0
        %2984 = vmatpush2.msra.mxu0 0.0
        %2985 = vmatprep.subr.mxu0 0.0
        %2986 = vmatpush2.msra.mxu0 0.0
        %2987 = vmatprep.subr.mxu0 0.0
        %2988 = vmatpush2.msra.mxu0 0.0
        %2989 = vmatprep.subr.mxu0 0.0
        %2990 = vmatpush2.msra.mxu0 0.0
        %2991 = vmatprep.subr.mxu0 0.0
        %2992 = vmatpush2.msra.mxu0 0.0
        %2993 = vmatprep.mubr.f32.mxu0 0.0
        %2994 = vmatmul.mubr.f32.gmra.mxu0 %v2924
        %v2995 = vpop.f32.mrf.mxu0
        %v2996 = vadd.f32 %v2916, %v2995
        %v2997 = vpop.f32.mrf.mxu0
        %v2998 = vadd.f32 %v2916, %v2997
        %2999 = vmatprep.mubr.f32.mxu0 0.0
        %3000 = vmatmul.mubr.f32.gmra.mxu0 %v2927
        %v3001 = vpop.f32.mrf.mxu0
        %v3002 = vadd.f32 %v2921, %v3001
        %v3003 = vpop.f32.mrf.mxu0
        %v3004 = vadd.f32 %v2921, %v3003
        %3005 = vdwg.mxu0
        %3006 = vmatprep.subr.mxu0 0.0
        %3007 = vmatpush1.msra.mxu0 0.0
        %3008 = vmatprep.subr.mxu0 0.0
        %3009 = vmatpush1.msra.mxu0 0.0
        %3010 = vmatprep.subr.mxu0 0.0
        %3011 = vmatpush1.msra.mxu0 0.0
        %3012 = vmatprep.subr.mxu0 0.0
        %3013 = vmatpush1.msra.mxu0 0.0
        %3014 = vmatprep.subr.mxu0 0.0
        %3015 = vmatpush1.msra.mxu0 0.0
        %3016 = vmatprep.subr.mxu0 0.0
        %3017 = vmatpush1.msra.mxu0 0.0
        %3018 = vmatprep.subr.mxu0 0.0
        %3019 = vmatpush1.msra.mxu0 0.0
        %3020 = vmatprep.subr.mxu0 0.0
        %3021 = vmatpush1.msra.mxu0 0.0
        %3022 = vmatprep.subr.mxu0 0.0
        %3023 = vmatpush1.msra.mxu0 0.0
        %3024 = vmatprep.subr.mxu0 0.0
        %3025 = vmatpush1.msra.mxu0 0.0
        %3026 = vmatprep.subr.mxu0 0.0
        %3027 = vmatpush1.msra.mxu0 0.0
        %3028 = vmatprep.subr.mxu0 0.0
        %3029 = vmatpush1.msra.mxu0 0.0
        %3030 = vmatprep.subr.mxu0 %v2908
        %3031 = vmatpush1.msra.mxu0 %v2907
        %3032 = vmatprep.subr.mxu0 %v2904
        %3033 = vmatpush1.msra.mxu0 %v2903
        %3034 = vmatprep.subr.mxu0 %v2900
        %3035 = vmatpush1.msra.mxu0 %v2899
        %3036 = vmatprep.subr.mxu0 %v2896
        %3037 = vmatpush1.msra.mxu0 %v2895
        %3038 = vmatprep.subr.mxu0 0.0
        %3039 = vmatpush2.msra.mxu0 0.0
        %3040 = vmatprep.subr.mxu0 0.0
        %3041 = vmatpush2.msra.mxu0 0.0
        %3042 = vmatprep.subr.mxu0 0.0
        %3043 = vmatpush2.msra.mxu0 0.0
        %3044 = vmatprep.subr.mxu0 0.0
        %3045 = vmatpush2.msra.mxu0 0.0
        %3046 = vmatprep.subr.mxu0 0.0
        %3047 = vmatpush2.msra.mxu0 0.0
        %3048 = vmatprep.subr.mxu0 0.0
        %3049 = vmatpush2.msra.mxu0 0.0
        %3050 = vmatprep.subr.mxu0 0.0
        %3051 = vmatpush2.msra.mxu0 0.0
        %3052 = vmatprep.subr.mxu0 0.0
        %3053 = vmatpush2.msra.mxu0 0.0
        %3054 = vmatprep.subr.mxu0 0.0
        %3055 = vmatpush2.msra.mxu0 0.0
        %3056 = vmatprep.subr.mxu0 0.0
        %3057 = vmatpush2.msra.mxu0 0.0
        %3058 = vmatprep.subr.mxu0 0.0
        %3059 = vmatpush2.msra.mxu0 0.0
        %3060 = vmatprep.subr.mxu0 0.0
        %3061 = vmatpush2.msra.mxu0 0.0
        %3062 = vmatprep.subr.mxu0 0.0
        %3063 = vmatpush2.msra.mxu0 0.0
        %3064 = vmatprep.subr.mxu0 0.0
        %3065 = vmatpush2.msra.mxu0 0.0
        %3066 = vmatprep.subr.mxu0 0.0
        %3067 = vmatpush2.msra.mxu0 0.0
        %3068 = vmatprep.subr.mxu0 0.0
        %3069 = vmatpush2.msra.mxu0 0.0
        %3070 = vmatprep.mubr.f32.mxu0 0.0
        %3071 = vmatmul.mubr.f32.gmra.mxu0 %v2924
        %v3072 = vpop.f32.mrf.mxu0
        %v3073 = vadd.f32 %v2916, %v3072
        %v3074 = vpop.f32.mrf.mxu0
        %v3075 = vadd.f32 %v2916, %v3074
        %3076 = vmatprep.mubr.f32.mxu0 0.0
        %3077 = vmatmul.mubr.f32.gmra.mxu0 %v2927
        %v3078 = vpop.f32.mrf.mxu0
        %v3079 = vadd.f32 %v2921, %v3078
        %v3080 = vpop.f32.mrf.mxu0
        %v3081 = vadd.f32 %v2921, %v3080
        %3082 = vdwg.mxu0
        %v3083 = vmax.f32 %v2996, 0.0
        %v3084 = vmax.f32 %v2998, 0.0
        %v3085 = vmax.f32 %v3073, 0.0
        %v3086 = vmax.f32 %v3075, 0.0
        %v3087 = vmax.f32 %v3002, 0.0
        %v3088 = vmax.f32 %v3004, 0.0
        %v3089 = vmax.f32 %v3079, 0.0
        %v3090 = vmax.f32 %v3081, 0.0
        %v3091 = vld [vmem:[%s1 + $0x1a0] sm:$0xf]
        %v3092 = vld [vmem:[%s2 + $0x1a0] sm:$0xf]
        %3094 = vset.pattern.permute.xlu0 0
        %3095 = vperm.xlu0 %3094, %v3092
        %v3096 = vpop.permute.xlu0 %3095
        %v3099 = vsel %vm2467, %v3091, 0
        %3101 = vmatprep.subr.mxu0 0.0
        %3102 = vmatpush1.msra.mxu0 0.0
        %3103 = vmatprep.subr.mxu0 0.0
        %3104 = vmatpush1.msra.mxu0 0.0
        %3105 = vmatprep.subr.mxu0 0.0
        %3106 = vmatpush1.msra.mxu0 0.0
        %3107 = vmatprep.subr.mxu0 0.0
        %3108 = vmatpush1.msra.mxu0 0.0
        %3109 = vmatprep.subr.mxu0 0.0
        %3110 = vmatpush1.msra.mxu0 0.0
        %3111 = vmatprep.subr.mxu0 0.0
        %3112 = vmatpush1.msra.mxu0 0.0
        %3113 = vmatprep.subr.mxu0 0.0
        %3114 = vmatpush1.msra.mxu0 0.0
        %3115 = vmatprep.subr.mxu0 0.0
        %3116 = vmatpush1.msra.mxu0 0.0
        %3117 = vmatprep.subr.mxu0 0.0
        %3118 = vmatpush1.msra.mxu0 0.0
        %3119 = vmatprep.subr.mxu0 0.0
        %3120 = vmatpush1.msra.mxu0 0.0
        %3121 = vmatprep.subr.mxu0 0.0
        %3122 = vmatpush1.msra.mxu0 0.0
        %3123 = vmatprep.subr.mxu0 0.0
        %3124 = vmatpush1.msra.mxu0 0.0
        %3125 = vmatprep.subr.mxu0 0.0
        %3126 = vmatpush1.msra.mxu0 0.0
        %3127 = vmatprep.subr.mxu0 0.0
        %3128 = vmatpush1.msra.mxu0 0.0
        %3129 = vmatprep.subr.mxu0 %v3088
        %3130 = vmatpush1.msra.mxu0 %v3087
        %3131 = vmatprep.subr.mxu0 %v3084
        %3132 = vmatpush1.msra.mxu0 %v3083
        %3133 = vmatprep.subr.mxu0 0.0
        %3134 = vmatpush2.msra.mxu0 0.0
        %3135 = vmatprep.subr.mxu0 0.0
        %3136 = vmatpush2.msra.mxu0 0.0
        %3137 = vmatprep.subr.mxu0 0.0
        %3138 = vmatpush2.msra.mxu0 0.0
        %3139 = vmatprep.subr.mxu0 0.0
        %3140 = vmatpush2.msra.mxu0 0.0
        %3141 = vmatprep.subr.mxu0 0.0
        %3142 = vmatpush2.msra.mxu0 0.0
        %3143 = vmatprep.subr.mxu0 0.0
        %3144 = vmatpush2.msra.mxu0 0.0
        %3145 = vmatprep.subr.mxu0 0.0
        %3146 = vmatpush2.msra.mxu0 0.0
        %3147 = vmatprep.subr.mxu0 0.0
        %3148 = vmatpush2.msra.mxu0 0.0
        %3149 = vmatprep.subr.mxu0 0.0
        %3150 = vmatpush2.msra.mxu0 0.0
        %3151 = vmatprep.subr.mxu0 0.0
        %3152 = vmatpush2.msra.mxu0 0.0
        %3153 = vmatprep.subr.mxu0 0.0
        %3154 = vmatpush2.msra.mxu0 0.0
        %3155 = vmatprep.subr.mxu0 0.0
        %3156 = vmatpush2.msra.mxu0 0.0
        %3157 = vmatprep.subr.mxu0 0.0
        %3158 = vmatpush2.msra.mxu0 0.0
        %3159 = vmatprep.subr.mxu0 0.0
        %3160 = vmatpush2.msra.mxu0 0.0
        %3161 = vmatprep.subr.mxu0 0.0
        %3162 = vmatpush2.msra.mxu0 0.0
        %3163 = vmatprep.subr.mxu0 0.0
        %3164 = vmatpush2.msra.mxu0 0.0
        %3165 = vmatprep.mubr.f32.mxu0 0.0
        %3166 = vmatmul.mubr.f32.gmra.mxu0 %v3099
        %v3167 = vpop.f32.mrf.mxu0
        %v3168 = vadd.f32 %v3096, %v3167
        %v3169 = vpop.f32.mrf.mxu0
        %v3170 = vadd.f32 %v3096, %v3169
        %3171 = vdwg.mxu0
        %3172 = vmatprep.subr.mxu0 0.0
        %3173 = vmatpush1.msra.mxu0 0.0
        %3174 = vmatprep.subr.mxu0 0.0
        %3175 = vmatpush1.msra.mxu0 0.0
        %3176 = vmatprep.subr.mxu0 0.0
        %3177 = vmatpush1.msra.mxu0 0.0
        %3178 = vmatprep.subr.mxu0 0.0
        %3179 = vmatpush1.msra.mxu0 0.0
        %3180 = vmatprep.subr.mxu0 0.0
        %3181 = vmatpush1.msra.mxu0 0.0
        %3182 = vmatprep.subr.mxu0 0.0
        %3183 = vmatpush1.msra.mxu0 0.0
        %3184 = vmatprep.subr.mxu0 0.0
        %3185 = vmatpush1.msra.mxu0 0.0
        %3186 = vmatprep.subr.mxu0 0.0
        %3187 = vmatpush1.msra.mxu0 0.0
        %3188 = vmatprep.subr.mxu0 0.0
        %3189 = vmatpush1.msra.mxu0 0.0
        %3190 = vmatprep.subr.mxu0 0.0
        %3191 = vmatpush1.msra.mxu0 0.0
        %3192 = vmatprep.subr.mxu0 0.0
        %3193 = vmatpush1.msra.mxu0 0.0
        %3194 = vmatprep.subr.mxu0 0.0
        %3195 = vmatpush1.msra.mxu0 0.0
        %3196 = vmatprep.subr.mxu0 0.0
        %3197 = vmatpush1.msra.mxu0 0.0
        %3198 = vmatprep.subr.mxu0 0.0
        %3199 = vmatpush1.msra.mxu0 0.0
        %3200 = vmatprep.subr.mxu0 %v3090
        %3201 = vmatpush1.msra.mxu0 %v3089
        %3202 = vmatprep.subr.mxu0 %v3086
        %3203 = vmatpush1.msra.mxu0 %v3085
        %3204 = vmatprep.subr.mxu0 0.0
        %3205 = vmatpush2.msra.mxu0 0.0
        %3206 = vmatprep.subr.mxu0 0.0
        %3207 = vmatpush2.msra.mxu0 0.0
        %3208 = vmatprep.subr.mxu0 0.0
        %3209 = vmatpush2.msra.mxu0 0.0
        %3210 = vmatprep.subr.mxu0 0.0
        %3211 = vmatpush2.msra.mxu0 0.0
        %3212 = vmatprep.subr.mxu0 0.0
        %3213 = vmatpush2.msra.mxu0 0.0
        %3214 = vmatprep.subr.mxu0 0.0
        %3215 = vmatpush2.msra.mxu0 0.0
        %3216 = vmatprep.subr.mxu0 0.0
        %3217 = vmatpush2.msra.mxu0 0.0
        %3218 = vmatprep.subr.mxu0 0.0
        %3219 = vmatpush2.msra.mxu0 0.0
        %3220 = vmatprep.subr.mxu0 0.0
        %3221 = vmatpush2.msra.mxu0 0.0
        %3222 = vmatprep.subr.mxu0 0.0
        %3223 = vmatpush2.msra.mxu0 0.0
        %3224 = vmatprep.subr.mxu0 0.0
        %3225 = vmatpush2.msra.mxu0 0.0
        %3226 = vmatprep.subr.mxu0 0.0
        %3227 = vmatpush2.msra.mxu0 0.0
        %3228 = vmatprep.subr.mxu0 0.0
        %3229 = vmatpush2.msra.mxu0 0.0
        %3230 = vmatprep.subr.mxu0 0.0
        %3231 = vmatpush2.msra.mxu0 0.0
        %3232 = vmatprep.subr.mxu0 0.0
        %3233 = vmatpush2.msra.mxu0 0.0
        %3234 = vmatprep.subr.mxu0 0.0
        %3235 = vmatpush2.msra.mxu0 0.0
        %3236 = vmatprep.mubr.f32.mxu0 0.0
        %3237 = vmatmul.mubr.f32.gmra.mxu0 %v3099
        %v3238 = vpop.f32.mrf.mxu0
        %v3239 = vadd.f32 %v3096, %v3238
        %v3240 = vpop.f32.mrf.mxu0
        %v3241 = vadd.f32 %v3096, %v3240
        %3242 = vdwg.mxu0
        %v3243 = vxor.u32 %v3168, 2147483648
        %v3244 = vxor.u32 %v3170, 2147483648
        %v3245 = vxor.u32 %v3239, 2147483648
        %v3246 = vxor.u32 %v3241, 2147483648
        %v3247 = vmul.f32 %v3243, 1.442695
        %v3248 = vpow.pop %v3247
        %v3249 = vmul.f32 %v3244, 1.442695
        %v3250 = vpow.pop %v3249
        %v3251 = vmul.f32 %v3245, 1.442695
        %v3252 = vpow.pop %v3251
        %v3253 = vmul.f32 %v3246, 1.442695
        %v3254 = vpow.pop %v3253
        %v3255 = vadd.f32 %v3248, 1.0
        %v3256 = vadd.f32 %v3250, 1.0
        %v3257 = vadd.f32 %v3252, 1.0
        %v3258 = vadd.f32 %v3254, 1.0
        %v3259 = vrcp.pop %v3255
        %v3260 = vmul.f32 1.0, %v3259
        %v3261 = vrcp.pop %v3256
        %v3262 = vmul.f32 1.0, %v3261
        %v3263 = vrcp.pop %v3257
        %v3264 = vmul.f32 1.0, %v3263
        %v3265 = vrcp.pop %v3258
        %v3266 = vmul.f32 1.0, %v3265
        %v3271 = vcombine.low %v3260, %v3262
        %v3272 = vcombine.low %v3264, %v3266
        %3275 = vst [vmem:[%s304] sm:$0xff] %v3271
        %3276 = vst [vmem:[%s304 + $0x8] sm:$0xff] %v3272
      $region48: #{pointnet_seg_impulse_v1.1} parent=31 // pred_fallthru
        _
      %s3277 = ssub.s32 %s19, 2
      %p3278 = scmp.gt.s32.totalorder %s3277, 0
      %s3279 = scalar_select %p3278, %s3277, 0
      %s3280 = smul.u32 4, %s3279
      %p3281 = scmp.lt.s32.totalorder %s18, 1
      %s3282 = scalar_select %p3281, %s18, 1
      %p3283 = scmp.lt.s32.totalorder %s3280, 7
      %s3284 = scalar_select %p3283, %s3280, 7
      %s3285 = smul.addr %s3282, 8
      %s3286 = sadd.s32 %s3284, %s3285
      %s3287 = smul.addr %s3286, 4
      %s3288 = scalar_lea.vmem %s3, %s3287
      // Predicated region
      $region49: #{pointnet_seg_impulse_v1.1} parent=31 // pred_check
        %p3289 = pneg %p146
      $region50: #{pointnet_seg_impulse_v1.1} parent=31 // pred_check_branch
        %3291 = sbr.rel (%p3289) target = $region52
      $region51: #{pointnet_seg_impulse_v1.1} parent=31 // pred_region
        %s3292 = ssub.s32 %s19, 2
        %p3293 = scmp.gt.s32.totalorder %s3292, 0
        %s3294 = scalar_select %p3293, %s3292, 0
        %s3295 = smul.u32 4, %s3294
      $region52: #{pointnet_seg_impulse_v1.1} parent=31 // pred_fallthru
        _
    $region32: #{pointnet_seg_impulse_v1.1} parent=5 // pred_fallthru
      _
    %p3296 = scmp.le.s32.totalorder 2, %s9
    // Predicated region
    $region53: #{pointnet_seg_impulse_v1.1} parent=5 // pred_check
      %p3297 = pneg %p3296
    $region54: #{pointnet_seg_impulse_v1.1} parent=5 // pred_check_branch
      %3299 = sbr.rel (%p3297) target = $region56
    $region55: #{pointnet_seg_impulse_v1.1} parent=5 // pred_region
      %s3300 = ssub.s32 %s9, 2
      // Predicated region
      $region57: #{pointnet_seg_impulse_v1.1} parent=55 // pred_check
        %p3301 = pneg %p152
      $region58: #{pointnet_seg_impulse_v1.1} parent=55 // pred_check_branch
        %3303 = sbr.rel (%p3301) target = $region60
      $region59: #{pointnet_seg_impulse_v1.1} parent=55 // pred_region
        %s3304 = ssub.s32 %s21, 2
        %p3305 = scmp.gt.s32.totalorder %s3304, 0
        %s3306 = scalar_select %p3305, %s3304, 0
        %s3307 = smul.u32 4, %s3306
        %p3308 = scmp.lt.s32.totalorder %s20, 1
        %s3309 = scalar_select %p3308, %s20, 1
        %p3310 = scmp.lt.s32.totalorder %s3307, 7
        %s3311 = scalar_select %p3310, %s3307, 7
        %s3312 = smul.addr %s3309, 8
        %s3313 = sadd.s32 %s3311, %s3312
        %s3314 = smul.addr %s3313, 4
        %s3315 = scalar_lea.vmem %s3, %s3314
      $region60: #{pointnet_seg_impulse_v1.1} parent=55 // pred_fallthru
        _
    $region56: #{pointnet_seg_impulse_v1.1} parent=5 // pred_fallthru
      _
  $region6: #{pointnet_seg_impulse_v1.1} parent=0 // loop_footer
    %s13 = sadd.s32 1, %s9
  $region7: #{pointnet_seg_impulse_v1.1} parent=0 // loop_footer_branch
    %8 = sbr.rel target = $region3
  $region8: #{pointnet_seg_impulse_v1.1} parent=0 // loop_exit
    _

</llo_original>
